<compile_context>
chip_gen: v6e
topology: v6e:2x2x1
jax: 0.10.0
libtpu: 0.0.40
codegen_flags: <defaults>
</compile_context>

<pallas_src>
import math
import jax
import jax.numpy as jnp
from jax.experimental import pallas as pl
from jax.experimental.pallas import tpu as pltpu

# ---- small config consistent with the Ethos forward ----
B, T = 2, 8            # batch, sequence length
C = 32                 # hidden_size
NH = 4                 # n_head
HD = C // NH           # head dim
NLAYER = 2             # n_layer
VOCAB = 128            # vocab_size (lane-dense output)
BLOCK_SIZE = 16        # block_size (>= T)
EPS = 1e-5             # F.layer_norm eps used by the reference LayerNorm
NEG = -1e30            # finite mask sentinel (padding-safe, unlike -inf)


def _layernorm(x, w, b):
    mu = jnp.mean(x, axis=-1, keepdims=True)
    var = jnp.mean((x - mu) ** 2, axis=-1, keepdims=True)
    return (x - mu) * jax.lax.rsqrt(var + EPS) * w + b


def _gelu_exact(x):
    # nn.GELU() default = exact erf GELU
    return 0.5 * x * (1.0 + jax.lax.erf(x * (1.0 / math.sqrt(2.0))))


def ethos_fused_kernel(
    x_emb_ref,                         # (B, T, C) f32  embeddings
    ln1w_ref, ln1b_ref,                # (1, 1, C) f32
    wqkv_ref, bqkv_ref,                # (1, C, 3C) bf16 / (1, 1, 3C) f32
    wo_ref, bo_ref,                    # (1, C, C) bf16 / (1, 1, C) f32
    ln2w_ref, ln2b_ref,                # (1, 1, C) f32
    wfc_ref, bfc_ref,                  # (1, C, 4C) bf16 / (1, 1, 4C) f32
    wfc2_ref, bfc2_ref,                # (1, 4C, C) bf16 / (1, 1, C) f32
    lnfw_ref, lnfb_ref,                # (1, C) f32
    lmw_ref,                           # (C, VOCAB) bf16
    logits_ref,                        # (B, 1, VOCAB) f32 output
    x_sc,                              # VMEM scratch (B, T, C) f32 residual
):
    layer = pl.program_id(0)

    @pl.when(layer == 0)
    def _():
        x_sc[...] = x_emb_ref[...]

    x = x_sc[...]                                     # (B, T, C) f32

    # ---------------- causal self-attention ----------------
    h = _layernorm(x, ln1w_ref[0], ln1b_ref[0])
    h2d = h.reshape(B * T, C).astype(jnp.bfloat16)
    qkv = (jnp.dot(h2d, wqkv_ref[0], preferred_element_type=jnp.float32)
           + bqkv_ref[0]).reshape(B, T, 3 * C)        # fused QKV projection

    qi = jax.lax.broadcasted_iota(jnp.int32, (T, T), 0)
    ki = jax.lax.broadcasted_iota(jnp.int32, (T, T), 1)
    causal = (ki <= qi)[None, :, :]                   # (1, T, T)
    scale = 1.0 / math.sqrt(HD)

    heads = []
    for hh in range(NH):                              # static, tiny T x T work
        qh = qkv[:, :, 0 * C + hh * HD:0 * C + (hh + 1) * HD]
        kh = qkv[:, :, 1 * C + hh * HD:1 * C + (hh + 1) * HD]
        vh = qkv[:, :, 2 * C + hh * HD:2 * C + (hh + 1) * HD]
        ah = jnp.einsum('bqd,bkd->bqk', qh, kh,
                        preferred_element_type=jnp.float32) * scale
        ah = jnp.where(causal, ah, NEG)
        ah = ah - jnp.max(ah, axis=-1, keepdims=True)
        ph = jnp.exp(ah)
        ph = ph * pl.reciprocal(jnp.sum(ph, axis=-1, keepdims=True),
                                approx=True)
        heads.append(jnp.einsum('bqk,bkd->bqd', ph, vh,
                                preferred_element_type=jnp.float32))
    y = jnp.concatenate(heads, axis=-1)               # (B, T, C), head-major
    y2d = y.reshape(B * T, C).astype(jnp.bfloat16)
    attn = (jnp.dot(y2d, wo_ref[0], preferred_element_type=jnp.float32)
            + bo_ref[0])                              # fused output projection
    x = x + attn.reshape(B, T, C)                     # residual 1

    # ---------------- MLP ----------------
    h2 = _layernorm(x, ln2w_ref[0], ln2b_ref[0])
    f = (jnp.dot(h2.reshape(B * T, C).astype(jnp.bfloat16), wfc_ref[0],
                 preferred_element_type=jnp.float32) + bfc_ref[0])
    f = _gelu_exact(f)
    f = (jnp.dot(f.astype(jnp.bfloat16), wfc2_ref[0],
                 preferred_element_type=jnp.float32) + bfc2_ref[0])
    x = x + f.reshape(B, T, C)                        # residual 2
    x_sc[...] = x                                     # stays resident in VMEM

    # ---------------- ln_f + lm_head (last token only) ----------------
    @pl.when(layer == NLAYER - 1)
    def _():
        x_last = x[:, T - 1:T, :]                     # (B, 1, C)
        hl = _layernorm(x_last, lnfw_ref[...], lnfb_ref[...])
        logits = jnp.dot(hl.reshape(B, C).astype(jnp.bfloat16), lmw_ref[...],
                         preferred_element_type=jnp.float32)
        logits_ref[...] = logits.reshape(B, 1, VOCAB)


def _stacked(shape):
    # per-layer stacked parameter: block = one layer slice, indexed by grid pos
    return pl.BlockSpec((1,) + shape, lambda l: (l, 0, 0))


_fused_call = pl.pallas_call(
    ethos_fused_kernel,
    out_shape=jax.ShapeDtypeStruct((B, 1, VOCAB), jnp.float32),
    grid_spec=pltpu.PrefetchScalarGridSpec(
        num_scalar_prefetch=0,
        grid=(NLAYER,),
        in_specs=[
            pl.BlockSpec((B, T, C), lambda l: (0, 0, 0)),   # x_emb (resident)
            _stacked((1, C)), _stacked((1, C)),             # ln1 w/b
            _stacked((C, 3 * C)), _stacked((1, 3 * C)),     # wqkv/bqkv
            _stacked((C, C)), _stacked((1, C)),             # wo/bo
            _stacked((1, C)), _stacked((1, C)),             # ln2 w/b
            _stacked((C, 4 * C)), _stacked((1, 4 * C)),     # wfc/bfc
            _stacked((4 * C, C)), _stacked((1, C)),         # wfc2/bfc2
            pl.BlockSpec((1, C), lambda l: (0, 0)),         # lnf_w
            pl.BlockSpec((1, C), lambda l: (0, 0)),         # lnf_b
            pl.BlockSpec((C, VOCAB), lambda l: (0, 0)),     # lm_w
        ],
        out_specs=pl.BlockSpec((B, 1, VOCAB), lambda l: (0, 0, 0)),
        scratch_shapes=[pltpu.VMEM((B, T, C), jnp.float32)],
    ),
    compiler_params=pltpu.CompilerParams(
        dimension_semantics=("arbitrary",)),   # layer axis carries the residual
)


def init_params(key):
    """Deterministic synthetic init matching Ethos._init_weights:
    Linear/Embedding weights ~ N(0, 0.02); biases zero; LayerNorm w=1,b=0;
    every *.c_proj.weight re-drawn with std 0.02/sqrt(2*n_layer).
    Matmul weights stored bf16 (MXU-native), transposed to (in, out)."""
    std = 0.02
    proj_std = 0.02 / math.sqrt(2 * NLAYER)
    keys = list(jax.random.split(key, 64))
    it = iter(keys)

    def nrm(shape, s):
        return jax.random.normal(next(it), shape, jnp.float32) * s

    params = {
        # embedding tables (see TODO in ethos_forward about EhrEmbeddings)
        'tok_emb':  nrm((VOCAB, C), std),
        'pos_emb':  nrm((BLOCK_SIZE, C), std),
        'age_emb':  nrm((16, C), std),
        'seg_emb':  nrm((4, C), std),
        'rank_emb': nrm((16, C), std),
        'dom_emb':  nrm((8, C), std),
        'lnf_w': jnp.ones((1, C), jnp.float32),
        'lnf_b': jnp.zeros((1, C), jnp.float32),
        'lm_w':  nrm((C, VOCAB), std).astype(jnp.bfloat16),
    }
    wqkv, wo, wfc, wfc2 = [], [], [], []
    for _ in range(NLAYER):
        wqkv.append(nrm((C, 3 * C), std))        # c_attn (transposed)
        wo.append(nrm((C, C), proj_std))         # attn c_proj (transposed)
        wfc.append(nrm((C, 4 * C), std))         # mlp c_fc (transposed)
        wfc2.append(nrm((4 * C, C), proj_std))   # mlp c_proj (transposed)
    params.update(
        ln1w=jnp.ones((NLAYER, 1, C), jnp.float32),
        ln1b=jnp.zeros((NLAYER, 1, C), jnp.float32),
        wqkv=jnp.stack(wqkv).astype(jnp.bfloat16),
        bqkv=jnp.zeros((NLAYER, 1, 3 * C), jnp.float32),
        wo=jnp.stack(wo).astype(jnp.bfloat16),
        bo=jnp.zeros((NLAYER, 1, C), jnp.float32),
        ln2w=jnp.ones((NLAYER, 1, C), jnp.float32),
        ln2b=jnp.zeros((NLAYER, 1, C), jnp.float32),
        wfc=jnp.stack(wfc).astype(jnp.bfloat16),
        bfc=jnp.zeros((NLAYER, 1, 4 * C), jnp.float32),
        wfc2=jnp.stack(wfc2).astype(jnp.bfloat16),
        bfc2=jnp.zeros((NLAYER, 1, C), jnp.float32),
    )
    return params


def ethos_forward(params, input_ids, age_ids=None, segment_ids=None,
                  record_rank_ids=None, domain_ids=None, target=None):
    # TODO(synk): EhrEmbeddings source was not provided with the module;
    # approximated here as the sum of token + position + optional
    # age/segment/record_rank/domain embedding lookups (ETHOS/EHR-BERT style).
    Ti = input_ids.shape[1]
    pos = jnp.arange(Ti)
    x = params['tok_emb'][input_ids] + params['pos_emb'][pos][None, :, :]
    if age_ids is not None:
        x = x + params['age_emb'][age_ids]
    if segment_ids is not None:
        x = x + params['seg_emb'][segment_ids]
    if record_rank_ids is not None:
        x = x + params['rank_emb'][record_rank_ids]
    if domain_ids is not None:
        x = x + params['dom_emb'][domain_ids]
    x = x.astype(jnp.float32)
    # transformer.drop: dropout p=0.0 (eval) -> identity

    # TODO(synk): target-supplied path (full-sequence logits + cross-entropy)
    # not implemented; this kernel covers the inference path (target=None).
    logits = _fused_call(
        x,
        params['ln1w'], params['ln1b'],
        params['wqkv'], params['bqkv'],
        params['wo'], params['bo'],
        params['ln2w'], params['ln2b'],
        params['wfc'], params['bfc'],
        params['wfc2'], params['bfc2'],
        params['lnf_w'], params['lnf_b'], params['lm_w'],
    )
    return logits, None


if __name__ == "__main__":
    key = jax.random.PRNGKey(0)
    kp, k1, k2, k3, k4, k5 = jax.random.split(key, 6)
    params = init_params(kp)

    input_ids = jax.random.randint(k1, (B, T), 0, VOCAB)
    age_ids = jax.random.randint(k2, (B, T), 0, 16)
    segment_ids = jax.random.randint(k3, (B, T), 0, 4)
    record_rank_ids = jax.random.randint(k4, (B, T), 0, 16)
    domain_ids = jax.random.randint(k5, (B, T), 0, 8)

    fwd = jax.jit(ethos_forward)
    logits, loss = fwd(params, input_ids, age_ids, segment_ids,
                       record_rank_ids, domain_ids)
    jax.block_until_ready(logits)
    assert logits.shape == (B, 1, VOCAB)
    assert loss is None
    print("KERNEL_OK")
</pallas_src>

<mosaic_0001>
module attributes {stable_mosaic.version = 11 : i64} {
  func.func @ethos_fused_kernel(%arg0: i32, %arg1: memref<2x8x32xf32, #tpu.memory_space<vmem>>, %arg2: memref<1x1x32xf32, #tpu.memory_space<vmem>>, %arg3: memref<1x1x32xf32, #tpu.memory_space<vmem>>, %arg4: memref<1x32x96xbf16, #tpu.memory_space<vmem>>, %arg5: memref<1x1x96xf32, #tpu.memory_space<vmem>>, %arg6: memref<1x32x32xbf16, #tpu.memory_space<vmem>>, %arg7: memref<1x1x32xf32, #tpu.memory_space<vmem>>, %arg8: memref<1x1x32xf32, #tpu.memory_space<vmem>>, %arg9: memref<1x1x32xf32, #tpu.memory_space<vmem>>, %arg10: memref<1x32x128xbf16, #tpu.memory_space<vmem>>, %arg11: memref<1x1x128xf32, #tpu.memory_space<vmem>>, %arg12: memref<1x128x32xbf16, #tpu.memory_space<vmem>>, %arg13: memref<1x1x32xf32, #tpu.memory_space<vmem>>, %arg14: memref<1x32xf32, #tpu.memory_space<vmem>>, %arg15: memref<1x32xf32, #tpu.memory_space<vmem>>, %arg16: memref<32x128xbf16, #tpu.memory_space<vmem>>, %arg17: memref<2x1x128xf32, #tpu.memory_space<vmem>>, %arg18: memref<2x8x32xf32, #tpu.memory_space<vmem>>) attributes {dimension_semantics = [#tpu.dimension_semantics<arbitrary>], iteration_bounds = array<i64: 2>, scalar_prefetch = 0 : i64, scratch_operands = 1 : i64, tpu.core_type = #tpu.core_type<tc>, window_params = [{pipeline_mode = #tpu.pipeline_mode<synchronous>, transform_indices = @transform_0, window_bounds = array<i64: 2, 8, 32>}, {transform_indices = @transform_1, window_bounds = array<i64: 1, 1, 32>}, {transform_indices = @transform_2, window_bounds = array<i64: 1, 1, 32>}, {transform_indices = @transform_3, window_bounds = array<i64: 1, 32, 96>}, {transform_indices = @transform_4, window_bounds = array<i64: 1, 1, 96>}, {transform_indices = @transform_5, window_bounds = array<i64: 1, 32, 32>}, {transform_indices = @transform_6, window_bounds = array<i64: 1, 1, 32>}, {transform_indices = @transform_7, window_bounds = array<i64: 1, 1, 32>}, {transform_indices = @transform_8, window_bounds = array<i64: 1, 1, 32>}, {transform_indices = @transform_9, window_bounds = array<i64: 1, 32, 128>}, {transform_indices = @transform_10, window_bounds = array<i64: 1, 1, 128>}, {transform_indices = @transform_11, window_bounds = array<i64: 1, 128, 32>}, {transform_indices = @transform_12, window_bounds = array<i64: 1, 1, 32>}, {pipeline_mode = #tpu.pipeline_mode<synchronous>, transform_indices = @transform_13, window_bounds = array<i64: 1, 32>}, {pipeline_mode = #tpu.pipeline_mode<synchronous>, transform_indices = @transform_14, window_bounds = array<i64: 1, 32>}, {pipeline_mode = #tpu.pipeline_mode<synchronous>, transform_indices = @transform_15, window_bounds = array<i64: 32, 128>}, {pipeline_mode = #tpu.pipeline_mode<synchronous>, transform_indices = @transform_16, window_bounds = array<i64: 2, 1, 128>}]} {
    %c0_i32 = arith.constant 0 : i32
    %0 = arith.cmpi eq, %arg0, %c0_i32 : i32
    %1 = arith.extui %0 : i1 to i32
    %c0_i32_0 = arith.constant 0 : i32
    %2 = arith.cmpi ne, %1, %c0_i32_0 : i32
    scf.if %2 {
      %c0_83 = arith.constant 0 : index
      %c0_84 = arith.constant 0 : index
      %c0_85 = arith.constant 0 : index
      %201 = vector.load %arg1[%c0_83, %c0_84, %c0_85] : memref<2x8x32xf32, #tpu.memory_space<vmem>>, vector<2x8x32xf32>
      %c0_86 = arith.constant 0 : index
      %c0_87 = arith.constant 0 : index
      %c0_88 = arith.constant 0 : index
      %202 = vector.load %arg18[%c0_86, %c0_87, %c0_88] : memref<2x8x32xf32, #tpu.memory_space<vmem>>, vector<2x8x32xf32>
      tpu.vector_store %arg18[%c0_86, %c0_87, %c0_88], %201 {strides = array<i32>} : memref<2x8x32xf32, #tpu.memory_space<vmem>>, vector<2x8x32xf32>,
    } else {
    }
    %c0 = arith.constant 0 : index
    %c0_1 = arith.constant 0 : index
    %c0_2 = arith.constant 0 : index
    %3 = vector.load %arg18[%c0, %c0_1, %c0_2] : memref<2x8x32xf32, #tpu.memory_space<vmem>>, vector<2x8x32xf32>
    %c0_3 = arith.constant 0 : index
    %c0_4 = arith.constant 0 : index
    %c0_5 = arith.constant 0 : index
    %4 = vector.load %arg2[%c0_3, %c0_4, %c0_5] : memref<1x1x32xf32, #tpu.memory_space<vmem>>, vector<1x1x32xf32>
    %5 = vector.shape_cast %4 : vector<1x1x32xf32> to vector<1x32xf32>
    %c0_6 = arith.constant 0 : index
    %c0_7 = arith.constant 0 : index
    %c0_8 = arith.constant 0 : index
    %6 = vector.load %arg3[%c0_6, %c0_7, %c0_8] : memref<1x1x32xf32, #tpu.memory_space<vmem>>, vector<1x1x32xf32>
    %7 = vector.shape_cast %6 : vector<1x1x32xf32> to vector<1x32xf32>
    %cst = arith.constant dense<0.000000e+00> : vector<2x8xf32>
    %8 = vector.multi_reduction <add>, %3, %cst [2] : vector<2x8x32xf32> to vector<2x8xf32>
    %9 = vector.shape_cast %8 : vector<2x8xf32> to vector<2x8x1xf32>
    %cst_9 = arith.constant 3.200000e+01 : f32
    %10 = vector.broadcast %cst_9 : f32 to vector<2x8x1xf32>
    %11 = arith.divf %9, %10 : vector<2x8x1xf32>
    %12 = vector.broadcast %11 : vector<2x8x1xf32> to vector<2x8x32xf32>
    %13 = arith.subf %3, %12 : vector<2x8x32xf32>
    %14 = arith.mulf %13, %13 : vector<2x8x32xf32>
    %cst_10 = arith.constant dense<0.000000e+00> : vector<2x8xf32>
    %15 = vector.multi_reduction <add>, %14, %cst_10 [2] : vector<2x8x32xf32> to vector<2x8xf32>
    %16 = vector.shape_cast %15 : vector<2x8xf32> to vector<2x8x1xf32>
    %cst_11 = arith.constant 3.200000e+01 : f32
    %17 = vector.broadcast %cst_11 : f32 to vector<2x8x1xf32>
    %18 = arith.divf %16, %17 : vector<2x8x1xf32>
    %19 = vector.broadcast %11 : vector<2x8x1xf32> to vector<2x8x32xf32>
    %20 = arith.subf %3, %19 : vector<2x8x32xf32>
    %cst_12 = arith.constant 9.99999974E-6 : f32
    %21 = vector.broadcast %cst_12 : f32 to vector<2x8x1xf32>
    %22 = arith.addf %18, %21 : vector<2x8x1xf32>
    %23 = math.rsqrt %22 : vector<2x8x1xf32>
    %24 = vector.broadcast %23 : vector<2x8x1xf32> to vector<2x8x32xf32>
    %25 = arith.mulf %20, %24 : vector<2x8x32xf32>
    %26 = vector.shape_cast %5 : vector<1x32xf32> to vector<1x1x32xf32>
    %27 = vector.broadcast %26 : vector<1x1x32xf32> to vector<2x8x32xf32>
    %28 = arith.mulf %25, %27 : vector<2x8x32xf32>
    %29 = vector.shape_cast %7 : vector<1x32xf32> to vector<1x1x32xf32>
    %30 = vector.broadcast %29 : vector<1x1x32xf32> to vector<2x8x32xf32>
    %31 = arith.addf %28, %30 : vector<2x8x32xf32>
    %32 = vector.shape_cast %31 : vector<2x8x32xf32> to vector<16x32xf32>
    %33 = arith.truncf %32 : vector<16x32xf32> to vector<16x32xbf16>
    %c0_13 = arith.constant 0 : index
    %c0_14 = arith.constant 0 : index
    %c0_15 = arith.constant 0 : index
    %34 = vector.load %arg4[%c0_13, %c0_14, %c0_15] : memref<1x32x96xbf16, #tpu.memory_space<vmem>>, vector<1x32x96xbf16>
    %35 = vector.shape_cast %34 : vector<1x32x96xbf16> to vector<32x96xbf16>
    %cst_16 = arith.constant dense<0.000000e+00> : vector<16x96xf32>
    %36 = tpu.matmul %33, %35, %cst_16 {dimension_numbers = #tpu.dot_dimension_numbers<[1], [0], [0], [1], [0, 0, 1, 1], [], []>} : vector<16x32xbf16>, vector<32x96xbf16>, vector<16x96xf32> -> vector<16x96xf32>
    %c0_17 = arith.constant 0 : index
    %c0_18 = arith.constant 0 : index
    %c0_19 = arith.constant 0 : index
    %37 = vector.load %arg5[%c0_17, %c0_18, %c0_19] : memref<1x1x96xf32, #tpu.memory_space<vmem>>, vector<1x1x96xf32>
    %38 = vector.shape_cast %37 : vector<1x1x96xf32> to vector<1x96xf32>
    %39 = vector.broadcast %38 : vector<1x96xf32> to vector<16x96xf32>
    %40 = arith.addf %36, %39 : vector<16x96xf32>
    %41 = vector.shape_cast %40 : vector<16x96xf32> to vector<2x8x96xf32>
    %42 = tpu.iota {dimensions = array<i32: 0>} : vector<8x8xi32>
    %43 = tpu.iota {dimensions = array<i32: 1>} : vector<8x8xi32>
    %44 = arith.cmpi sle, %43, %42 : vector<8x8xi32>
    %45 = vector.shape_cast %44 : vector<8x8xi1> to vector<1x8x8xi1>
    %46 = vector.extract_strided_slice %41 {offsets = [0, 0, 0], sizes = [2, 8, 8], strides = [1, 1, 1]} : vector<2x8x96xf32> to vector<2x8x8xf32>
    %47 = vector.extract_strided_slice %41 {offsets = [0, 0, 32], sizes = [2, 8, 8], strides = [1, 1, 1]} : vector<2x8x96xf32> to vector<2x8x8xf32>
    %48 = vector.extract_strided_slice %41 {offsets = [0, 0, 64], sizes = [2, 8, 8], strides = [1, 1, 1]} : vector<2x8x96xf32> to vector<2x8x8xf32>
    "tpu.trace_start"() <{level = 10 : i32, message = "bqd,bkd->bqk"}> : () -> ()
    %cst_20 = arith.constant dense<0.000000e+00> : vector<2x8x8xf32>
    %49 = tpu.matmul %46, %47, %cst_20 {dimension_numbers = #tpu.dot_dimension_numbers<[2], [2], [1], [1], [0, 0, 0, 1, 1, 1], [0], [0]>} : vector<2x8x8xf32>, vector<2x8x8xf32>, vector<2x8x8xf32> -> vector<2x8x8xf32>
    "tpu.trace_stop"() : () -> ()
    %cst_21 = arith.constant 0.353553385 : f32
    %50 = vector.broadcast %cst_21 : f32 to vector<2x8x8xf32>
    %51 = arith.mulf %49, %50 : vector<2x8x8xf32>
    %cst_22 = arith.constant -1.000000e+30 : f32
    %52 = vector.shape_cast %45 : vector<1x8x8xi1> to vector<1x8x8xi1>
    %53 = vector.broadcast %52 : vector<1x8x8xi1> to vector<2x8x8xi1>
    %54 = vector.broadcast %cst_22 : f32 to vector<2x8x8xf32>
    %55 = arith.select %53, %51, %54 : vector<2x8x8xi1>, vector<2x8x8xf32>
    %cst_23 = arith.constant dense<0xFF800000> : vector<2x8xf32>
    %56 = vector.multi_reduction <maximumf>, %55, %cst_23 [2] : vector<2x8x8xf32> to vector<2x8xf32>
    %57 = vector.shape_cast %56 : vector<2x8xf32> to vector<2x8x1xf32>
    %58 = vector.broadcast %57 : vector<2x8x1xf32> to vector<2x8x8xf32>
    %59 = arith.subf %55, %58 : vector<2x8x8xf32>
    %60 = math.exp %59 : vector<2x8x8xf32>
    %cst_24 = arith.constant dense<0.000000e+00> : vector<2x8xf32>
    %61 = vector.multi_reduction <add>, %60, %cst_24 [2] : vector<2x8x8xf32> to vector<2x8xf32>
    %62 = vector.shape_cast %61 : vector<2x8xf32> to vector<2x8x1xf32>
    %63 = tpu.reciprocal %62 {approx = true} : vector<2x8x1xf32> -> vector<2x8x1xf32>
    %64 = vector.broadcast %63 : vector<2x8x1xf32> to vector<2x8x8xf32>
    %65 = arith.mulf %60, %64 : vector<2x8x8xf32>
    "tpu.trace_start"() <{level = 10 : i32, message = "bqk,bkd->bqd"}> : () -> ()
    %cst_25 = arith.constant dense<0.000000e+00> : vector<2x8x8xf32>
    %66 = tpu.matmul %65, %48, %cst_25 {dimension_numbers = #tpu.dot_dimension_numbers<[2], [1], [1], [2], [0, 0, 0, 1, 1, 2], [0], [0]>} : vector<2x8x8xf32>, vector<2x8x8xf32>, vector<2x8x8xf32> -> vector<2x8x8xf32>
    "tpu.trace_stop"() : () -> ()
    %67 = vector.extract_strided_slice %41 {offsets = [0, 0, 8], sizes = [2, 8, 8], strides = [1, 1, 1]} : vector<2x8x96xf32> to vector<2x8x8xf32>
    %68 = vector.extract_strided_slice %41 {offsets = [0, 0, 40], sizes = [2, 8, 8], strides = [1, 1, 1]} : vector<2x8x96xf32> to vector<2x8x8xf32>
    %69 = vector.extract_strided_slice %41 {offsets = [0, 0, 72], sizes = [2, 8, 8], strides = [1, 1, 1]} : vector<2x8x96xf32> to vector<2x8x8xf32>
    "tpu.trace_start"() <{level = 10 : i32, message = "bqd,bkd->bqk"}> : () -> ()
    %cst_26 = arith.constant dense<0.000000e+00> : vector<2x8x8xf32>
    %70 = tpu.matmul %67, %68, %cst_26 {dimension_numbers = #tpu.dot_dimension_numbers<[2], [2], [1], [1], [0, 0, 0, 1, 1, 1], [0], [0]>} : vector<2x8x8xf32>, vector<2x8x8xf32>, vector<2x8x8xf32> -> vector<2x8x8xf32>
    "tpu.trace_stop"() : () -> ()
    %cst_27 = arith.constant 0.353553385 : f32
    %71 = vector.broadcast %cst_27 : f32 to vector<2x8x8xf32>
    %72 = arith.mulf %70, %71 : vector<2x8x8xf32>
    %cst_28 = arith.constant -1.000000e+30 : f32
    %73 = vector.shape_cast %45 : vector<1x8x8xi1> to vector<1x8x8xi1>
    %74 = vector.broadcast %73 : vector<1x8x8xi1> to vector<2x8x8xi1>
    %75 = vector.broadcast %cst_28 : f32 to vector<2x8x8xf32>
    %76 = arith.select %74, %72, %75 : vector<2x8x8xi1>, vector<2x8x8xf32>
    %cst_29 = arith.constant dense<0xFF800000> : vector<2x8xf32>
    %77 = vector.multi_reduction <maximumf>, %76, %cst_29 [2] : vector<2x8x8xf32> to vector<2x8xf32>
    %78 = vector.shape_cast %77 : vector<2x8xf32> to vector<2x8x1xf32>
    %79 = vector.broadcast %78 : vector<2x8x1xf32> to vector<2x8x8xf32>
    %80 = arith.subf %76, %79 : vector<2x8x8xf32>
    %81 = math.exp %80 : vector<2x8x8xf32>
    %cst_30 = arith.constant dense<0.000000e+00> : vector<2x8xf32>
    %82 = vector.multi_reduction <add>, %81, %cst_30 [2] : vector<2x8x8xf32> to vector<2x8xf32>
    %83 = vector.shape_cast %82 : vector<2x8xf32> to vector<2x8x1xf32>
    %84 = tpu.reciprocal %83 {approx = true} : vector<2x8x1xf32> -> vector<2x8x1xf32>
    %85 = vector.broadcast %84 : vector<2x8x1xf32> to vector<2x8x8xf32>
    %86 = arith.mulf %81, %85 : vector<2x8x8xf32>
    "tpu.trace_start"() <{level = 10 : i32, message = "bqk,bkd->bqd"}> : () -> ()
    %cst_31 = arith.constant dense<0.000000e+00> : vector<2x8x8xf32>
    %87 = tpu.matmul %86, %69, %cst_31 {dimension_numbers = #tpu.dot_dimension_numbers<[2], [1], [1], [2], [0, 0, 0, 1, 1, 2], [0], [0]>} : vector<2x8x8xf32>, vector<2x8x8xf32>, vector<2x8x8xf32> -> vector<2x8x8xf32>
    "tpu.trace_stop"() : () -> ()
    %88 = vector.extract_strided_slice %41 {offsets = [0, 0, 16], sizes = [2, 8, 8], strides = [1, 1, 1]} : vector<2x8x96xf32> to vector<2x8x8xf32>
    %89 = vector.extract_strided_slice %41 {offsets = [0, 0, 48], sizes = [2, 8, 8], strides = [1, 1, 1]} : vector<2x8x96xf32> to vector<2x8x8xf32>
    %90 = vector.extract_strided_slice %41 {offsets = [0, 0, 80], sizes = [2, 8, 8], strides = [1, 1, 1]} : vector<2x8x96xf32> to vector<2x8x8xf32>
    "tpu.trace_start"() <{level = 10 : i32, message = "bqd,bkd->bqk"}> : () -> ()
    %cst_32 = arith.constant dense<0.000000e+00> : vector<2x8x8xf32>
    %91 = tpu.matmul %88, %89, %cst_32 {dimension_numbers = #tpu.dot_dimension_numbers<[2], [2], [1], [1], [0, 0, 0, 1, 1, 1], [0], [0]>} : vector<2x8x8xf32>, vector<2x8x8xf32>, vector<2x8x8xf32> -> vector<2x8x8xf32>
    "tpu.trace_stop"() : () -> ()
    %cst_33 = arith.constant 0.353553385 : f32
    %92 = vector.broadcast %cst_33 : f32 to vector<2x8x8xf32>
    %93 = arith.mulf %91, %92 : vector<2x8x8xf32>
    %cst_34 = arith.constant -1.000000e+30 : f32
    %94 = vector.shape_cast %45 : vector<1x8x8xi1> to vector<1x8x8xi1>
    %95 = vector.broadcast %94 : vector<1x8x8xi1> to vector<2x8x8xi1>
    %96 = vector.broadcast %cst_34 : f32 to vector<2x8x8xf32>
    %97 = arith.select %95, %93, %96 : vector<2x8x8xi1>, vector<2x8x8xf32>
    %cst_35 = arith.constant dense<0xFF800000> : vector<2x8xf32>
    %98 = vector.multi_reduction <maximumf>, %97, %cst_35 [2] : vector<2x8x8xf32> to vector<2x8xf32>
    %99 = vector.shape_cast %98 : vector<2x8xf32> to vector<2x8x1xf32>
    %100 = vector.broadcast %99 : vector<2x8x1xf32> to vector<2x8x8xf32>
    %101 = arith.subf %97, %100 : vector<2x8x8xf32>
    %102 = math.exp %101 : vector<2x8x8xf32>
    %cst_36 = arith.constant dense<0.000000e+00> : vector<2x8xf32>
    %103 = vector.multi_reduction <add>, %102, %cst_36 [2] : vector<2x8x8xf32> to vector<2x8xf32>
    %104 = vector.shape_cast %103 : vector<2x8xf32> to vector<2x8x1xf32>
    %105 = tpu.reciprocal %104 {approx = true} : vector<2x8x1xf32> -> vector<2x8x1xf32>
    %106 = vector.broadcast %105 : vector<2x8x1xf32> to vector<2x8x8xf32>
    %107 = arith.mulf %102, %106 : vector<2x8x8xf32>
    "tpu.trace_start"() <{level = 10 : i32, message = "bqk,bkd->bqd"}> : () -> ()
    %cst_37 = arith.constant dense<0.000000e+00> : vector<2x8x8xf32>
    %108 = tpu.matmul %107, %90, %cst_37 {dimension_numbers = #tpu.dot_dimension_numbers<[2], [1], [1], [2], [0, 0, 0, 1, 1, 2], [0], [0]>} : vector<2x8x8xf32>, vector<2x8x8xf32>, vector<2x8x8xf32> -> vector<2x8x8xf32>
    "tpu.trace_stop"() : () -> ()
    %109 = vector.extract_strided_slice %41 {offsets = [0, 0, 24], sizes = [2, 8, 8], strides = [1, 1, 1]} : vector<2x8x96xf32> to vector<2x8x8xf32>
    %110 = vector.extract_strided_slice %41 {offsets = [0, 0, 56], sizes = [2, 8, 8], strides = [1, 1, 1]} : vector<2x8x96xf32> to vector<2x8x8xf32>
    %111 = vector.extract_strided_slice %41 {offsets = [0, 0, 88], sizes = [2, 8, 8], strides = [1, 1, 1]} : vector<2x8x96xf32> to vector<2x8x8xf32>
    "tpu.trace_start"() <{level = 10 : i32, message = "bqd,bkd->bqk"}> : () -> ()
    %cst_38 = arith.constant dense<0.000000e+00> : vector<2x8x8xf32>
    %112 = tpu.matmul %109, %110, %cst_38 {dimension_numbers = #tpu.dot_dimension_numbers<[2], [2], [1], [1], [0, 0, 0, 1, 1, 1], [0], [0]>} : vector<2x8x8xf32>, vector<2x8x8xf32>, vector<2x8x8xf32> -> vector<2x8x8xf32>
    "tpu.trace_stop"() : () -> ()
    %cst_39 = arith.constant 0.353553385 : f32
    %113 = vector.broadcast %cst_39 : f32 to vector<2x8x8xf32>
    %114 = arith.mulf %112, %113 : vector<2x8x8xf32>
    %cst_40 = arith.constant -1.000000e+30 : f32
    %115 = vector.shape_cast %45 : vector<1x8x8xi1> to vector<1x8x8xi1>
    %116 = vector.broadcast %115 : vector<1x8x8xi1> to vector<2x8x8xi1>
    %117 = vector.broadcast %cst_40 : f32 to vector<2x8x8xf32>
    %118 = arith.select %116, %114, %117 : vector<2x8x8xi1>, vector<2x8x8xf32>
    %cst_41 = arith.constant dense<0xFF800000> : vector<2x8xf32>
    %119 = vector.multi_reduction <maximumf>, %118, %cst_41 [2] : vector<2x8x8xf32> to vector<2x8xf32>
    %120 = vector.shape_cast %119 : vector<2x8xf32> to vector<2x8x1xf32>
    %121 = vector.broadcast %120 : vector<2x8x1xf32> to vector<2x8x8xf32>
    %122 = arith.subf %118, %121 : vector<2x8x8xf32>
    %123 = math.exp %122 : vector<2x8x8xf32>
    %cst_42 = arith.constant dense<0.000000e+00> : vector<2x8xf32>
    %124 = vector.multi_reduction <add>, %123, %cst_42 [2] : vector<2x8x8xf32> to vector<2x8xf32>
    %125 = vector.shape_cast %124 : vector<2x8xf32> to vector<2x8x1xf32>
    %126 = tpu.reciprocal %125 {approx = true} : vector<2x8x1xf32> -> vector<2x8x1xf32>
    %127 = vector.broadcast %126 : vector<2x8x1xf32> to vector<2x8x8xf32>
    %128 = arith.mulf %123, %127 : vector<2x8x8xf32>
    "tpu.trace_start"() <{level = 10 : i32, message = "bqk,bkd->bqd"}> : () -> ()
    %cst_43 = arith.constant dense<0.000000e+00> : vector<2x8x8xf32>
    %129 = tpu.matmul %128, %111, %cst_43 {dimension_numbers = #tpu.dot_dimension_numbers<[2], [1], [1], [2], [0, 0, 0, 1, 1, 2], [0], [0]>} : vector<2x8x8xf32>, vector<2x8x8xf32>, vector<2x8x8xf32> -> vector<2x8x8xf32>
    "tpu.trace_stop"() : () -> ()
    %130 = tpu.concatenate %66, %87, %108, %129 in 2 : vector<2x8x8xf32>, vector<2x8x8xf32>, vector<2x8x8xf32>, vector<2x8x8xf32> -> vector<2x8x32xf32>
    %131 = vector.shape_cast %130 : vector<2x8x32xf32> to vector<16x32xf32>
    %132 = arith.truncf %131 : vector<16x32xf32> to vector<16x32xbf16>
    %c0_44 = arith.constant 0 : index
    %c0_45 = arith.constant 0 : index
    %c0_46 = arith.constant 0 : index
    %133 = vector.load %arg6[%c0_44, %c0_45, %c0_46] : memref<1x32x32xbf16, #tpu.memory_space<vmem>>, vector<1x32x32xbf16>
    %134 = vector.shape_cast %133 : vector<1x32x32xbf16> to vector<32x32xbf16>
    %cst_47 = arith.constant dense<0.000000e+00> : vector<16x32xf32>
    %135 = tpu.matmul %132, %134, %cst_47 {dimension_numbers = #tpu.dot_dimension_numbers<[1], [0], [0], [1], [0, 0, 1, 1], [], []>} : vector<16x32xbf16>, vector<32x32xbf16>, vector<16x32xf32> -> vector<16x32xf32>
    %c0_48 = arith.constant 0 : index
    %c0_49 = arith.constant 0 : index
    %c0_50 = arith.constant 0 : index
    %136 = vector.load %arg7[%c0_48, %c0_49, %c0_50] : memref<1x1x32xf32, #tpu.memory_space<vmem>>, vector<1x1x32xf32>
    %137 = vector.shape_cast %136 : vector<1x1x32xf32> to vector<1x32xf32>
    %138 = vector.broadcast %137 : vector<1x32xf32> to vector<16x32xf32>
    %139 = arith.addf %135, %138 : vector<16x32xf32>
    %140 = vector.shape_cast %139 : vector<16x32xf32> to vector<2x8x32xf32>
    %141 = arith.addf %3, %140 : vector<2x8x32xf32>
    %c0_51 = arith.constant 0 : index
    %c0_52 = arith.constant 0 : index
    %c0_53 = arith.constant 0 : index
    %142 = vector.load %arg8[%c0_51, %c0_52, %c0_53] : memref<1x1x32xf32, #tpu.memory_space<vmem>>, vector<1x1x32xf32>
    %143 = vector.shape_cast %142 : vector<1x1x32xf32> to vector<1x32xf32>
    %c0_54 = arith.constant 0 : index
    %c0_55 = arith.constant 0 : index
    %c0_56 = arith.constant 0 : index
    %144 = vector.load %arg9[%c0_54, %c0_55, %c0_56] : memref<1x1x32xf32, #tpu.memory_space<vmem>>, vector<1x1x32xf32>
    %145 = vector.shape_cast %144 : vector<1x1x32xf32> to vector<1x32xf32>
    %cst_57 = arith.constant dense<0.000000e+00> : vector<2x8xf32>
    %146 = vector.multi_reduction <add>, %141, %cst_57 [2] : vector<2x8x32xf32> to vector<2x8xf32>
    %147 = vector.shape_cast %146 : vector<2x8xf32> to vector<2x8x1xf32>
    %cst_58 = arith.constant 3.200000e+01 : f32
    %148 = vector.broadcast %cst_58 : f32 to vector<2x8x1xf32>
    %149 = arith.divf %147, %148 : vector<2x8x1xf32>
    %150 = vector.broadcast %149 : vector<2x8x1xf32> to vector<2x8x32xf32>
    %151 = arith.subf %141, %150 : vector<2x8x32xf32>
    %152 = arith.mulf %151, %151 : vector<2x8x32xf32>
    %cst_59 = arith.constant dense<0.000000e+00> : vector<2x8xf32>
    %153 = vector.multi_reduction <add>, %152, %cst_59 [2] : vector<2x8x32xf32> to vector<2x8xf32>
    %154 = vector.shape_cast %153 : vector<2x8xf32> to vector<2x8x1xf32>
    %cst_60 = arith.constant 3.200000e+01 : f32
    %155 = vector.broadcast %cst_60 : f32 to vector<2x8x1xf32>
    %156 = arith.divf %154, %155 : vector<2x8x1xf32>
    %157 = vector.broadcast %149 : vector<2x8x1xf32> to vector<2x8x32xf32>
    %158 = arith.subf %141, %157 : vector<2x8x32xf32>
    %cst_61 = arith.constant 9.99999974E-6 : f32
    %159 = vector.broadcast %cst_61 : f32 to vector<2x8x1xf32>
    %160 = arith.addf %156, %159 : vector<2x8x1xf32>
    %161 = math.rsqrt %160 : vector<2x8x1xf32>
    %162 = vector.broadcast %161 : vector<2x8x1xf32> to vector<2x8x32xf32>
    %163 = arith.mulf %158, %162 : vector<2x8x32xf32>
    %164 = vector.shape_cast %143 : vector<1x32xf32> to vector<1x1x32xf32>
    %165 = vector.broadcast %164 : vector<1x1x32xf32> to vector<2x8x32xf32>
    %166 = arith.mulf %163, %165 : vector<2x8x32xf32>
    %167 = vector.shape_cast %145 : vector<1x32xf32> to vector<1x1x32xf32>
    %168 = vector.broadcast %167 : vector<1x1x32xf32> to vector<2x8x32xf32>
    %169 = arith.addf %166, %168 : vector<2x8x32xf32>
    %170 = vector.shape_cast %169 : vector<2x8x32xf32> to vector<16x32xf32>
    %171 = arith.truncf %170 : vector<16x32xf32> to vector<16x32xbf16>
    %c0_62 = arith.constant 0 : index
    %c0_63 = arith.constant 0 : index
    %c0_64 = arith.constant 0 : index
    %172 = vector.load %arg10[%c0_62, %c0_63, %c0_64] : memref<1x32x128xbf16, #tpu.memory_space<vmem>>, vector<1x32x128xbf16>
    %173 = vector.shape_cast %172 : vector<1x32x128xbf16> to vector<32x128xbf16>
    %cst_65 = arith.constant dense<0.000000e+00> : vector<16x128xf32>
    %174 = tpu.matmul %171, %173, %cst_65 {dimension_numbers = #tpu.dot_dimension_numbers<[1], [0], [0], [1], [0, 0, 1, 1], [], []>} : vector<16x32xbf16>, vector<32x128xbf16>, vector<16x128xf32> -> vector<16x128xf32>
    %c0_66 = arith.constant 0 : index
    %c0_67 = arith.constant 0 : index
    %c0_68 = arith.constant 0 : index
    %175 = vector.load %arg11[%c0_66, %c0_67, %c0_68] : memref<1x1x128xf32, #tpu.memory_space<vmem>>, vector<1x1x128xf32>
    %176 = vector.shape_cast %175 : vector<1x1x128xf32> to vector<1x128xf32>
    %177 = vector.broadcast %176 : vector<1x128xf32> to vector<16x128xf32>
    %178 = arith.addf %174, %177 : vector<16x128xf32>
    %cst_69 = arith.constant 5.000000e-01 : f32
    %179 = vector.broadcast %cst_69 : f32 to vector<16x128xf32>
    %180 = arith.mulf %179, %178 : vector<16x128xf32>
    %cst_70 = arith.constant 0.707106769 : f32
    %181 = vector.broadcast %cst_70 : f32 to vector<16x128xf32>
    %182 = arith.mulf %178, %181 : vector<16x128xf32>
    %183 = math.erf %182 : vector<16x128xf32>
    %cst_71 = arith.constant 1.000000e+00 : f32
    %184 = vector.broadcast %cst_71 : f32 to vector<16x128xf32>
    %185 = arith.addf %184, %183 : vector<16x128xf32>
    %186 = arith.mulf %180, %185 : vector<16x128xf32>
    %187 = arith.truncf %186 : vector<16x128xf32> to vector<16x128xbf16>
    %c0_72 = arith.constant 0 : index
    %c0_73 = arith.constant 0 : index
    %c0_74 = arith.constant 0 : index
    %188 = vector.load %arg12[%c0_72, %c0_73, %c0_74] : memref<1x128x32xbf16, #tpu.memory_space<vmem>>, vector<1x128x32xbf16>
    %189 = vector.shape_cast %188 : vector<1x128x32xbf16> to vector<128x32xbf16>
    %cst_75 = arith.constant dense<0.000000e+00> : vector<16x32xf32>
    %190 = tpu.matmul %187, %189, %cst_75 {dimension_numbers = #tpu.dot_dimension_numbers<[1], [0], [0], [1], [0, 0, 1, 1], [], []>} : vector<16x128xbf16>, vector<128x32xbf16>, vector<16x32xf32> -> vector<16x32xf32>
    %c0_76 = arith.constant 0 : index
    %c0_77 = arith.constant 0 : index
    %c0_78 = arith.constant 0 : index
    %191 = vector.load %arg13[%c0_76, %c0_77, %c0_78] : memref<1x1x32xf32, #tpu.memory_space<vmem>>, vector<1x1x32xf32>
    %192 = vector.shape_cast %191 : vector<1x1x32xf32> to vector<1x32xf32>
    %193 = vector.broadcast %192 : vector<1x32xf32> to vector<16x32xf32>
    %194 = arith.addf %190, %193 : vector<16x32xf32>
    %195 = vector.shape_cast %194 : vector<16x32xf32> to vector<2x8x32xf32>
    %196 = arith.addf %141, %195 : vector<2x8x32xf32>
    %c0_79 = arith.constant 0 : index
    %c0_80 = arith.constant 0 : index
    %c0_81 = arith.constant 0 : index
    %197 = vector.load %arg18[%c0_79, %c0_80, %c0_81] : memref<2x8x32xf32, #tpu.memory_space<vmem>>, vector<2x8x32xf32>
    tpu.vector_store %arg18[%c0_79, %c0_80, %c0_81], %196 {strides = array<i32>} : memref<2x8x32xf32, #tpu.memory_space<vmem>>, vector<2x8x32xf32>,
    %c1_i32 = arith.constant 1 : i32
    %198 = arith.cmpi eq, %arg0, %c1_i32 : i32
    %199 = arith.extui %198 : i1 to i32
    %c0_i32_82 = arith.constant 0 : i32
    %200 = arith.cmpi ne, %199, %c0_i32_82 : i32
    scf.if %200 {
      %201 = vector.extract_strided_slice %196 {offsets = [0, 7, 0], sizes = [2, 1, 32], strides = [1, 1, 1]} : vector<2x8x32xf32> to vector<2x1x32xf32>
      %c0_83 = arith.constant 0 : index
      %c0_84 = arith.constant 0 : index
      %202 = vector.load %arg14[%c0_83, %c0_84] : memref<1x32xf32, #tpu.memory_space<vmem>>, vector<1x32xf32>
      %c0_85 = arith.constant 0 : index
      %c0_86 = arith.constant 0 : index
      %203 = vector.load %arg15[%c0_85, %c0_86] : memref<1x32xf32, #tpu.memory_space<vmem>>, vector<1x32xf32>
      %cst_87 = arith.constant dense<0.000000e+00> : vector<2x1xf32>
      %204 = vector.multi_reduction <add>, %201, %cst_87 [2] : vector<2x1x32xf32> to vector<2x1xf32>
      %205 = vector.shape_cast %204 : vector<2x1xf32> to vector<2x1x1xf32>
      %cst_88 = arith.constant 3.200000e+01 : f32
      %206 = vector.broadcast %cst_88 : f32 to vector<2x1x1xf32>
      %207 = arith.divf %205, %206 : vector<2x1x1xf32>
      %208 = vector.broadcast %207 : vector<2x1x1xf32> to vector<2x1x32xf32>
      %209 = arith.subf %201, %208 : vector<2x1x32xf32>
      %210 = arith.mulf %209, %209 : vector<2x1x32xf32>
      %cst_89 = arith.constant dense<0.000000e+00> : vector<2x1xf32>
      %211 = vector.multi_reduction <add>, %210, %cst_89 [2] : vector<2x1x32xf32> to vector<2x1xf32>
      %212 = vector.shape_cast %211 : vector<2x1xf32> to vector<2x1x1xf32>
      %cst_90 = arith.constant 3.200000e+01 : f32
      %213 = vector.broadcast %cst_90 : f32 to vector<2x1x1xf32>
      %214 = arith.divf %212, %213 : vector<2x1x1xf32>
      %215 = vector.broadcast %207 : vector<2x1x1xf32> to vector<2x1x32xf32>
      %216 = arith.subf %201, %215 : vector<2x1x32xf32>
      %cst_91 = arith.constant 9.99999974E-6 : f32
      %217 = vector.broadcast %cst_91 : f32 to vector<2x1x1xf32>
      %218 = arith.addf %214, %217 : vector<2x1x1xf32>
      %219 = math.rsqrt %218 : vector<2x1x1xf32>
      %220 = vector.broadcast %219 : vector<2x1x1xf32> to vector<2x1x32xf32>
      %221 = arith.mulf %216, %220 : vector<2x1x32xf32>
      %222 = vector.shape_cast %202 : vector<1x32xf32> to vector<1x1x32xf32>
      %223 = vector.broadcast %222 : vector<1x1x32xf32> to vector<2x1x32xf32>
      %224 = arith.mulf %221, %223 : vector<2x1x32xf32>
      %225 = vector.shape_cast %203 : vector<1x32xf32> to vector<1x1x32xf32>
      %226 = vector.broadcast %225 : vector<1x1x32xf32> to vector<2x1x32xf32>
      %227 = arith.addf %224, %226 : vector<2x1x32xf32>
      %228 = vector.shape_cast %227 : vector<2x1x32xf32> to vector<2x32xf32>
      %229 = arith.truncf %228 : vector<2x32xf32> to vector<2x32xbf16>
      %c0_92 = arith.constant 0 : index
      %c0_93 = arith.constant 0 : index
      %230 = vector.load %arg16[%c0_92, %c0_93] : memref<32x128xbf16, #tpu.memory_space<vmem>>, vector<32x128xbf16>
      %cst_94 = arith.constant dense<0.000000e+00> : vector<2x128xf32>
      %231 = tpu.matmul %229, %230, %cst_94 {dimension_numbers = #tpu.dot_dimension_numbers<[1], [0], [0], [1], [0, 0, 1, 1], [], []>} : vector<2x32xbf16>, vector<32x128xbf16>, vector<2x128xf32> -> vector<2x128xf32>
      %232 = vector.shape_cast %231 : vector<2x128xf32> to vector<2x1x128xf32>
      %c0_95 = arith.constant 0 : index
      %c0_96 = arith.constant 0 : index
      %c0_97 = arith.constant 0 : index
      %233 = vector.load %arg17[%c0_95, %c0_96, %c0_97] : memref<2x1x128xf32, #tpu.memory_space<vmem>>, vector<2x1x128xf32>
      tpu.vector_store %arg17[%c0_95, %c0_96, %c0_97], %232 {strides = array<i32>} : memref<2x1x128xf32, #tpu.memory_space<vmem>>, vector<2x1x128xf32>,
    } else {
    }
    return
  }
  func.func @transform_0(%arg0: i32) -> (i32, i32, i32) {
    %c0_i32 = arith.constant 0 : i32
    %c0_i32_0 = arith.constant 0 : i32
    %c0_i32_1 = arith.constant 0 : i32
    %c0_i32_2 = arith.constant 0 : i32
    return %c0_i32, %c0_i32_0, %c0_i32_1 : i32, i32, i32
  }
  func.func @transform_1(%arg0: i32) -> (i32, i32, i32) {
    %c0_i32 = arith.constant 0 : i32
    %c0_i32_0 = arith.constant 0 : i32
    %c0_i32_1 = arith.constant 0 : i32
    return %arg0, %c0_i32, %c0_i32_0 : i32, i32, i32
  }
  func.func @transform_2(%arg0: i32) -> (i32, i32, i32) {
    %c0_i32 = arith.constant 0 : i32
    %c0_i32_0 = arith.constant 0 : i32
    %c0_i32_1 = arith.constant 0 : i32
    return %arg0, %c0_i32, %c0_i32_0 : i32, i32, i32
  }
  func.func @transform_3(%arg0: i32) -> (i32, i32, i32) {
    %c0_i32 = arith.constant 0 : i32
    %c0_i32_0 = arith.constant 0 : i32
    %c0_i32_1 = arith.constant 0 : i32
    return %arg0, %c0_i32, %c0_i32_0 : i32, i32, i32
  }
  func.func @transform_4(%arg0: i32) -> (i32, i32, i32) {
    %c0_i32 = arith.constant 0 : i32
    %c0_i32_0 = arith.constant 0 : i32
    %c0_i32_1 = arith.constant 0 : i32
    return %arg0, %c0_i32, %c0_i32_0 : i32, i32, i32
  }
  func.func @transform_5(%arg0: i32) -> (i32, i32, i32) {
    %c0_i32 = arith.constant 0 : i32
    %c0_i32_0 = arith.constant 0 : i32
    %c0_i32_1 = arith.constant 0 : i32
    return %arg0, %c0_i32, %c0_i32_0 : i32, i32, i32
  }
  func.func @transform_6(%arg0: i32) -> (i32, i32, i32) {
    %c0_i32 = arith.constant 0 : i32
    %c0_i32_0 = arith.constant 0 : i32
    %c0_i32_1 = arith.constant 0 : i32
    return %arg0, %c0_i32, %c0_i32_0 : i32, i32, i32
  }
  func.func @transform_7(%arg0: i32) -> (i32, i32, i32) {
    %c0_i32 = arith.constant 0 : i32
    %c0_i32_0 = arith.constant 0 : i32
    %c0_i32_1 = arith.constant 0 : i32
    return %arg0, %c0_i32, %c0_i32_0 : i32, i32, i32
  }
  func.func @transform_8(%arg0: i32) -> (i32, i32, i32) {
    %c0_i32 = arith.constant 0 : i32
    %c0_i32_0 = arith.constant 0 : i32
    %c0_i32_1 = arith.constant 0 : i32
    return %arg0, %c0_i32, %c0_i32_0 : i32, i32, i32
  }
  func.func @transform_9(%arg0: i32) -> (i32, i32, i32) {
    %c0_i32 = arith.constant 0 : i32
    %c0_i32_0 = arith.constant 0 : i32
    %c0_i32_1 = arith.constant 0 : i32
    return %arg0, %c0_i32, %c0_i32_0 : i32, i32, i32
  }
  func.func @transform_10(%arg0: i32) -> (i32, i32, i32) {
    %c0_i32 = arith.constant 0 : i32
    %c0_i32_0 = arith.constant 0 : i32
    %c0_i32_1 = arith.constant 0 : i32
    return %arg0, %c0_i32, %c0_i32_0 : i32, i32, i32
  }
  func.func @transform_11(%arg0: i32) -> (i32, i32, i32) {
    %c0_i32 = arith.constant 0 : i32
    %c0_i32_0 = arith.constant 0 : i32
    %c0_i32_1 = arith.constant 0 : i32
    return %arg0, %c0_i32, %c0_i32_0 : i32, i32, i32
  }
  func.func @transform_12(%arg0: i32) -> (i32, i32, i32) {
    %c0_i32 = arith.constant 0 : i32
    %c0_i32_0 = arith.constant 0 : i32
    %c0_i32_1 = arith.constant 0 : i32
    return %arg0, %c0_i32, %c0_i32_0 : i32, i32, i32
  }
  func.func @transform_13(%arg0: i32) -> (i32, i32) {
    %c0_i32 = arith.constant 0 : i32
    %c0_i32_0 = arith.constant 0 : i32
    %c0_i32_1 = arith.constant 0 : i32
    return %c0_i32, %c0_i32_0 : i32, i32
  }
  func.func @transform_14(%arg0: i32) -> (i32, i32) {
    %c0_i32 = arith.constant 0 : i32
    %c0_i32_0 = arith.constant 0 : i32
    %c0_i32_1 = arith.constant 0 : i32
    return %c0_i32, %c0_i32_0 : i32, i32
  }
  func.func @transform_15(%arg0: i32) -> (i32, i32) {
    %c0_i32 = arith.constant 0 : i32
    %c0_i32_0 = arith.constant 0 : i32
    %c0_i32_1 = arith.constant 0 : i32
    return %c0_i32, %c0_i32_0 : i32, i32
  }
  func.func @transform_16(%arg0: i32) -> (i32, i32, i32) {
    %c0_i32 = arith.constant 0 : i32
    %c0_i32_0 = arith.constant 0 : i32
    %c0_i32_1 = arith.constant 0 : i32
    %c0_i32_2 = arith.constant 0 : i32
    return %c0_i32, %c0_i32_0, %c0_i32_1 : i32, i32, i32
  }
}

</mosaic_0001>

<llo_original>
// kernel: ethos_forward.1
$region0: #{ethos_forward.1}
  #allocation0 [shape = 'u32[]', space=smem, size = 0x4, offset = 0x4, fixed_abs, tag = 'smem constant byte address 0x4 - core index']
  #allocation1 [shape = 'u32[144,128]{1,0:T(1,128)}', space=vmem, size = 0x12000, scoped, tag = 'internal scratch']
  #allocation2 [shape = 'f32[2,8,32]{2,1,0:T(8,128)}', space=vmem, size = 0x2000, scoped, tag = 'scratch operand']
  %s0 = inlined_call_operand.vmem [shape: f32[2,8,32], index: 0, kind: input, shape index: {}]
  %s1 = inlined_call_operand.vmem [shape: f32[2,1,32], index: 1, kind: input, shape index: {}]
  %s2 = inlined_call_operand.vmem [shape: f32[2,1,32], index: 2, kind: input, shape index: {}]
  %s3 = inlined_call_operand.vmem [shape: bf16[2,32,96], index: 3, kind: input, shape index: {}]
  %s4 = inlined_call_operand.vmem [shape: f32[2,1,96], index: 4, kind: input, shape index: {}]
  %s5 = inlined_call_operand.vmem [shape: bf16[2,32,32], index: 5, kind: input, shape index: {}]
  %s6 = inlined_call_operand.vmem [shape: f32[2,1,32], index: 6, kind: input, shape index: {}]
  %s7 = inlined_call_operand.vmem [shape: f32[2,1,32], index: 7, kind: input, shape index: {}]
  %s8 = inlined_call_operand.vmem [shape: f32[2,1,32], index: 8, kind: input, shape index: {}]
  %s9 = inlined_call_operand.vmem [shape: bf16[2,32,128], index: 9, kind: input, shape index: {}]
  %s10 = inlined_call_operand.vmem [shape: f32[2,1,128], index: 10, kind: input, shape index: {}]
  %s11 = inlined_call_operand.vmem [shape: bf16[2,128,32], index: 11, kind: input, shape index: {}]
  %s12 = inlined_call_operand.vmem [shape: f32[2,1,32], index: 12, kind: input, shape index: {}]
  %s13 = inlined_call_operand.vmem [shape: f32[1,32], index: 13, kind: input, shape index: {}]
  %s14 = inlined_call_operand.vmem [shape: f32[1,32], index: 14, kind: input, shape index: {}]
  %s15 = inlined_call_operand.vmem [shape: bf16[32,128], index: 15, kind: input, shape index: {}]
  %s16 = inlined_call_operand.hbm [shape: f32[2,1,128], index: 16, kind: output, shape index: {}]
  %s17 = sld [smem:[#allocation0]]
  $region105: #{ethos_forward.1} parent=0
    _
  %s19 = ssub.s32 1, %s17
  %s20 = scalar_select 0, %s19, %s17
  $region1: #{ethos_forward.1} parent=0
    #allocation3 [shape = 'u8[1024]{0}', space=vmem, size = 0x400, scoped, tag = 'output window, operand 0, single buffered']
    #allocation4 [shape = 's32[2]{0}', space=sflag, size = 0x8, scoped, tag = 'scoped memory for ethos_forward.1']
    %21 = vsyncpa [#allocation4], 0
    loop: start=0, step=1, limit=4
    $region2: #{ethos_forward.1} parent=1 // loop_pre_header
      _
    $region3: #{ethos_forward.1} parent=1 // loop_header
      %s23 = sphi 0, %s27
      %p24 = scmp.ge.s32.totalorder %s23, 4
      %s31 = sphi 0, %s31
      %s33 = sphi 0, %s31
      %s34 = sphi 0, %s33
      %s48 = sphi 0, %s34
      %s54 = sphi 0, %s56
      %s57 = sphi 0, %s54
      %s58 = sphi 0, %s57
      %s74 = sphi 0, %s58
      %s80 = sphi 0, %s82
      %s83 = sphi 0, %s80
      %s84 = sphi 0, %s83
      %s100 = sphi 0, %s84
      %s106 = sphi 0, %s108
      %s109 = sphi 0, %s106
      %s110 = sphi 0, %s109
      %s126 = sphi 0, %s110
      %s132 = sphi 0, %s134
      %s135 = sphi 0, %s132
      %s136 = sphi 0, %s135
      %s152 = sphi 0, %s136
      %s158 = sphi 0, %s160
      %s161 = sphi 0, %s158
      %s162 = sphi 0, %s161
      %s178 = sphi 0, %s162
      %s184 = sphi 0, %s186
      %s187 = sphi 0, %s184
      %s188 = sphi 0, %s187
      %s204 = sphi 0, %s188
      %s210 = sphi 0, %s212
      %s213 = sphi 0, %s210
      %s214 = sphi 0, %s213
      %s230 = sphi 0, %s214
      %s236 = sphi 0, %s238
      %s239 = sphi 0, %s236
      %s240 = sphi 0, %s239
      %s256 = sphi 0, %s240
      %s262 = sphi 0, %s264
      %s265 = sphi 0, %s262
      %s266 = sphi 0, %s265
      %s282 = sphi 0, %s266
      %s288 = sphi 0, %s290
      %s291 = sphi 0, %s288
      %s292 = sphi 0, %s291
      %s308 = sphi 0, %s292
      %s314 = sphi 0, %s316
      %s317 = sphi 0, %s314
      %s318 = sphi 0, %s317
      %s334 = sphi 0, %s318
      %s340 = sphi 0, %s342
      %s343 = sphi 0, %s340
      %s344 = sphi 0, %s343
      %s360 = sphi 0, %s344
      %s364 = sphi 0, %s364
      %s366 = sphi 0, %s364
      %s367 = sphi 0, %s366
      %s381 = sphi 0, %s367
      %s385 = sphi 0, %s385
      %s387 = sphi 0, %s385
      %s388 = sphi 0, %s387
      %s402 = sphi 0, %s388
      %s406 = sphi 0, %s406
      %s408 = sphi 0, %s406
      %s409 = sphi 0, %s408
      %s423 = sphi 0, %s409
      %s427 = sphi 0, %s427
      %s429 = sphi 0, %s427
      %s430 = sphi 0, %s429
      %s444 = sphi 0, %s430
    $region4: #{ethos_forward.1} parent=1 // loop_header_branch
      %26 = sbr.rel (%p24) target = $region8
    $region5: #{ethos_forward.1} parent=1 // loop_body
      %s28 = ssub.s32 %s23, 1
      %s29 = ssub.s32 %s23, 2
      %s30 = sadd.s32 %s23, 1
      %s32 = sadd.s32 %s31, 1
      %p35 = scmp.eq.s32.totalorder %s23, 1
      %p36 = scmp.ne.s32.totalorder %s31, %s33
      %p37 = scmp.eq.s32.totalorder %s23, 0
      %p38 = por %p36, %p37
      %p39 = scmp.ne.s32.totalorder %s31, %s33
      %p40 = scmp.eq.s32.totalorder %s28, 1
      %p41 = por %p39, %p40
      %p42 = scmp.ne.s32.totalorder %s33, %s34
      %p43 = scmp.eq.s32.totalorder %s28, 0
      %p44 = por %p42, %p43
      %p45 = scmp.ne.s32.totalorder %s33, %s34
      %p46 = scmp.eq.s32.totalorder %s29, 1
      %p47 = por %p45, %p46
      %p49 = scmp.ne.s32.totalorder %s34, %s48
      %p50 = scmp.eq.s32.totalorder %s29, 0
      %p51 = por %p49, %p50
      %s52 = ssub.s32 %s23, %s30
      %p53 = scmp.eq.s32.totalorder %s52, 0
      %s55 = sadd.s32 %s54, 1
      %s56 = scalar_select %p53, %s54, %s55
      %p59 = pneg %p53
      %p60 = scmp.eq.s32.totalorder %s23, 1
      %p61 = por %p59, %p60
      %p62 = scmp.ne.s32.totalorder %s54, %s57
      %p63 = scmp.eq.s32.totalorder %s23, 0
      %p64 = por %p62, %p63
      %p65 = scmp.ne.s32.totalorder %s54, %s57
      %p66 = scmp.eq.s32.totalorder %s28, 1
      %p67 = por %p65, %p66
      %p68 = scmp.ne.s32.totalorder %s57, %s58
      %p69 = scmp.eq.s32.totalorder %s28, 0
      %p70 = por %p68, %p69
      %p71 = scmp.ne.s32.totalorder %s57, %s58
      %p72 = scmp.eq.s32.totalorder %s29, 1
      %p73 = por %p71, %p72
      %p75 = scmp.ne.s32.totalorder %s58, %s74
      %p76 = scmp.eq.s32.totalorder %s29, 0
      %p77 = por %p75, %p76
      %s78 = ssub.s32 %s23, %s30
      %p79 = scmp.eq.s32.totalorder %s78, 0
      %s81 = sadd.s32 %s80, 1
      %s82 = scalar_select %p79, %s80, %s81
      %p85 = pneg %p79
      %p86 = scmp.eq.s32.totalorder %s23, 1
      %p87 = por %p85, %p86
      %p88 = scmp.ne.s32.totalorder %s80, %s83
      %p89 = scmp.eq.s32.totalorder %s23, 0
      %p90 = por %p88, %p89
      %p91 = scmp.ne.s32.totalorder %s80, %s83
      %p92 = scmp.eq.s32.totalorder %s28, 1
      %p93 = por %p91, %p92
      %p94 = scmp.ne.s32.totalorder %s83, %s84
      %p95 = scmp.eq.s32.totalorder %s28, 0
      %p96 = por %p94, %p95
      %p97 = scmp.ne.s32.totalorder %s83, %s84
      %p98 = scmp.eq.s32.totalorder %s29, 1
      %p99 = por %p97, %p98
      %p101 = scmp.ne.s32.totalorder %s84, %s100
      %p102 = scmp.eq.s32.totalorder %s29, 0
      %p103 = por %p101, %p102
      %s104 = ssub.s32 %s23, %s30
      %p105 = scmp.eq.s32.totalorder %s104, 0
      %s107 = sadd.s32 %s106, 1
      %s108 = scalar_select %p105, %s106, %s107
      %p111 = pneg %p105
      %p112 = scmp.eq.s32.totalorder %s23, 1
      %p113 = por %p111, %p112
      %p114 = scmp.ne.s32.totalorder %s106, %s109
      %p115 = scmp.eq.s32.totalorder %s23, 0
      %p116 = por %p114, %p115
      %p117 = scmp.ne.s32.totalorder %s106, %s109
      %p118 = scmp.eq.s32.totalorder %s28, 1
      %p119 = por %p117, %p118
      %p120 = scmp.ne.s32.totalorder %s109, %s110
      %p121 = scmp.eq.s32.totalorder %s28, 0
      %p122 = por %p120, %p121
      %p123 = scmp.ne.s32.totalorder %s109, %s110
      %p124 = scmp.eq.s32.totalorder %s29, 1
      %p125 = por %p123, %p124
      %p127 = scmp.ne.s32.totalorder %s110, %s126
      %p128 = scmp.eq.s32.totalorder %s29, 0
      %p129 = por %p127, %p128
      %s130 = ssub.s32 %s23, %s30
      %p131 = scmp.eq.s32.totalorder %s130, 0
      %s133 = sadd.s32 %s132, 1
      %s134 = scalar_select %p131, %s132, %s133
      %p137 = pneg %p131
      %p138 = scmp.eq.s32.totalorder %s23, 1
      %p139 = por %p137, %p138
      %p140 = scmp.ne.s32.totalorder %s132, %s135
      %p141 = scmp.eq.s32.totalorder %s23, 0
      %p142 = por %p140, %p141
      %p143 = scmp.ne.s32.totalorder %s132, %s135
      %p144 = scmp.eq.s32.totalorder %s28, 1
      %p145 = por %p143, %p144
      %p146 = scmp.ne.s32.totalorder %s135, %s136
      %p147 = scmp.eq.s32.totalorder %s28, 0
      %p148 = por %p146, %p147
      %p149 = scmp.ne.s32.totalorder %s135, %s136
      %p150 = scmp.eq.s32.totalorder %s29, 1
      %p151 = por %p149, %p150
      %p153 = scmp.ne.s32.totalorder %s136, %s152
      %p154 = scmp.eq.s32.totalorder %s29, 0
      %p155 = por %p153, %p154
      %s156 = ssub.s32 %s23, %s30
      %p157 = scmp.eq.s32.totalorder %s156, 0
      %s159 = sadd.s32 %s158, 1
      %s160 = scalar_select %p157, %s158, %s159
      %p163 = pneg %p157
      %p164 = scmp.eq.s32.totalorder %s23, 1
      %p165 = por %p163, %p164
      %p166 = scmp.ne.s32.totalorder %s158, %s161
      %p167 = scmp.eq.s32.totalorder %s23, 0
      %p168 = por %p166, %p167
      %p169 = scmp.ne.s32.totalorder %s158, %s161
      %p170 = scmp.eq.s32.totalorder %s28, 1
      %p171 = por %p169, %p170
      %p172 = scmp.ne.s32.totalorder %s161, %s162
      %p173 = scmp.eq.s32.totalorder %s28, 0
      %p174 = por %p172, %p173
      %p175 = scmp.ne.s32.totalorder %s161, %s162
      %p176 = scmp.eq.s32.totalorder %s29, 1
      %p177 = por %p175, %p176
      %p179 = scmp.ne.s32.totalorder %s162, %s178
      %p180 = scmp.eq.s32.totalorder %s29, 0
      %p181 = por %p179, %p180
      %s182 = ssub.s32 %s23, %s30
      %p183 = scmp.eq.s32.totalorder %s182, 0
      %s185 = sadd.s32 %s184, 1
      %s186 = scalar_select %p183, %s184, %s185
      %p189 = pneg %p183
      %p190 = scmp.eq.s32.totalorder %s23, 1
      %p191 = por %p189, %p190
      %p192 = scmp.ne.s32.totalorder %s184, %s187
      %p193 = scmp.eq.s32.totalorder %s23, 0
      %p194 = por %p192, %p193
      %p195 = scmp.ne.s32.totalorder %s184, %s187
      %p196 = scmp.eq.s32.totalorder %s28, 1
      %p197 = por %p195, %p196
      %p198 = scmp.ne.s32.totalorder %s187, %s188
      %p199 = scmp.eq.s32.totalorder %s28, 0
      %p200 = por %p198, %p199
      %p201 = scmp.ne.s32.totalorder %s187, %s188
      %p202 = scmp.eq.s32.totalorder %s29, 1
      %p203 = por %p201, %p202
      %p205 = scmp.ne.s32.totalorder %s188, %s204
      %p206 = scmp.eq.s32.totalorder %s29, 0
      %p207 = por %p205, %p206
      %s208 = ssub.s32 %s23, %s30
      %p209 = scmp.eq.s32.totalorder %s208, 0
      %s211 = sadd.s32 %s210, 1
      %s212 = scalar_select %p209, %s210, %s211
      %p215 = pneg %p209
      %p216 = scmp.eq.s32.totalorder %s23, 1
      %p217 = por %p215, %p216
      %p218 = scmp.ne.s32.totalorder %s210, %s213
      %p219 = scmp.eq.s32.totalorder %s23, 0
      %p220 = por %p218, %p219
      %p221 = scmp.ne.s32.totalorder %s210, %s213
      %p222 = scmp.eq.s32.totalorder %s28, 1
      %p223 = por %p221, %p222
      %p224 = scmp.ne.s32.totalorder %s213, %s214
      %p225 = scmp.eq.s32.totalorder %s28, 0
      %p226 = por %p224, %p225
      %p227 = scmp.ne.s32.totalorder %s213, %s214
      %p228 = scmp.eq.s32.totalorder %s29, 1
      %p229 = por %p227, %p228
      %p231 = scmp.ne.s32.totalorder %s214, %s230
      %p232 = scmp.eq.s32.totalorder %s29, 0
      %p233 = por %p231, %p232
      %s234 = ssub.s32 %s23, %s30
      %p235 = scmp.eq.s32.totalorder %s234, 0
      %s237 = sadd.s32 %s236, 1
      %s238 = scalar_select %p235, %s236, %s237
      %p241 = pneg %p235
      %p242 = scmp.eq.s32.totalorder %s23, 1
      %p243 = por %p241, %p242
      %p244 = scmp.ne.s32.totalorder %s236, %s239
      %p245 = scmp.eq.s32.totalorder %s23, 0
      %p246 = por %p244, %p245
      %p247 = scmp.ne.s32.totalorder %s236, %s239
      %p248 = scmp.eq.s32.totalorder %s28, 1
      %p249 = por %p247, %p248
      %p250 = scmp.ne.s32.totalorder %s239, %s240
      %p251 = scmp.eq.s32.totalorder %s28, 0
      %p252 = por %p250, %p251
      %p253 = scmp.ne.s32.totalorder %s239, %s240
      %p254 = scmp.eq.s32.totalorder %s29, 1
      %p255 = por %p253, %p254
      %p257 = scmp.ne.s32.totalorder %s240, %s256
      %p258 = scmp.eq.s32.totalorder %s29, 0
      %p259 = por %p257, %p258
      %s260 = ssub.s32 %s23, %s30
      %p261 = scmp.eq.s32.totalorder %s260, 0
      %s263 = sadd.s32 %s262, 1
      %s264 = scalar_select %p261, %s262, %s263
      %p267 = pneg %p261
      %p268 = scmp.eq.s32.totalorder %s23, 1
      %p269 = por %p267, %p268
      %p270 = scmp.ne.s32.totalorder %s262, %s265
      %p271 = scmp.eq.s32.totalorder %s23, 0
      %p272 = por %p270, %p271
      %p273 = scmp.ne.s32.totalorder %s262, %s265
      %p274 = scmp.eq.s32.totalorder %s28, 1
      %p275 = por %p273, %p274
      %p276 = scmp.ne.s32.totalorder %s265, %s266
      %p277 = scmp.eq.s32.totalorder %s28, 0
      %p278 = por %p276, %p277
      %p279 = scmp.ne.s32.totalorder %s265, %s266
      %p280 = scmp.eq.s32.totalorder %s29, 1
      %p281 = por %p279, %p280
      %p283 = scmp.ne.s32.totalorder %s266, %s282
      %p284 = scmp.eq.s32.totalorder %s29, 0
      %p285 = por %p283, %p284
      %s286 = ssub.s32 %s23, %s30
      %p287 = scmp.eq.s32.totalorder %s286, 0
      %s289 = sadd.s32 %s288, 1
      %s290 = scalar_select %p287, %s288, %s289
      %p293 = pneg %p287
      %p294 = scmp.eq.s32.totalorder %s23, 1
      %p295 = por %p293, %p294
      %p296 = scmp.ne.s32.totalorder %s288, %s291
      %p297 = scmp.eq.s32.totalorder %s23, 0
      %p298 = por %p296, %p297
      %p299 = scmp.ne.s32.totalorder %s288, %s291
      %p300 = scmp.eq.s32.totalorder %s28, 1
      %p301 = por %p299, %p300
      %p302 = scmp.ne.s32.totalorder %s291, %s292
      %p303 = scmp.eq.s32.totalorder %s28, 0
      %p304 = por %p302, %p303
      %p305 = scmp.ne.s32.totalorder %s291, %s292
      %p306 = scmp.eq.s32.totalorder %s29, 1
      %p307 = por %p305, %p306
      %p309 = scmp.ne.s32.totalorder %s292, %s308
      %p310 = scmp.eq.s32.totalorder %s29, 0
      %p311 = por %p309, %p310
      %s312 = ssub.s32 %s23, %s30
      %p313 = scmp.eq.s32.totalorder %s312, 0
      %s315 = sadd.s32 %s314, 1
      %s316 = scalar_select %p313, %s314, %s315
      %p319 = pneg %p313
      %p320 = scmp.eq.s32.totalorder %s23, 1
      %p321 = por %p319, %p320
      %p322 = scmp.ne.s32.totalorder %s314, %s317
      %p323 = scmp.eq.s32.totalorder %s23, 0
      %p324 = por %p322, %p323
      %p325 = scmp.ne.s32.totalorder %s314, %s317
      %p326 = scmp.eq.s32.totalorder %s28, 1
      %p327 = por %p325, %p326
      %p328 = scmp.ne.s32.totalorder %s317, %s318
      %p329 = scmp.eq.s32.totalorder %s28, 0
      %p330 = por %p328, %p329
      %p331 = scmp.ne.s32.totalorder %s317, %s318
      %p332 = scmp.eq.s32.totalorder %s29, 1
      %p333 = por %p331, %p332
      %p335 = scmp.ne.s32.totalorder %s318, %s334
      %p336 = scmp.eq.s32.totalorder %s29, 0
      %p337 = por %p335, %p336
      %s338 = ssub.s32 %s23, %s30
      %p339 = scmp.eq.s32.totalorder %s338, 0
      %s341 = sadd.s32 %s340, 1
      %s342 = scalar_select %p339, %s340, %s341
      %p345 = pneg %p339
      %p346 = scmp.eq.s32.totalorder %s23, 1
      %p347 = por %p345, %p346
      %p348 = scmp.ne.s32.totalorder %s340, %s343
      %p349 = scmp.eq.s32.totalorder %s23, 0
      %p350 = por %p348, %p349
      %p351 = scmp.ne.s32.totalorder %s340, %s343
      %p352 = scmp.eq.s32.totalorder %s28, 1
      %p353 = por %p351, %p352
      %p354 = scmp.ne.s32.totalorder %s343, %s344
      %p355 = scmp.eq.s32.totalorder %s28, 0
      %p356 = por %p354, %p355
      %p357 = scmp.ne.s32.totalorder %s343, %s344
      %p358 = scmp.eq.s32.totalorder %s29, 1
      %p359 = por %p357, %p358
      %p361 = scmp.ne.s32.totalorder %s344, %s360
      %p362 = scmp.eq.s32.totalorder %s29, 0
      %p363 = por %p361, %p362
      %s365 = sadd.s32 %s364, 1
      %p368 = scmp.eq.s32.totalorder %s23, 1
      %p369 = scmp.ne.s32.totalorder %s364, %s366
      %p370 = scmp.eq.s32.totalorder %s23, 0
      %p371 = por %p369, %p370
      %p372 = scmp.ne.s32.totalorder %s364, %s366
      %p373 = scmp.eq.s32.totalorder %s28, 1
      %p374 = por %p372, %p373
      %p375 = scmp.ne.s32.totalorder %s366, %s367
      %p376 = scmp.eq.s32.totalorder %s28, 0
      %p377 = por %p375, %p376
      %p378 = scmp.ne.s32.totalorder %s366, %s367
      %p379 = scmp.eq.s32.totalorder %s29, 1
      %p380 = por %p378, %p379
      %p382 = scmp.ne.s32.totalorder %s367, %s381
      %p383 = scmp.eq.s32.totalorder %s29, 0
      %p384 = por %p382, %p383
      %s386 = sadd.s32 %s385, 1
      %p389 = scmp.eq.s32.totalorder %s23, 1
      %p390 = scmp.ne.s32.totalorder %s385, %s387
      %p391 = scmp.eq.s32.totalorder %s23, 0
      %p392 = por %p390, %p391
      %p393 = scmp.ne.s32.totalorder %s385, %s387
      %p394 = scmp.eq.s32.totalorder %s28, 1
      %p395 = por %p393, %p394
      %p396 = scmp.ne.s32.totalorder %s387, %s388
      %p397 = scmp.eq.s32.totalorder %s28, 0
      %p398 = por %p396, %p397
      %p399 = scmp.ne.s32.totalorder %s387, %s388
      %p400 = scmp.eq.s32.totalorder %s29, 1
      %p401 = por %p399, %p400
      %p403 = scmp.ne.s32.totalorder %s388, %s402
      %p404 = scmp.eq.s32.totalorder %s29, 0
      %p405 = por %p403, %p404
      %s407 = sadd.s32 %s406, 1
      %p410 = scmp.eq.s32.totalorder %s23, 1
      %p411 = scmp.ne.s32.totalorder %s406, %s408
      %p412 = scmp.eq.s32.totalorder %s23, 0
      %p413 = por %p411, %p412
      %p414 = scmp.ne.s32.totalorder %s406, %s408
      %p415 = scmp.eq.s32.totalorder %s28, 1
      %p416 = por %p414, %p415
      %p417 = scmp.ne.s32.totalorder %s408, %s409
      %p418 = scmp.eq.s32.totalorder %s28, 0
      %p419 = por %p417, %p418
      %p420 = scmp.ne.s32.totalorder %s408, %s409
      %p421 = scmp.eq.s32.totalorder %s29, 1
      %p422 = por %p420, %p421
      %p424 = scmp.ne.s32.totalorder %s409, %s423
      %p425 = scmp.eq.s32.totalorder %s29, 0
      %p426 = por %p424, %p425
      %s428 = sadd.s32 %s427, 1
      %p431 = scmp.eq.s32.totalorder %s23, 1
      %p432 = scmp.ne.s32.totalorder %s427, %s429
      %p433 = scmp.eq.s32.totalorder %s23, 0
      %p434 = por %p432, %p433
      %p435 = scmp.ne.s32.totalorder %s427, %s429
      %p436 = scmp.eq.s32.totalorder %s28, 1
      %p437 = por %p435, %p436
      %p438 = scmp.ne.s32.totalorder %s429, %s430
      %p439 = scmp.eq.s32.totalorder %s28, 0
      %p440 = por %p438, %p439
      %p441 = scmp.ne.s32.totalorder %s429, %s430
      %p442 = scmp.eq.s32.totalorder %s29, 1
      %p443 = por %p441, %p442
      %p445 = scmp.ne.s32.totalorder %s430, %s444
      %p446 = scmp.eq.s32.totalorder %s29, 0
      %p447 = por %p445, %p446
      %p448 = scmp.le.s32.totalorder 1, %s23
      %p449 = scmp.lt.s32.totalorder %s23, 3
      %p450 = pnand %p448, %p449
      %p451 = pneg %p450
      // Predicated region
      $region9: #{ethos_forward.1} parent=5 // pred_check
        _
      $region10: #{ethos_forward.1} parent=5 // pred_check_branch
        %453 = sbr.rel (%p450) target = $region12
      $region11: #{ethos_forward.1} parent=5 // pred_region
        %s454 = ssub.s32 %s23, 1
        // Predicated region
        $region13: #{ethos_forward.1} parent=11 // pred_check
          %p455 = pneg %p44
        $region14: #{ethos_forward.1} parent=11 // pred_check_branch
          %457 = sbr.rel (%p455) target = $region16
        $region15: #{ethos_forward.1} parent=11 // pred_region
          _
        $region16: #{ethos_forward.1} parent=11 // pred_fallthru
          _
        // Predicated region
        $region17: #{ethos_forward.1} parent=11 // pred_check
          %p458 = pneg %p377
        $region18: #{ethos_forward.1} parent=11 // pred_check_branch
          %460 = sbr.rel (%p458) target = $region20
        $region19: #{ethos_forward.1} parent=11 // pred_region
          _
        $region20: #{ethos_forward.1} parent=11 // pred_fallthru
          _
        // Predicated region
        $region21: #{ethos_forward.1} parent=11 // pred_check
          %p461 = pneg %p398
        $region22: #{ethos_forward.1} parent=11 // pred_check_branch
          %463 = sbr.rel (%p461) target = $region24
        $region23: #{ethos_forward.1} parent=11 // pred_region
          _
        $region24: #{ethos_forward.1} parent=11 // pred_fallthru
          _
        // Predicated region
        $region25: #{ethos_forward.1} parent=11 // pred_check
          %p464 = pneg %p419
        $region26: #{ethos_forward.1} parent=11 // pred_check_branch
          %466 = sbr.rel (%p464) target = $region28
        $region27: #{ethos_forward.1} parent=11 // pred_region
          _
        $region28: #{ethos_forward.1} parent=11 // pred_fallthru
          _
      $region12: #{ethos_forward.1} parent=5 // pred_fallthru
        _
      %p467 = scmp.lt.s32.totalorder %s23, 2
      // Predicated region
      $region29: #{ethos_forward.1} parent=5 // pred_check
        %p468 = pneg %p467
      $region30: #{ethos_forward.1} parent=5 // pred_check_branch
        %470 = sbr.rel (%p468) target = $region32
      $region31: #{ethos_forward.1} parent=5 // pred_region
        // Predicated region
        $region33: #{ethos_forward.1} parent=31 // pred_check
          %p471 = pneg %p64
        $region34: #{ethos_forward.1} parent=31 // pred_check_branch
          %473 = sbr.rel (%p471) target = $region36
        $region35: #{ethos_forward.1} parent=31 // pred_region
          %p474 = scmp.lt.s32.totalorder %s23, 1
          %s475 = scalar_select %p474, %s23, 1
          %s476 = scalar_lea.vmem %s1, %s475
        $region36: #{ethos_forward.1} parent=31 // pred_fallthru
          _
        // Predicated region
        $region37: #{ethos_forward.1} parent=31 // pred_check
          %p477 = pneg %p90
        $region38: #{ethos_forward.1} parent=31 // pred_check_branch
          %479 = sbr.rel (%p477) target = $region40
        $region39: #{ethos_forward.1} parent=31 // pred_region
          %p480 = scmp.lt.s32.totalorder %s23, 1
          %s481 = scalar_select %p480, %s23, 1
          %s482 = scalar_lea.vmem %s2, %s481
        $region40: #{ethos_forward.1} parent=31 // pred_fallthru
          _
        // Predicated region
        $region41: #{ethos_forward.1} parent=31 // pred_check
          %p483 = pneg %p116
        $region42: #{ethos_forward.1} parent=31 // pred_check_branch
          %485 = sbr.rel (%p483) target = $region44
        $region43: #{ethos_forward.1} parent=31 // pred_region
          %p486 = scmp.lt.s32.totalorder %s23, 1
          %s487 = scalar_select %p486, %s23, 1
          %s488 = smul.addr %s487, 4
          %s489 = smul.addr %s488, 4
          %s490 = scalar_lea.vmem %s3, %s489
        $region44: #{ethos_forward.1} parent=31 // pred_fallthru
          _
        // Predicated region
        $region45: #{ethos_forward.1} parent=31 // pred_check
          %p491 = pneg %p142
        $region46: #{ethos_forward.1} parent=31 // pred_check_branch
          %493 = sbr.rel (%p491) target = $region48
        $region47: #{ethos_forward.1} parent=31 // pred_region
          %p494 = scmp.lt.s32.totalorder %s23, 1
          %s495 = scalar_select %p494, %s23, 1
          %s496 = scalar_lea.vmem %s4, %s495
        $region48: #{ethos_forward.1} parent=31 // pred_fallthru
          _
        // Predicated region
        $region49: #{ethos_forward.1} parent=31 // pred_check
          %p497 = pneg %p168
        $region50: #{ethos_forward.1} parent=31 // pred_check_branch
          %499 = sbr.rel (%p497) target = $region52
        $region51: #{ethos_forward.1} parent=31 // pred_region
          %p500 = scmp.lt.s32.totalorder %s23, 1
          %s501 = scalar_select %p500, %s23, 1
          %s502 = smul.addr %s501, 4
          %s503 = smul.addr %s502, 4
          %s504 = scalar_lea.vmem %s5, %s503
        $region52: #{ethos_forward.1} parent=31 // pred_fallthru
          _
        // Predicated region
        $region53: #{ethos_forward.1} parent=31 // pred_check
          %p505 = pneg %p194
        $region54: #{ethos_forward.1} parent=31 // pred_check_branch
          %507 = sbr.rel (%p505) target = $region56
        $region55: #{ethos_forward.1} parent=31 // pred_region
          %p508 = scmp.lt.s32.totalorder %s23, 1
          %s509 = scalar_select %p508, %s23, 1
          %s510 = scalar_lea.vmem %s6, %s509
        $region56: #{ethos_forward.1} parent=31 // pred_fallthru
          _
        // Predicated region
        $region57: #{ethos_forward.1} parent=31 // pred_check
          %p511 = pneg %p220
        $region58: #{ethos_forward.1} parent=31 // pred_check_branch
          %513 = sbr.rel (%p511) target = $region60
        $region59: #{ethos_forward.1} parent=31 // pred_region
          %p514 = scmp.lt.s32.totalorder %s23, 1
          %s515 = scalar_select %p514, %s23, 1
          %s516 = scalar_lea.vmem %s7, %s515
        $region60: #{ethos_forward.1} parent=31 // pred_fallthru
          _
        // Predicated region
        $region61: #{ethos_forward.1} parent=31 // pred_check
          %p517 = pneg %p246
        $region62: #{ethos_forward.1} parent=31 // pred_check_branch
          %519 = sbr.rel (%p517) target = $region64
        $region63: #{ethos_forward.1} parent=31 // pred_region
          %p520 = scmp.lt.s32.totalorder %s23, 1
          %s521 = scalar_select %p520, %s23, 1
          %s522 = scalar_lea.vmem %s8, %s521
        $region64: #{ethos_forward.1} parent=31 // pred_fallthru
          _
        // Predicated region
        $region65: #{ethos_forward.1} parent=31 // pred_check
          %p523 = pneg %p272
        $region66: #{ethos_forward.1} parent=31 // pred_check_branch
          %525 = sbr.rel (%p523) target = $region68
        $region67: #{ethos_forward.1} parent=31 // pred_region
          %p526 = scmp.lt.s32.totalorder %s23, 1
          %s527 = scalar_select %p526, %s23, 1
          %s528 = smul.addr %s527, 4
          %s529 = smul.addr %s528, 4
          %s530 = scalar_lea.vmem %s9, %s529
        $region68: #{ethos_forward.1} parent=31 // pred_fallthru
          _
        // Predicated region
        $region69: #{ethos_forward.1} parent=31 // pred_check
          %p531 = pneg %p298
        $region70: #{ethos_forward.1} parent=31 // pred_check_branch
          %533 = sbr.rel (%p531) target = $region72
        $region71: #{ethos_forward.1} parent=31 // pred_region
          %p534 = scmp.lt.s32.totalorder %s23, 1
          %s535 = scalar_select %p534, %s23, 1
          %s536 = scalar_lea.vmem %s10, %s535
        $region72: #{ethos_forward.1} parent=31 // pred_fallthru
          _
        // Predicated region
        $region73: #{ethos_forward.1} parent=31 // pred_check
          %p537 = pneg %p324
        $region74: #{ethos_forward.1} parent=31 // pred_check_branch
          %539 = sbr.rel (%p537) target = $region76
        $region75: #{ethos_forward.1} parent=31 // pred_region
          %p540 = scmp.lt.s32.totalorder %s23, 1
          %s541 = scalar_select %p540, %s23, 1
          %s542 = smul.addr %s541, 16
          %s543 = smul.addr %s542, 4
          %s544 = scalar_lea.vmem %s11, %s543
        $region76: #{ethos_forward.1} parent=31 // pred_fallthru
          _
        // Predicated region
        $region77: #{ethos_forward.1} parent=31 // pred_check
          %p545 = pneg %p350
        $region78: #{ethos_forward.1} parent=31 // pred_check_branch
          %547 = sbr.rel (%p545) target = $region80
        $region79: #{ethos_forward.1} parent=31 // pred_region
          %p548 = scmp.lt.s32.totalorder %s23, 1
          %s549 = scalar_select %p548, %s23, 1
          %s550 = scalar_lea.vmem %s12, %s549
        $region80: #{ethos_forward.1} parent=31 // pred_fallthru
          _
      $region32: #{ethos_forward.1} parent=5 // pred_fallthru
        _
      %p551 = scmp.le.s32.totalorder 1, %s23
      %p552 = scmp.lt.s32.totalorder %s23, 3
      %p553 = pnand %p551, %p552
      %p554 = pneg %p553
      // Predicated region
      $region81: #{ethos_forward.1} parent=5 // pred_check
        _
      $region82: #{ethos_forward.1} parent=5 // pred_check_branch
        %556 = sbr.rel (%p553) target = $region84
      $region83: #{ethos_forward.1} parent=5 // pred_region
        %s557 = ssub.s32 %s23, 1
        %p558 = pneg %p44
        %p559 = pneg %p41
        %p560 = scmp.lt.s32.totalorder %s28, 1
        %s561 = scalar_select %p560, %s28, 1
        %s562 = scalar_lea.vmem %s1, %s561
        %p563 = pneg %p70
        %p564 = pneg %p67
        %p565 = scmp.lt.s32.totalorder %s28, 1
        %s566 = scalar_select %p565, %s28, 1
        %s567 = scalar_lea.vmem %s2, %s566
        %p568 = pneg %p96
        %p569 = pneg %p93
        %p570 = scmp.lt.s32.totalorder %s28, 1
        %s571 = scalar_select %p570, %s28, 1
        %s572 = smul.addr %s571, 4
        %s573 = smul.addr %s572, 4
        %s574 = scalar_lea.vmem %s3, %s573
        %p575 = pneg %p122
        %p576 = pneg %p119
        %p577 = scmp.lt.s32.totalorder %s28, 1
        %s578 = scalar_select %p577, %s28, 1
        %s579 = scalar_lea.vmem %s4, %s578
        %p580 = pneg %p148
        %p581 = pneg %p145
        %p582 = scmp.lt.s32.totalorder %s28, 1
        %s583 = scalar_select %p582, %s28, 1
        %s584 = smul.addr %s583, 4
        %s585 = smul.addr %s584, 4
        %s586 = scalar_lea.vmem %s5, %s585
        %p587 = pneg %p174
        %p588 = pneg %p171
        %p589 = scmp.lt.s32.totalorder %s28, 1
        %s590 = scalar_select %p589, %s28, 1
        %s591 = scalar_lea.vmem %s6, %s590
        %p592 = pneg %p200
        %p593 = pneg %p197
        %p594 = scmp.lt.s32.totalorder %s28, 1
        %s595 = scalar_select %p594, %s28, 1
        %s596 = scalar_lea.vmem %s7, %s595
        %p597 = pneg %p226
        %p598 = pneg %p223
        %p599 = scmp.lt.s32.totalorder %s28, 1
        %s600 = scalar_select %p599, %s28, 1
        %s601 = scalar_lea.vmem %s8, %s600
        %p602 = pneg %p252
        %p603 = pneg %p249
        %p604 = scmp.lt.s32.totalorder %s28, 1
        %s605 = scalar_select %p604, %s28, 1
        %s606 = smul.addr %s605, 4
        %s607 = smul.addr %s606, 4
        %s608 = scalar_lea.vmem %s9, %s607
        %p609 = pneg %p278
        %p610 = pneg %p275
        %p611 = scmp.lt.s32.totalorder %s28, 1
        %s612 = scalar_select %p611, %s28, 1
        %s613 = scalar_lea.vmem %s10, %s612
        %p614 = pneg %p304
        %p615 = pneg %p301
        %p616 = scmp.lt.s32.totalorder %s28, 1
        %s617 = scalar_select %p616, %s28, 1
        %s618 = smul.addr %s617, 16
        %s619 = smul.addr %s618, 4
        %s620 = scalar_lea.vmem %s11, %s619
        %p621 = pneg %p330
        %p622 = pneg %p327
        %p623 = scmp.lt.s32.totalorder %s28, 1
        %s624 = scalar_select %p623, %s28, 1
        %s625 = scalar_lea.vmem %s12, %s624
        %p626 = pneg %p356
        %p627 = pneg %p353
        %p628 = pneg %p377
        %p629 = pneg %p374
        %p630 = pneg %p398
        %p631 = pneg %p395
        %p632 = pneg %p419
        %p633 = pneg %p416
        %p634 = pneg %p440
        %p635 = pneg %p437
        %p636 = scmp.lt.s32.totalorder %s28, 1
        %s637 = scalar_select %p636, %s28, 1
        %s638 = scalar_lea.vmem %s1, %s637
        %p639 = scmp.lt.s32.totalorder %s28, 1
        %s640 = scalar_select %p639, %s28, 1
        %s641 = scalar_lea.vmem %s2, %s640
        %p642 = scmp.lt.s32.totalorder %s28, 1
        %s643 = scalar_select %p642, %s28, 1
        %s644 = smul.addr %s643, 4
        %s645 = smul.addr %s644, 4
        %s646 = scalar_lea.vmem %s3, %s645
        %p647 = scmp.lt.s32.totalorder %s28, 1
        %s648 = scalar_select %p647, %s28, 1
        %s649 = scalar_lea.vmem %s4, %s648
        %p650 = scmp.lt.s32.totalorder %s28, 1
        %s651 = scalar_select %p650, %s28, 1
        %s652 = smul.addr %s651, 4
        %s653 = smul.addr %s652, 4
        %s654 = scalar_lea.vmem %s5, %s653
        %p655 = scmp.lt.s32.totalorder %s28, 1
        %s656 = scalar_select %p655, %s28, 1
        %s657 = scalar_lea.vmem %s6, %s656
        %p658 = scmp.lt.s32.totalorder %s28, 1
        %s659 = scalar_select %p658, %s28, 1
        %s660 = scalar_lea.vmem %s7, %s659
        %p661 = scmp.lt.s32.totalorder %s28, 1
        %s662 = scalar_select %p661, %s28, 1
        %s663 = scalar_lea.vmem %s8, %s662
        %p664 = scmp.lt.s32.totalorder %s28, 1
        %s665 = scalar_select %p664, %s28, 1
        %s666 = smul.addr %s665, 4
        %s667 = smul.addr %s666, 4
        %s668 = scalar_lea.vmem %s9, %s667
        %p669 = scmp.lt.s32.totalorder %s28, 1
        %s670 = scalar_select %p669, %s28, 1
        %s671 = scalar_lea.vmem %s10, %s670
        %p672 = scmp.lt.s32.totalorder %s28, 1
        %s673 = scalar_select %p672, %s28, 1
        %s674 = smul.addr %s673, 16
        %s675 = smul.addr %s674, 4
        %s676 = scalar_lea.vmem %s11, %s675
        %p677 = scmp.lt.s32.totalorder %s28, 1
        %s678 = scalar_select %p677, %s28, 1
        %s679 = scalar_lea.vmem %s12, %s678
        %p681 = scmp.eq.s32.totalorder %s28, 0
        // Predicated region
        $region85: #{ethos_forward.1} parent=83 // pred_check
          %p682 = pneg %p681
        $region86: #{ethos_forward.1} parent=83 // pred_check_branch
          %684 = sbr.rel (%p682) target = $region88
        $region87: #{ethos_forward.1} parent=83 // pred_region
          %v685 = vld [vmem:[%s0] sm:$0xff]
          %v686 = vld [vmem:[%s0 + $0x8] sm:$0xff]
          %vm687 = vcmask 261120
          %688 = vst.msk [vmem:[#allocation2] sm:$0xff] %vm687, %v685
          %689 = vst.msk [vmem:[#allocation2 + $0x8] sm:$0xff] %vm687, %v686
        $region88: #{ethos_forward.1} parent=83 // pred_fallthru
          _
        %v690 = vld [vmem:[#allocation2] sm:$0xff]
        %v691 = vld [vmem:[#allocation2 + $0x8] sm:$0xff]
        %v692 = vld [vmem:[%s638] sm:$0x1]
        %v693 = vld [vmem:[%s641] sm:$0x1]
        %vm694 = vcmask 261120
        %v695 = vsel %vm694, %v690, 0.0
        %696 = vadd.xlane.f32.xlu0 %v695
        %v697 = vpop.xlane.xlu0 %696
        %v698 = vsel %vm694, %v691, 0.0
        %699 = vadd.xlane.f32.xlu0 %v698
        %v700 = vpop.xlane.xlu0 %699
        %v701 = vrcp.pop 32.0
        %v702 = vmul.f32 %v697, %v701
        %v703 = vmul.f32 %v700, %v701
        %v704 = vsub.f32 %v690, %v702
        %v705 = vsub.f32 %v691, %v703
        %v706 = vmul.f32 %v704, %v704
        %v707 = vmul.f32 %v705, %v705
        %v708 = vsel %vm694, %v706, 0.0
        %709 = vadd.xlane.f32.xlu0 %v708
        %v710 = vpop.xlane.xlu0 %709
        %v711 = vsel %vm694, %v707, 0.0
        %712 = vadd.xlane.f32.xlu0 %v711
        %v713 = vpop.xlane.xlu0 %712
        %v714 = vmul.f32 %v710, %v701
        %v715 = vmul.f32 %v713, %v701
        %v716 = vadd.f32 %v714, 1e-05
        %v717 = vadd.f32 %v715, 1e-05
        %v718 = vrsqrt.pop %v716
        %v719 = vrsqrt.pop %v717
        %v720 = vmul.f32 %v704, %v718
        %v721 = vmul.f32 %v705, %v719
        %v723 = vlaneseq
        %v724 = vshrl.u32 %v723, 7
        %v725 = vsub.s32 0, %v724
        %v726 = vrot.slane %v692, %v725
        %v728 = vmul.f32 %v720, %v726
        %v729 = vmul.f32 %v721, %v726
        %v731 = vlaneseq
        %v732 = vshrl.u32 %v731, 7
        %v733 = vsub.s32 0, %v732
        %v734 = vrot.slane %v693, %v733
        %v736 = vadd.f32 %v728, %v734
        %v737 = vadd.f32 %v729, %v734
        %v738 = vpack.c.bf16 %v737, %v736
        %v739 = vld [vmem:[%s646] sm:$0xf]
        %v740 = vld [vmem:[%s646 + $0x4] sm:$0xf]
        %v741 = vld [vmem:[%s646 + $0x8] sm:$0xf]
        %v742 = vld [vmem:[%s646 + $0xc] sm:$0xf]
        %v743 = vld [vmem:[%s649] sm:$0x1]
        %v745 = vlaneseq
        %v746 = vshrl.u32 %v745, 7
        %v747 = vsub.s32 0, %v746
        %v748 = vrot.slane %v743, %v747
        %v754 = vunpack.c.l.b16 %v739
        %v755 = vunpack.c.l.b16 %v740
        %v756 = vunpack.c.l.b16 %v741
        %v757 = vunpack.c.l.b16 %v742
        %v758 = vpack.c.b16 %v755, %v754
        %v759 = vpack.c.b16 %v757, %v756
        %v763 = vsel %vm694, %v738, 0
        %765 = vmatprep.subr.bf16.mxu0 0
        %766 = vmatpush1.bf16.msra.mxu0 0
        %767 = vmatprep.subr.bf16.mxu0 0
        %768 = vmatpush1.bf16.msra.mxu0 0
        %769 = vmatprep.subr.bf16.mxu0 0
        %770 = vmatpush1.bf16.msra.mxu0 0
        %771 = vmatprep.subr.bf16.mxu0 0
        %772 = vmatpush1.bf16.msra.mxu0 0
        %773 = vmatprep.subr.bf16.mxu0 0
        %774 = vmatpush1.bf16.msra.mxu0 0
        %775 = vmatprep.subr.bf16.mxu0 0
        %776 = vmatpush1.bf16.msra.mxu0 0
        %777 = vmatprep.subr.bf16.mxu0 0
        %778 = vmatpush1.bf16.msra.mxu0 %v759
        %779 = vmatprep.subr.bf16.mxu0 0
        %780 = vmatpush1.bf16.msra.mxu0 %v758
        %781 = vmatprep.subr.bf16.mxu0 0
        %782 = vmatpush2.bf16.msra.mxu0 0
        %783 = vmatprep.subr.bf16.mxu0 0
        %784 = vmatpush2.bf16.msra.mxu0 0
        %785 = vmatprep.subr.bf16.mxu0 0
        %786 = vmatpush2.bf16.msra.mxu0 0
        %787 = vmatprep.subr.bf16.mxu0 0
        %788 = vmatpush2.bf16.msra.mxu0 0
        %789 = vmatprep.subr.bf16.mxu0 0
        %790 = vmatpush2.bf16.msra.mxu0 0
        %791 = vmatprep.subr.bf16.mxu0 0
        %792 = vmatpush2.bf16.msra.mxu0 0
        %793 = vmatprep.subr.bf16.mxu0 0
        %794 = vmatpush2.bf16.msra.mxu0 0
        %795 = vmatprep.subr.bf16.mxu0 0
        %796 = vmatpush2.bf16.msra.mxu0 0
        %797 = vmatprep.mubr.bf16.mxu0 0
        %798 = vmatmul.mubr.bf16.gmra.mxu0 %v763
        %v799 = vpop.f32.mrf.mxu0
        %v800 = vadd.f32 %v748, %v799
        %v801 = vpop.f32.mrf.mxu0
        %v802 = vpop.f32.mrf.mxu0
        %v803 = vadd.f32 %v748, %v802
        %v804 = vpop.f32.mrf.mxu0
        %805 = vdwg.mxu0
        %v806 = vlaneseq
        %v807 = vshrl.u32 %v806, 7
        %v808 = vlaneseq
        %v809 = vand.u32 %v808, 127
        %vm810 = vcmp.le.s32.totalorder %v809, %v807
        %812 = vrot.lane.b32.xlu0 %v800, 96
        %v813 = vpop.permute.xlu0 %812
        %vm814 = vcmask 64512
        %v815 = vsel %vm814, %v800, 0
        %v817 = vsel %vm814, %v813, 0
        %819 = vmatprep.subr.mxu0 0.0
        %820 = vmatpush1.xpose.msra.mxu0 0.0
        %821 = vmatprep.subr.mxu0 0.0
        %822 = vmatpush1.xpose.msra.mxu0 0.0
        %823 = vmatprep.subr.mxu0 0.0
        %824 = vmatpush1.xpose.msra.mxu0 0.0
        %825 = vmatprep.subr.mxu0 0.0
        %826 = vmatpush1.xpose.msra.mxu0 0.0
        %827 = vmatprep.subr.mxu0 0.0
        %828 = vmatpush1.xpose.msra.mxu0 0.0
        %829 = vmatprep.subr.mxu0 0.0
        %830 = vmatpush1.xpose.msra.mxu0 0.0
        %831 = vmatprep.subr.mxu0 0.0
        %832 = vmatpush1.xpose.msra.mxu0 0.0
        %833 = vmatprep.subr.mxu0 0.0
        %834 = vmatpush1.xpose.msra.mxu0 0.0
        %835 = vmatprep.subr.mxu0 0.0
        %836 = vmatpush1.xpose.msra.mxu0 0.0
        %837 = vmatprep.subr.mxu0 0.0
        %838 = vmatpush1.xpose.msra.mxu0 0.0
        %839 = vmatprep.subr.mxu0 0.0
        %840 = vmatpush1.xpose.msra.mxu0 0.0
        %841 = vmatprep.subr.mxu0 0.0
        %842 = vmatpush1.xpose.msra.mxu0 0.0
        %843 = vmatprep.subr.mxu0 0.0
        %844 = vmatpush1.xpose.msra.mxu0 0.0
        %845 = vmatprep.subr.mxu0 0.0
        %846 = vmatpush1.xpose.msra.mxu0 0.0
        %847 = vmatprep.subr.mxu0 0.0
        %848 = vmatpush1.xpose.msra.mxu0 0.0
        %849 = vmatprep.subr.mxu0 0.0
        %850 = vmatpush1.xpose.msra.mxu0 %v817
        %851 = vmatprep.subr.mxu0 0.0
        %852 = vmatpush2.xpose.msra.mxu0 0.0
        %853 = vmatprep.subr.mxu0 0.0
        %854 = vmatpush2.xpose.msra.mxu0 0.0
        %855 = vmatprep.subr.mxu0 0.0
        %856 = vmatpush2.xpose.msra.mxu0 0.0
        %857 = vmatprep.subr.mxu0 0.0
        %858 = vmatpush2.xpose.msra.mxu0 0.0
        %859 = vmatprep.subr.mxu0 0.0
        %860 = vmatpush2.xpose.msra.mxu0 0.0
        %861 = vmatprep.subr.mxu0 0.0
        %862 = vmatpush2.xpose.msra.mxu0 0.0
        %863 = vmatprep.subr.mxu0 0.0
        %864 = vmatpush2.xpose.msra.mxu0 0.0
        %865 = vmatprep.subr.mxu0 0.0
        %866 = vmatpush2.xpose.msra.mxu0 0.0
        %867 = vmatprep.subr.mxu0 0.0
        %868 = vmatpush2.xpose.msra.mxu0 0.0
        %869 = vmatprep.subr.mxu0 0.0
        %870 = vmatpush2.xpose.msra.mxu0 0.0
        %871 = vmatprep.subr.mxu0 0.0
        %872 = vmatpush2.xpose.msra.mxu0 0.0
        %873 = vmatprep.subr.mxu0 0.0
        %874 = vmatpush2.xpose.msra.mxu0 0.0
        %875 = vmatprep.subr.mxu0 0.0
        %876 = vmatpush2.xpose.msra.mxu0 0.0
        %877 = vmatprep.subr.mxu0 0.0
        %878 = vmatpush2.xpose.msra.mxu0 0.0
        %879 = vmatprep.subr.mxu0 0.0
        %880 = vmatpush2.xpose.msra.mxu0 0.0
        %881 = vmatprep.subr.mxu0 0.0
        %882 = vmatpush2.xpose.msra.mxu0 0.0
        %883 = vmatprep.mubr.f32.mxu0 0.0
        %884 = vmatmul.mubr.f32.gmra.mxu0 %v815
        %v885 = vpop.f32.mrf.mxu0
        %v886 = vadd.f32 0.0, %v885
        %v887 = vpop.f32.mrf.mxu0
        %888 = vdwg.mxu0
        %890 = vrot.lane.b32.xlu0 %v803, 96
        %v891 = vpop.permute.xlu0 %890
        %v892 = vsel %vm814, %v803, 0
        %v894 = vsel %vm814, %v891, 0
        %896 = vmatprep.subr.mxu0 0.0
        %897 = vmatpush1.xpose.msra.mxu0 0.0
        %898 = vmatprep.subr.mxu0 0.0
        %899 = vmatpush1.xpose.msra.mxu0 0.0
        %900 = vmatprep.subr.mxu0 0.0
        %901 = vmatpush1.xpose.msra.mxu0 0.0
        %902 = vmatprep.subr.mxu0 0.0
        %903 = vmatpush1.xpose.msra.mxu0 0.0
        %904 = vmatprep.subr.mxu0 0.0
        %905 = vmatpush1.xpose.msra.mxu0 0.0
        %906 = vmatprep.subr.mxu0 0.0
        %907 = vmatpush1.xpose.msra.mxu0 0.0
        %908 = vmatprep.subr.mxu0 0.0
        %909 = vmatpush1.xpose.msra.mxu0 0.0
        %910 = vmatprep.subr.mxu0 0.0
        %911 = vmatpush1.xpose.msra.mxu0 0.0
        %912 = vmatprep.subr.mxu0 0.0
        %913 = vmatpush1.xpose.msra.mxu0 0.0
        %914 = vmatprep.subr.mxu0 0.0
        %915 = vmatpush1.xpose.msra.mxu0 0.0
        %916 = vmatprep.subr.mxu0 0.0
        %917 = vmatpush1.xpose.msra.mxu0 0.0
        %918 = vmatprep.subr.mxu0 0.0
        %919 = vmatpush1.xpose.msra.mxu0 0.0
        %920 = vmatprep.subr.mxu0 0.0
        %921 = vmatpush1.xpose.msra.mxu0 0.0
        %922 = vmatprep.subr.mxu0 0.0
        %923 = vmatpush1.xpose.msra.mxu0 0.0
        %924 = vmatprep.subr.mxu0 0.0
        %925 = vmatpush1.xpose.msra.mxu0 0.0
        %926 = vmatprep.subr.mxu0 0.0
        %927 = vmatpush1.xpose.msra.mxu0 %v894
        %928 = vmatprep.subr.mxu0 0.0
        %929 = vmatpush2.xpose.msra.mxu0 0.0
        %930 = vmatprep.subr.mxu0 0.0
        %931 = vmatpush2.xpose.msra.mxu0 0.0
        %932 = vmatprep.subr.mxu0 0.0
        %933 = vmatpush2.xpose.msra.mxu0 0.0
        %934 = vmatprep.subr.mxu0 0.0
        %935 = vmatpush2.xpose.msra.mxu0 0.0
        %936 = vmatprep.subr.mxu0 0.0
        %937 = vmatpush2.xpose.msra.mxu0 0.0
        %938 = vmatprep.subr.mxu0 0.0
        %939 = vmatpush2.xpose.msra.mxu0 0.0
        %940 = vmatprep.subr.mxu0 0.0
        %941 = vmatpush2.xpose.msra.mxu0 0.0
        %942 = vmatprep.subr.mxu0 0.0
        %943 = vmatpush2.xpose.msra.mxu0 0.0
        %944 = vmatprep.subr.mxu0 0.0
        %945 = vmatpush2.xpose.msra.mxu0 0.0
        %946 = vmatprep.subr.mxu0 0.0
        %947 = vmatpush2.xpose.msra.mxu0 0.0
        %948 = vmatprep.subr.mxu0 0.0
        %949 = vmatpush2.xpose.msra.mxu0 0.0
        %950 = vmatprep.subr.mxu0 0.0
        %951 = vmatpush2.xpose.msra.mxu0 0.0
        %952 = vmatprep.subr.mxu0 0.0
        %953 = vmatpush2.xpose.msra.mxu0 0.0
        %954 = vmatprep.subr.mxu0 0.0
        %955 = vmatpush2.xpose.msra.mxu0 0.0
        %956 = vmatprep.subr.mxu0 0.0
        %957 = vmatpush2.xpose.msra.mxu0 0.0
        %958 = vmatprep.subr.mxu0 0.0
        %959 = vmatpush2.xpose.msra.mxu0 0.0
        %960 = vmatprep.mubr.f32.mxu0 0.0
        %961 = vmatmul.mubr.f32.gmra.mxu0 %v892
        %v962 = vpop.f32.mrf.mxu0
        %v963 = vadd.f32 0.0, %v962
        %v964 = vpop.f32.mrf.mxu0
        %965 = vdwg.mxu0
        %v966 = vmul.f32 %v886, 0.35355338
        %v967 = vmul.f32 %v963, 0.35355338
        %v968 = vsel %vm810, 1, 0
        %vm969 = vcmp.eq.s32.totalorder %v968, 1
        %v970 = vsel %vm969, %v966, -1e+30
        %v971 = vsel %vm969, %v967, -1e+30
        %v972 = vsel %vm814, %v970, -inf
        %973 = vmax.xlane.f32.xlu0 %v972
        %v974 = vpop.xlane.xlu0 %973
        %v975 = vsel %vm814, %v971, -inf
        %976 = vmax.xlane.f32.xlu0 %v975
        %v977 = vpop.xlane.xlu0 %976
        %v978 = vsub.f32 %v970, %v974
        %v979 = vsub.f32 %v971, %v977
        %v980 = vmul.f32 %v978, 1.442695
        %v981 = vpow.pop %v980
        %v982 = vmul.f32 %v979, 1.442695
        %v983 = vpow.pop %v982
        %v984 = vsel %vm814, %v981, 0.0
        %985 = vadd.xlane.f32.xlu0 %v984
        %v986 = vpop.xlane.xlu0 %985
        %v987 = vsel %vm814, %v983, 0.0
        %988 = vadd.xlane.f32.xlu0 %v987
        %v989 = vpop.xlane.xlu0 %988
        %v990 = vrcp.pop %v986
        %v991 = vrcp.pop %v989
        %v992 = vmul.f32 %v981, %v990
        %v993 = vmul.f32 %v983, %v991
        %994 = vrot.lane.b32.xlu0 %v800, 64
        %v995 = vpop.permute.xlu0 %994
        %v998 = vsel %vm814, %v992, 0
        %1000 = vmatprep.subr.mxu0 0.0
        %1001 = vmatpush1.msra.mxu0 0.0
        %1002 = vmatprep.subr.mxu0 0.0
        %1003 = vmatpush1.msra.mxu0 0.0
        %1004 = vmatprep.subr.mxu0 0.0
        %1005 = vmatpush1.msra.mxu0 0.0
        %1006 = vmatprep.subr.mxu0 0.0
        %1007 = vmatpush1.msra.mxu0 0.0
        %1008 = vmatprep.subr.mxu0 0.0
        %1009 = vmatpush1.msra.mxu0 0.0
        %1010 = vmatprep.subr.mxu0 0.0
        %1011 = vmatpush1.msra.mxu0 0.0
        %1012 = vmatprep.subr.mxu0 0.0
        %1013 = vmatpush1.msra.mxu0 0.0
        %1014 = vmatprep.subr.mxu0 0.0
        %1015 = vmatpush1.msra.mxu0 0.0
        %1016 = vmatprep.subr.mxu0 0.0
        %1017 = vmatpush1.msra.mxu0 0.0
        %1018 = vmatprep.subr.mxu0 0.0
        %1019 = vmatpush1.msra.mxu0 0.0
        %1020 = vmatprep.subr.mxu0 0.0
        %1021 = vmatpush1.msra.mxu0 0.0
        %1022 = vmatprep.subr.mxu0 0.0
        %1023 = vmatpush1.msra.mxu0 0.0
        %1024 = vmatprep.subr.mxu0 0.0
        %1025 = vmatpush1.msra.mxu0 0.0
        %1026 = vmatprep.subr.mxu0 0.0
        %1027 = vmatpush1.msra.mxu0 0.0
        %1028 = vmatprep.subr.mxu0 0.0
        %1029 = vmatpush1.msra.mxu0 0.0
        %1030 = vmatprep.subr.mxu0 0.0
        %1031 = vmatpush1.msra.mxu0 %v995
        %1032 = vmatprep.subr.mxu0 0.0
        %1033 = vmatpush2.msra.mxu0 0.0
        %1034 = vmatprep.subr.mxu0 0.0
        %1035 = vmatpush2.msra.mxu0 0.0
        %1036 = vmatprep.subr.mxu0 0.0
        %1037 = vmatpush2.msra.mxu0 0.0
        %1038 = vmatprep.subr.mxu0 0.0
        %1039 = vmatpush2.msra.mxu0 0.0
        %1040 = vmatprep.subr.mxu0 0.0
        %1041 = vmatpush2.msra.mxu0 0.0
        %1042 = vmatprep.subr.mxu0 0.0
        %1043 = vmatpush2.msra.mxu0 0.0
        %1044 = vmatprep.subr.mxu0 0.0
        %1045 = vmatpush2.msra.mxu0 0.0
        %1046 = vmatprep.subr.mxu0 0.0
        %1047 = vmatpush2.msra.mxu0 0.0
        %1048 = vmatprep.subr.mxu0 0.0
        %1049 = vmatpush2.msra.mxu0 0.0
        %1050 = vmatprep.subr.mxu0 0.0
        %1051 = vmatpush2.msra.mxu0 0.0
        %1052 = vmatprep.subr.mxu0 0.0
        %1053 = vmatpush2.msra.mxu0 0.0
        %1054 = vmatprep.subr.mxu0 0.0
        %1055 = vmatpush2.msra.mxu0 0.0
        %1056 = vmatprep.subr.mxu0 0.0
        %1057 = vmatpush2.msra.mxu0 0.0
        %1058 = vmatprep.subr.mxu0 0.0
        %1059 = vmatpush2.msra.mxu0 0.0
        %1060 = vmatprep.subr.mxu0 0.0
        %1061 = vmatpush2.msra.mxu0 0.0
        %1062 = vmatprep.subr.mxu0 0.0
        %1063 = vmatpush2.msra.mxu0 0.0
        %1064 = vmatprep.mubr.f32.mxu0 0.0
        %1065 = vmatmul.mubr.f32.gmra.mxu0 %v998
        %v1066 = vpop.f32.mrf.mxu0
        %v1067 = vadd.f32 0.0, %v1066
        %v1068 = vpop.f32.mrf.mxu0
        %1069 = vdwg.mxu0
        %1070 = vrot.lane.b32.xlu0 %v803, 64
        %v1071 = vpop.permute.xlu0 %1070
        %v1074 = vsel %vm814, %v993, 0
        %1076 = vmatprep.subr.mxu0 0.0
        %1077 = vmatpush1.msra.mxu0 0.0
        %1078 = vmatprep.subr.mxu0 0.0
        %1079 = vmatpush1.msra.mxu0 0.0
        %1080 = vmatprep.subr.mxu0 0.0
        %1081 = vmatpush1.msra.mxu0 0.0
        %1082 = vmatprep.subr.mxu0 0.0
        %1083 = vmatpush1.msra.mxu0 0.0
        %1084 = vmatprep.subr.mxu0 0.0
        %1085 = vmatpush1.msra.mxu0 0.0
        %1086 = vmatprep.subr.mxu0 0.0
        %1087 = vmatpush1.msra.mxu0 0.0
        %1088 = vmatprep.subr.mxu0 0.0
        %1089 = vmatpush1.msra.mxu0 0.0
        %1090 = vmatprep.subr.mxu0 0.0
        %1091 = vmatpush1.msra.mxu0 0.0
        %1092 = vmatprep.subr.mxu0 0.0
        %1093 = vmatpush1.msra.mxu0 0.0
        %1094 = vmatprep.subr.mxu0 0.0
        %1095 = vmatpush1.msra.mxu0 0.0
        %1096 = vmatprep.subr.mxu0 0.0
        %1097 = vmatpush1.msra.mxu0 0.0
        %1098 = vmatprep.subr.mxu0 0.0
        %1099 = vmatpush1.msra.mxu0 0.0
        %1100 = vmatprep.subr.mxu0 0.0
        %1101 = vmatpush1.msra.mxu0 0.0
        %1102 = vmatprep.subr.mxu0 0.0
        %1103 = vmatpush1.msra.mxu0 0.0
        %1104 = vmatprep.subr.mxu0 0.0
        %1105 = vmatpush1.msra.mxu0 0.0
        %1106 = vmatprep.subr.mxu0 0.0
        %1107 = vmatpush1.msra.mxu0 %v1071
        %1108 = vmatprep.subr.mxu0 0.0
        %1109 = vmatpush2.msra.mxu0 0.0
        %1110 = vmatprep.subr.mxu0 0.0
        %1111 = vmatpush2.msra.mxu0 0.0
        %1112 = vmatprep.subr.mxu0 0.0
        %1113 = vmatpush2.msra.mxu0 0.0
        %1114 = vmatprep.subr.mxu0 0.0
        %1115 = vmatpush2.msra.mxu0 0.0
        %1116 = vmatprep.subr.mxu0 0.0
        %1117 = vmatpush2.msra.mxu0 0.0
        %1118 = vmatprep.subr.mxu0 0.0
        %1119 = vmatpush2.msra.mxu0 0.0
        %1120 = vmatprep.subr.mxu0 0.0
        %1121 = vmatpush2.msra.mxu0 0.0
        %1122 = vmatprep.subr.mxu0 0.0
        %1123 = vmatpush2.msra.mxu0 0.0
        %1124 = vmatprep.subr.mxu0 0.0
        %1125 = vmatpush2.msra.mxu0 0.0
        %1126 = vmatprep.subr.mxu0 0.0
        %1127 = vmatpush2.msra.mxu0 0.0
        %1128 = vmatprep.subr.mxu0 0.0
        %1129 = vmatpush2.msra.mxu0 0.0
        %1130 = vmatprep.subr.mxu0 0.0
        %1131 = vmatpush2.msra.mxu0 0.0
        %1132 = vmatprep.subr.mxu0 0.0
        %1133 = vmatpush2.msra.mxu0 0.0
        %1134 = vmatprep.subr.mxu0 0.0
        %1135 = vmatpush2.msra.mxu0 0.0
        %1136 = vmatprep.subr.mxu0 0.0
        %1137 = vmatpush2.msra.mxu0 0.0
        %1138 = vmatprep.subr.mxu0 0.0
        %1139 = vmatpush2.msra.mxu0 0.0
        %1140 = vmatprep.mubr.f32.mxu0 0.0
        %1141 = vmatmul.mubr.f32.gmra.mxu0 %v1074
        %v1142 = vpop.f32.mrf.mxu0
        %v1143 = vadd.f32 0.0, %v1142
        %v1144 = vpop.f32.mrf.mxu0
        %1145 = vdwg.mxu0
        %1146 = vrot.lane.b32.xlu0 %v800, 120
        %v1147 = vpop.permute.xlu0 %1146
        %1148 = vrot.lane.b32.xlu0 %v800, 88
        %v1149 = vpop.permute.xlu0 %1148
        %v1150 = vsel %vm814, %v1147, 0
        %v1152 = vsel %vm814, %v1149, 0
        %1154 = vmatprep.subr.mxu0 0.0
        %1155 = vmatpush1.xpose.msra.mxu0 0.0
        %1156 = vmatprep.subr.mxu0 0.0
        %1157 = vmatpush1.xpose.msra.mxu0 0.0
        %1158 = vmatprep.subr.mxu0 0.0
        %1159 = vmatpush1.xpose.msra.mxu0 0.0
        %1160 = vmatprep.subr.mxu0 0.0
        %1161 = vmatpush1.xpose.msra.mxu0 0.0
        %1162 = vmatprep.subr.mxu0 0.0
        %1163 = vmatpush1.xpose.msra.mxu0 0.0
        %1164 = vmatprep.subr.mxu0 0.0
        %1165 = vmatpush1.xpose.msra.mxu0 0.0
        %1166 = vmatprep.subr.mxu0 0.0
        %1167 = vmatpush1.xpose.msra.mxu0 0.0
        %1168 = vmatprep.subr.mxu0 0.0
        %1169 = vmatpush1.xpose.msra.mxu0 0.0
        %1170 = vmatprep.subr.mxu0 0.0
        %1171 = vmatpush1.xpose.msra.mxu0 0.0
        %1172 = vmatprep.subr.mxu0 0.0
        %1173 = vmatpush1.xpose.msra.mxu0 0.0
        %1174 = vmatprep.subr.mxu0 0.0
        %1175 = vmatpush1.xpose.msra.mxu0 0.0
        %1176 = vmatprep.subr.mxu0 0.0
        %1177 = vmatpush1.xpose.msra.mxu0 0.0
        %1178 = vmatprep.subr.mxu0 0.0
        %1179 = vmatpush1.xpose.msra.mxu0 0.0
        %1180 = vmatprep.subr.mxu0 0.0
        %1181 = vmatpush1.xpose.msra.mxu0 0.0
        %1182 = vmatprep.subr.mxu0 0.0
        %1183 = vmatpush1.xpose.msra.mxu0 0.0
        %1184 = vmatprep.subr.mxu0 0.0
        %1185 = vmatpush1.xpose.msra.mxu0 %v1152
        %1186 = vmatprep.subr.mxu0 0.0
        %1187 = vmatpush2.xpose.msra.mxu0 0.0
        %1188 = vmatprep.subr.mxu0 0.0
        %1189 = vmatpush2.xpose.msra.mxu0 0.0
        %1190 = vmatprep.subr.mxu0 0.0
        %1191 = vmatpush2.xpose.msra.mxu0 0.0
        %1192 = vmatprep.subr.mxu0 0.0
        %1193 = vmatpush2.xpose.msra.mxu0 0.0
        %1194 = vmatprep.subr.mxu0 0.0
        %1195 = vmatpush2.xpose.msra.mxu0 0.0
        %1196 = vmatprep.subr.mxu0 0.0
        %1197 = vmatpush2.xpose.msra.mxu0 0.0
        %1198 = vmatprep.subr.mxu0 0.0
        %1199 = vmatpush2.xpose.msra.mxu0 0.0
        %1200 = vmatprep.subr.mxu0 0.0
        %1201 = vmatpush2.xpose.msra.mxu0 0.0
        %1202 = vmatprep.subr.mxu0 0.0
        %1203 = vmatpush2.xpose.msra.mxu0 0.0
        %1204 = vmatprep.subr.mxu0 0.0
        %1205 = vmatpush2.xpose.msra.mxu0 0.0
        %1206 = vmatprep.subr.mxu0 0.0
        %1207 = vmatpush2.xpose.msra.mxu0 0.0
        %1208 = vmatprep.subr.mxu0 0.0
        %1209 = vmatpush2.xpose.msra.mxu0 0.0
        %1210 = vmatprep.subr.mxu0 0.0
        %1211 = vmatpush2.xpose.msra.mxu0 0.0
        %1212 = vmatprep.subr.mxu0 0.0
        %1213 = vmatpush2.xpose.msra.mxu0 0.0
        %1214 = vmatprep.subr.mxu0 0.0
        %1215 = vmatpush2.xpose.msra.mxu0 0.0
        %1216 = vmatprep.subr.mxu0 0.0
        %1217 = vmatpush2.xpose.msra.mxu0 0.0
        %1218 = vmatprep.mubr.f32.mxu0 0.0
        %1219 = vmatmul.mubr.f32.gmra.mxu0 %v1150
        %v1220 = vpop.f32.mrf.mxu0
        %v1221 = vadd.f32 0.0, %v1220
        %v1222 = vpop.f32.mrf.mxu0
        %1223 = vdwg.mxu0
        %1224 = vrot.lane.b32.xlu0 %v803, 120
        %v1225 = vpop.permute.xlu0 %1224
        %1226 = vrot.lane.b32.xlu0 %v803, 88
        %v1227 = vpop.permute.xlu0 %1226
        %v1228 = vsel %vm814, %v1225, 0
        %v1230 = vsel %vm814, %v1227, 0
        %1232 = vmatprep.subr.mxu0 0.0
        %1233 = vmatpush1.xpose.msra.mxu0 0.0
        %1234 = vmatprep.subr.mxu0 0.0
        %1235 = vmatpush1.xpose.msra.mxu0 0.0
        %1236 = vmatprep.subr.mxu0 0.0
        %1237 = vmatpush1.xpose.msra.mxu0 0.0
        %1238 = vmatprep.subr.mxu0 0.0
        %1239 = vmatpush1.xpose.msra.mxu0 0.0
        %1240 = vmatprep.subr.mxu0 0.0
        %1241 = vmatpush1.xpose.msra.mxu0 0.0
        %1242 = vmatprep.subr.mxu0 0.0
        %1243 = vmatpush1.xpose.msra.mxu0 0.0
        %1244 = vmatprep.subr.mxu0 0.0
        %1245 = vmatpush1.xpose.msra.mxu0 0.0
        %1246 = vmatprep.subr.mxu0 0.0
        %1247 = vmatpush1.xpose.msra.mxu0 0.0
        %1248 = vmatprep.subr.mxu0 0.0
        %1249 = vmatpush1.xpose.msra.mxu0 0.0
        %1250 = vmatprep.subr.mxu0 0.0
        %1251 = vmatpush1.xpose.msra.mxu0 0.0
        %1252 = vmatprep.subr.mxu0 0.0
        %1253 = vmatpush1.xpose.msra.mxu0 0.0
        %1254 = vmatprep.subr.mxu0 0.0
        %1255 = vmatpush1.xpose.msra.mxu0 0.0
        %1256 = vmatprep.subr.mxu0 0.0
        %1257 = vmatpush1.xpose.msra.mxu0 0.0
        %1258 = vmatprep.subr.mxu0 0.0
        %1259 = vmatpush1.xpose.msra.mxu0 0.0
        %1260 = vmatprep.subr.mxu0 0.0
        %1261 = vmatpush1.xpose.msra.mxu0 0.0
        %1262 = vmatprep.subr.mxu0 0.0
        %1263 = vmatpush1.xpose.msra.mxu0 %v1230
        %1264 = vmatprep.subr.mxu0 0.0
        %1265 = vmatpush2.xpose.msra.mxu0 0.0
        %1266 = vmatprep.subr.mxu0 0.0
        %1267 = vmatpush2.xpose.msra.mxu0 0.0
        %1268 = vmatprep.subr.mxu0 0.0
        %1269 = vmatpush2.xpose.msra.mxu0 0.0
        %1270 = vmatprep.subr.mxu0 0.0
        %1271 = vmatpush2.xpose.msra.mxu0 0.0
        %1272 = vmatprep.subr.mxu0 0.0
        %1273 = vmatpush2.xpose.msra.mxu0 0.0
        %1274 = vmatprep.subr.mxu0 0.0
        %1275 = vmatpush2.xpose.msra.mxu0 0.0
        %1276 = vmatprep.subr.mxu0 0.0
        %1277 = vmatpush2.xpose.msra.mxu0 0.0
        %1278 = vmatprep.subr.mxu0 0.0
        %1279 = vmatpush2.xpose.msra.mxu0 0.0
        %1280 = vmatprep.subr.mxu0 0.0
        %1281 = vmatpush2.xpose.msra.mxu0 0.0
        %1282 = vmatprep.subr.mxu0 0.0
        %1283 = vmatpush2.xpose.msra.mxu0 0.0
        %1284 = vmatprep.subr.mxu0 0.0
        %1285 = vmatpush2.xpose.msra.mxu0 0.0
        %1286 = vmatprep.subr.mxu0 0.0
        %1287 = vmatpush2.xpose.msra.mxu0 0.0
        %1288 = vmatprep.subr.mxu0 0.0
        %1289 = vmatpush2.xpose.msra.mxu0 0.0
        %1290 = vmatprep.subr.mxu0 0.0
        %1291 = vmatpush2.xpose.msra.mxu0 0.0
        %1292 = vmatprep.subr.mxu0 0.0
        %1293 = vmatpush2.xpose.msra.mxu0 0.0
        %1294 = vmatprep.subr.mxu0 0.0
        %1295 = vmatpush2.xpose.msra.mxu0 0.0
        %1296 = vmatprep.mubr.f32.mxu0 0.0
        %1297 = vmatmul.mubr.f32.gmra.mxu0 %v1228
        %v1298 = vpop.f32.mrf.mxu0
        %v1299 = vadd.f32 0.0, %v1298
        %v1300 = vpop.f32.mrf.mxu0
        %1301 = vdwg.mxu0
        %v1302 = vmul.f32 %v1221, 0.35355338
        %v1303 = vmul.f32 %v1299, 0.35355338
        %v1304 = vsel %vm969, %v1302, -1e+30
        %v1305 = vsel %vm969, %v1303, -1e+30
        %v1306 = vsel %vm814, %v1304, -inf
        %1307 = vmax.xlane.f32.xlu0 %v1306
        %v1308 = vpop.xlane.xlu0 %1307
        %v1309 = vsel %vm814, %v1305, -inf
        %1310 = vmax.xlane.f32.xlu0 %v1309
        %v1311 = vpop.xlane.xlu0 %1310
        %v1312 = vsub.f32 %v1304, %v1308
        %v1313 = vsub.f32 %v1305, %v1311
        %v1314 = vmul.f32 %v1312, 1.442695
        %v1315 = vpow.pop %v1314
        %v1316 = vmul.f32 %v1313, 1.442695
        %v1317 = vpow.pop %v1316
        %v1318 = vsel %vm814, %v1315, 0.0
        %1319 = vadd.xlane.f32.xlu0 %v1318
        %v1320 = vpop.xlane.xlu0 %1319
        %v1321 = vsel %vm814, %v1317, 0.0
        %1322 = vadd.xlane.f32.xlu0 %v1321
        %v1323 = vpop.xlane.xlu0 %1322
        %v1324 = vrcp.pop %v1320
        %v1325 = vrcp.pop %v1323
        %v1326 = vmul.f32 %v1315, %v1324
        %v1327 = vmul.f32 %v1317, %v1325
        %1328 = vrot.lane.b32.xlu0 %v800, 56
        %v1329 = vpop.permute.xlu0 %1328
        %v1332 = vsel %vm814, %v1326, 0
        %1334 = vmatprep.subr.mxu0 0.0
        %1335 = vmatpush1.msra.mxu0 0.0
        %1336 = vmatprep.subr.mxu0 0.0
        %1337 = vmatpush1.msra.mxu0 0.0
        %1338 = vmatprep.subr.mxu0 0.0
        %1339 = vmatpush1.msra.mxu0 0.0
        %1340 = vmatprep.subr.mxu0 0.0
        %1341 = vmatpush1.msra.mxu0 0.0
        %1342 = vmatprep.subr.mxu0 0.0
        %1343 = vmatpush1.msra.mxu0 0.0
        %1344 = vmatprep.subr.mxu0 0.0
        %1345 = vmatpush1.msra.mxu0 0.0
        %1346 = vmatprep.subr.mxu0 0.0
        %1347 = vmatpush1.msra.mxu0 0.0
        %1348 = vmatprep.subr.mxu0 0.0
        %1349 = vmatpush1.msra.mxu0 0.0
        %1350 = vmatprep.subr.mxu0 0.0
        %1351 = vmatpush1.msra.mxu0 0.0
        %1352 = vmatprep.subr.mxu0 0.0
        %1353 = vmatpush1.msra.mxu0 0.0
        %1354 = vmatprep.subr.mxu0 0.0
        %1355 = vmatpush1.msra.mxu0 0.0
        %1356 = vmatprep.subr.mxu0 0.0
        %1357 = vmatpush1.msra.mxu0 0.0
        %1358 = vmatprep.subr.mxu0 0.0
        %1359 = vmatpush1.msra.mxu0 0.0
        %1360 = vmatprep.subr.mxu0 0.0
        %1361 = vmatpush1.msra.mxu0 0.0
        %1362 = vmatprep.subr.mxu0 0.0
        %1363 = vmatpush1.msra.mxu0 0.0
        %1364 = vmatprep.subr.mxu0 0.0
        %1365 = vmatpush1.msra.mxu0 %v1329
        %1366 = vmatprep.subr.mxu0 0.0
        %1367 = vmatpush2.msra.mxu0 0.0
        %1368 = vmatprep.subr.mxu0 0.0
        %1369 = vmatpush2.msra.mxu0 0.0
        %1370 = vmatprep.subr.mxu0 0.0
        %1371 = vmatpush2.msra.mxu0 0.0
        %1372 = vmatprep.subr.mxu0 0.0
        %1373 = vmatpush2.msra.mxu0 0.0
        %1374 = vmatprep.subr.mxu0 0.0
        %1375 = vmatpush2.msra.mxu0 0.0
        %1376 = vmatprep.subr.mxu0 0.0
        %1377 = vmatpush2.msra.mxu0 0.0
        %1378 = vmatprep.subr.mxu0 0.0
        %1379 = vmatpush2.msra.mxu0 0.0
        %1380 = vmatprep.subr.mxu0 0.0
        %1381 = vmatpush2.msra.mxu0 0.0
        %1382 = vmatprep.subr.mxu0 0.0
        %1383 = vmatpush2.msra.mxu0 0.0
        %1384 = vmatprep.subr.mxu0 0.0
        %1385 = vmatpush2.msra.mxu0 0.0
        %1386 = vmatprep.subr.mxu0 0.0
        %1387 = vmatpush2.msra.mxu0 0.0
        %1388 = vmatprep.subr.mxu0 0.0
        %1389 = vmatpush2.msra.mxu0 0.0
        %1390 = vmatprep.subr.mxu0 0.0
        %1391 = vmatpush2.msra.mxu0 0.0
        %1392 = vmatprep.subr.mxu0 0.0
        %1393 = vmatpush2.msra.mxu0 0.0
        %1394 = vmatprep.subr.mxu0 0.0
        %1395 = vmatpush2.msra.mxu0 0.0
        %1396 = vmatprep.subr.mxu0 0.0
        %1397 = vmatpush2.msra.mxu0 0.0
        %1398 = vmatprep.mubr.f32.mxu0 0.0
        %1399 = vmatmul.mubr.f32.gmra.mxu0 %v1332
        %v1400 = vpop.f32.mrf.mxu0
        %v1401 = vadd.f32 0.0, %v1400
        %v1402 = vpop.f32.mrf.mxu0
        %1403 = vdwg.mxu0
        %1404 = vrot.lane.b32.xlu0 %v803, 56
        %v1405 = vpop.permute.xlu0 %1404
        %v1408 = vsel %vm814, %v1327, 0
        %1410 = vmatprep.subr.mxu0 0.0
        %1411 = vmatpush1.msra.mxu0 0.0
        %1412 = vmatprep.subr.mxu0 0.0
        %1413 = vmatpush1.msra.mxu0 0.0
        %1414 = vmatprep.subr.mxu0 0.0
        %1415 = vmatpush1.msra.mxu0 0.0
        %1416 = vmatprep.subr.mxu0 0.0
        %1417 = vmatpush1.msra.mxu0 0.0
        %1418 = vmatprep.subr.mxu0 0.0
        %1419 = vmatpush1.msra.mxu0 0.0
        %1420 = vmatprep.subr.mxu0 0.0
        %1421 = vmatpush1.msra.mxu0 0.0
        %1422 = vmatprep.subr.mxu0 0.0
        %1423 = vmatpush1.msra.mxu0 0.0
        %1424 = vmatprep.subr.mxu0 0.0
        %1425 = vmatpush1.msra.mxu0 0.0
        %1426 = vmatprep.subr.mxu0 0.0
        %1427 = vmatpush1.msra.mxu0 0.0
        %1428 = vmatprep.subr.mxu0 0.0
        %1429 = vmatpush1.msra.mxu0 0.0
        %1430 = vmatprep.subr.mxu0 0.0
        %1431 = vmatpush1.msra.mxu0 0.0
        %1432 = vmatprep.subr.mxu0 0.0
        %1433 = vmatpush1.msra.mxu0 0.0
        %1434 = vmatprep.subr.mxu0 0.0
        %1435 = vmatpush1.msra.mxu0 0.0
        %1436 = vmatprep.subr.mxu0 0.0
        %1437 = vmatpush1.msra.mxu0 0.0
        %1438 = vmatprep.subr.mxu0 0.0
        %1439 = vmatpush1.msra.mxu0 0.0
        %1440 = vmatprep.subr.mxu0 0.0
        %1441 = vmatpush1.msra.mxu0 %v1405
        %1442 = vmatprep.subr.mxu0 0.0
        %1443 = vmatpush2.msra.mxu0 0.0
        %1444 = vmatprep.subr.mxu0 0.0
        %1445 = vmatpush2.msra.mxu0 0.0
        %1446 = vmatprep.subr.mxu0 0.0
        %1447 = vmatpush2.msra.mxu0 0.0
        %1448 = vmatprep.subr.mxu0 0.0
        %1449 = vmatpush2.msra.mxu0 0.0
        %1450 = vmatprep.subr.mxu0 0.0
        %1451 = vmatpush2.msra.mxu0 0.0
        %1452 = vmatprep.subr.mxu0 0.0
        %1453 = vmatpush2.msra.mxu0 0.0
        %1454 = vmatprep.subr.mxu0 0.0
        %1455 = vmatpush2.msra.mxu0 0.0
        %1456 = vmatprep.subr.mxu0 0.0
        %1457 = vmatpush2.msra.mxu0 0.0
        %1458 = vmatprep.subr.mxu0 0.0
        %1459 = vmatpush2.msra.mxu0 0.0
        %1460 = vmatprep.subr.mxu0 0.0
        %1461 = vmatpush2.msra.mxu0 0.0
        %1462 = vmatprep.subr.mxu0 0.0
        %1463 = vmatpush2.msra.mxu0 0.0
        %1464 = vmatprep.subr.mxu0 0.0
        %1465 = vmatpush2.msra.mxu0 0.0
        %1466 = vmatprep.subr.mxu0 0.0
        %1467 = vmatpush2.msra.mxu0 0.0
        %1468 = vmatprep.subr.mxu0 0.0
        %1469 = vmatpush2.msra.mxu0 0.0
        %1470 = vmatprep.subr.mxu0 0.0
        %1471 = vmatpush2.msra.mxu0 0.0
        %1472 = vmatprep.subr.mxu0 0.0
        %1473 = vmatpush2.msra.mxu0 0.0
        %1474 = vmatprep.mubr.f32.mxu0 0.0
        %1475 = vmatmul.mubr.f32.gmra.mxu0 %v1408
        %v1476 = vpop.f32.mrf.mxu0
        %v1477 = vadd.f32 0.0, %v1476
        %v1478 = vpop.f32.mrf.mxu0
        %1479 = vdwg.mxu0
        %1480 = vrot.lane.b32.xlu0 %v800, 112
        %v1481 = vpop.permute.xlu0 %1480
        %1482 = vrot.lane.b32.xlu0 %v800, 80
        %v1483 = vpop.permute.xlu0 %1482
        %v1484 = vsel %vm814, %v1481, 0
        %v1486 = vsel %vm814, %v1483, 0
        %1488 = vmatprep.subr.mxu0 0.0
        %1489 = vmatpush1.xpose.msra.mxu0 0.0
        %1490 = vmatprep.subr.mxu0 0.0
        %1491 = vmatpush1.xpose.msra.mxu0 0.0
        %1492 = vmatprep.subr.mxu0 0.0
        %1493 = vmatpush1.xpose.msra.mxu0 0.0
        %1494 = vmatprep.subr.mxu0 0.0
        %1495 = vmatpush1.xpose.msra.mxu0 0.0
        %1496 = vmatprep.subr.mxu0 0.0
        %1497 = vmatpush1.xpose.msra.mxu0 0.0
        %1498 = vmatprep.subr.mxu0 0.0
        %1499 = vmatpush1.xpose.msra.mxu0 0.0
        %1500 = vmatprep.subr.mxu0 0.0
        %1501 = vmatpush1.xpose.msra.mxu0 0.0
        %1502 = vmatprep.subr.mxu0 0.0
        %1503 = vmatpush1.xpose.msra.mxu0 0.0
        %1504 = vmatprep.subr.mxu0 0.0
        %1505 = vmatpush1.xpose.msra.mxu0 0.0
        %1506 = vmatprep.subr.mxu0 0.0
        %1507 = vmatpush1.xpose.msra.mxu0 0.0
        %1508 = vmatprep.subr.mxu0 0.0
        %1509 = vmatpush1.xpose.msra.mxu0 0.0
        %1510 = vmatprep.subr.mxu0 0.0
        %1511 = vmatpush1.xpose.msra.mxu0 0.0
        %1512 = vmatprep.subr.mxu0 0.0
        %1513 = vmatpush1.xpose.msra.mxu0 0.0
        %1514 = vmatprep.subr.mxu0 0.0
        %1515 = vmatpush1.xpose.msra.mxu0 0.0
        %1516 = vmatprep.subr.mxu0 0.0
        %1517 = vmatpush1.xpose.msra.mxu0 0.0
        %1518 = vmatprep.subr.mxu0 0.0
        %1519 = vmatpush1.xpose.msra.mxu0 %v1486
        %1520 = vmatprep.subr.mxu0 0.0
        %1521 = vmatpush2.xpose.msra.mxu0 0.0
        %1522 = vmatprep.subr.mxu0 0.0
        %1523 = vmatpush2.xpose.msra.mxu0 0.0
        %1524 = vmatprep.subr.mxu0 0.0
        %1525 = vmatpush2.xpose.msra.mxu0 0.0
        %1526 = vmatprep.subr.mxu0 0.0
        %1527 = vmatpush2.xpose.msra.mxu0 0.0
        %1528 = vmatprep.subr.mxu0 0.0
        %1529 = vmatpush2.xpose.msra.mxu0 0.0
        %1530 = vmatprep.subr.mxu0 0.0
        %1531 = vmatpush2.xpose.msra.mxu0 0.0
        %1532 = vmatprep.subr.mxu0 0.0
        %1533 = vmatpush2.xpose.msra.mxu0 0.0
        %1534 = vmatprep.subr.mxu0 0.0
        %1535 = vmatpush2.xpose.msra.mxu0 0.0
        %1536 = vmatprep.subr.mxu0 0.0
        %1537 = vmatpush2.xpose.msra.mxu0 0.0
        %1538 = vmatprep.subr.mxu0 0.0
        %1539 = vmatpush2.xpose.msra.mxu0 0.0
        %1540 = vmatprep.subr.mxu0 0.0
        %1541 = vmatpush2.xpose.msra.mxu0 0.0
        %1542 = vmatprep.subr.mxu0 0.0
        %1543 = vmatpush2.xpose.msra.mxu0 0.0
        %1544 = vmatprep.subr.mxu0 0.0
        %1545 = vmatpush2.xpose.msra.mxu0 0.0
        %1546 = vmatprep.subr.mxu0 0.0
        %1547 = vmatpush2.xpose.msra.mxu0 0.0
        %1548 = vmatprep.subr.mxu0 0.0
        %1549 = vmatpush2.xpose.msra.mxu0 0.0
        %1550 = vmatprep.subr.mxu0 0.0
        %1551 = vmatpush2.xpose.msra.mxu0 0.0
        %1552 = vmatprep.mubr.f32.mxu0 0.0
        %1553 = vmatmul.mubr.f32.gmra.mxu0 %v1484
        %v1554 = vpop.f32.mrf.mxu0
        %v1555 = vadd.f32 0.0, %v1554
        %v1556 = vpop.f32.mrf.mxu0
        %1557 = vdwg.mxu0
        %1558 = vrot.lane.b32.xlu0 %v803, 112
        %v1559 = vpop.permute.xlu0 %1558
        %1560 = vrot.lane.b32.xlu0 %v803, 80
        %v1561 = vpop.permute.xlu0 %1560
        %v1562 = vsel %vm814, %v1559, 0
        %v1564 = vsel %vm814, %v1561, 0
        %1566 = vmatprep.subr.mxu0 0.0
        %1567 = vmatpush1.xpose.msra.mxu0 0.0
        %1568 = vmatprep.subr.mxu0 0.0
        %1569 = vmatpush1.xpose.msra.mxu0 0.0
        %1570 = vmatprep.subr.mxu0 0.0
        %1571 = vmatpush1.xpose.msra.mxu0 0.0
        %1572 = vmatprep.subr.mxu0 0.0
        %1573 = vmatpush1.xpose.msra.mxu0 0.0
        %1574 = vmatprep.subr.mxu0 0.0
        %1575 = vmatpush1.xpose.msra.mxu0 0.0
        %1576 = vmatprep.subr.mxu0 0.0
        %1577 = vmatpush1.xpose.msra.mxu0 0.0
        %1578 = vmatprep.subr.mxu0 0.0
        %1579 = vmatpush1.xpose.msra.mxu0 0.0
        %1580 = vmatprep.subr.mxu0 0.0
        %1581 = vmatpush1.xpose.msra.mxu0 0.0
        %1582 = vmatprep.subr.mxu0 0.0
        %1583 = vmatpush1.xpose.msra.mxu0 0.0
        %1584 = vmatprep.subr.mxu0 0.0
        %1585 = vmatpush1.xpose.msra.mxu0 0.0
        %1586 = vmatprep.subr.mxu0 0.0
        %1587 = vmatpush1.xpose.msra.mxu0 0.0
        %1588 = vmatprep.subr.mxu0 0.0
        %1589 = vmatpush1.xpose.msra.mxu0 0.0
        %1590 = vmatprep.subr.mxu0 0.0
        %1591 = vmatpush1.xpose.msra.mxu0 0.0
        %1592 = vmatprep.subr.mxu0 0.0
        %1593 = vmatpush1.xpose.msra.mxu0 0.0
        %1594 = vmatprep.subr.mxu0 0.0
        %1595 = vmatpush1.xpose.msra.mxu0 0.0
        %1596 = vmatprep.subr.mxu0 0.0
        %1597 = vmatpush1.xpose.msra.mxu0 %v1564
        %1598 = vmatprep.subr.mxu0 0.0
        %1599 = vmatpush2.xpose.msra.mxu0 0.0
        %1600 = vmatprep.subr.mxu0 0.0
        %1601 = vmatpush2.xpose.msra.mxu0 0.0
        %1602 = vmatprep.subr.mxu0 0.0
        %1603 = vmatpush2.xpose.msra.mxu0 0.0
        %1604 = vmatprep.subr.mxu0 0.0
        %1605 = vmatpush2.xpose.msra.mxu0 0.0
        %1606 = vmatprep.subr.mxu0 0.0
        %1607 = vmatpush2.xpose.msra.mxu0 0.0
        %1608 = vmatprep.subr.mxu0 0.0
        %1609 = vmatpush2.xpose.msra.mxu0 0.0
        %1610 = vmatprep.subr.mxu0 0.0
        %1611 = vmatpush2.xpose.msra.mxu0 0.0
        %1612 = vmatprep.subr.mxu0 0.0
        %1613 = vmatpush2.xpose.msra.mxu0 0.0
        %1614 = vmatprep.subr.mxu0 0.0
        %1615 = vmatpush2.xpose.msra.mxu0 0.0
        %1616 = vmatprep.subr.mxu0 0.0
        %1617 = vmatpush2.xpose.msra.mxu0 0.0
        %1618 = vmatprep.subr.mxu0 0.0
        %1619 = vmatpush2.xpose.msra.mxu0 0.0
        %1620 = vmatprep.subr.mxu0 0.0
        %1621 = vmatpush2.xpose.msra.mxu0 0.0
        %1622 = vmatprep.subr.mxu0 0.0
        %1623 = vmatpush2.xpose.msra.mxu0 0.0
        %1624 = vmatprep.subr.mxu0 0.0
        %1625 = vmatpush2.xpose.msra.mxu0 0.0
        %1626 = vmatprep.subr.mxu0 0.0
        %1627 = vmatpush2.xpose.msra.mxu0 0.0
        %1628 = vmatprep.subr.mxu0 0.0
        %1629 = vmatpush2.xpose.msra.mxu0 0.0
        %1630 = vmatprep.mubr.f32.mxu0 0.0
        %1631 = vmatmul.mubr.f32.gmra.mxu0 %v1562
        %v1632 = vpop.f32.mrf.mxu0
        %v1633 = vadd.f32 0.0, %v1632
        %v1634 = vpop.f32.mrf.mxu0
        %1635 = vdwg.mxu0
        %v1636 = vmul.f32 %v1555, 0.35355338
        %v1637 = vmul.f32 %v1633, 0.35355338
        %v1638 = vsel %vm969, %v1636, -1e+30
        %v1639 = vsel %vm969, %v1637, -1e+30
        %v1640 = vsel %vm814, %v1638, -inf
        %1641 = vmax.xlane.f32.xlu0 %v1640
        %v1642 = vpop.xlane.xlu0 %1641
        %v1643 = vsel %vm814, %v1639, -inf
        %1644 = vmax.xlane.f32.xlu0 %v1643
        %v1645 = vpop.xlane.xlu0 %1644
        %v1646 = vsub.f32 %v1638, %v1642
        %v1647 = vsub.f32 %v1639, %v1645
        %v1648 = vmul.f32 %v1646, 1.442695
        %v1649 = vpow.pop %v1648
        %v1650 = vmul.f32 %v1647, 1.442695
        %v1651 = vpow.pop %v1650
        %v1652 = vsel %vm814, %v1649, 0.0
        %1653 = vadd.xlane.f32.xlu0 %v1652
        %v1654 = vpop.xlane.xlu0 %1653
        %v1655 = vsel %vm814, %v1651, 0.0
        %1656 = vadd.xlane.f32.xlu0 %v1655
        %v1657 = vpop.xlane.xlu0 %1656
        %v1658 = vrcp.pop %v1654
        %v1659 = vrcp.pop %v1657
        %v1660 = vmul.f32 %v1649, %v1658
        %v1661 = vmul.f32 %v1651, %v1659
        %1662 = vrot.lane.b32.xlu0 %v800, 48
        %v1663 = vpop.permute.xlu0 %1662
        %v1666 = vsel %vm814, %v1660, 0
        %1668 = vmatprep.subr.mxu0 0.0
        %1669 = vmatpush1.msra.mxu0 0.0
        %1670 = vmatprep.subr.mxu0 0.0
        %1671 = vmatpush1.msra.mxu0 0.0
        %1672 = vmatprep.subr.mxu0 0.0
        %1673 = vmatpush1.msra.mxu0 0.0
        %1674 = vmatprep.subr.mxu0 0.0
        %1675 = vmatpush1.msra.mxu0 0.0
        %1676 = vmatprep.subr.mxu0 0.0
        %1677 = vmatpush1.msra.mxu0 0.0
        %1678 = vmatprep.subr.mxu0 0.0
        %1679 = vmatpush1.msra.mxu0 0.0
        %1680 = vmatprep.subr.mxu0 0.0
        %1681 = vmatpush1.msra.mxu0 0.0
        %1682 = vmatprep.subr.mxu0 0.0
        %1683 = vmatpush1.msra.mxu0 0.0
        %1684 = vmatprep.subr.mxu0 0.0
        %1685 = vmatpush1.msra.mxu0 0.0
        %1686 = vmatprep.subr.mxu0 0.0
        %1687 = vmatpush1.msra.mxu0 0.0
        %1688 = vmatprep.subr.mxu0 0.0
        %1689 = vmatpush1.msra.mxu0 0.0
        %1690 = vmatprep.subr.mxu0 0.0
        %1691 = vmatpush1.msra.mxu0 0.0
        %1692 = vmatprep.subr.mxu0 0.0
        %1693 = vmatpush1.msra.mxu0 0.0
        %1694 = vmatprep.subr.mxu0 0.0
        %1695 = vmatpush1.msra.mxu0 0.0
        %1696 = vmatprep.subr.mxu0 0.0
        %1697 = vmatpush1.msra.mxu0 0.0
        %1698 = vmatprep.subr.mxu0 0.0
        %1699 = vmatpush1.msra.mxu0 %v1663
        %1700 = vmatprep.subr.mxu0 0.0
        %1701 = vmatpush2.msra.mxu0 0.0
        %1702 = vmatprep.subr.mxu0 0.0
        %1703 = vmatpush2.msra.mxu0 0.0
        %1704 = vmatprep.subr.mxu0 0.0
        %1705 = vmatpush2.msra.mxu0 0.0
        %1706 = vmatprep.subr.mxu0 0.0
        %1707 = vmatpush2.msra.mxu0 0.0
        %1708 = vmatprep.subr.mxu0 0.0
        %1709 = vmatpush2.msra.mxu0 0.0
        %1710 = vmatprep.subr.mxu0 0.0
        %1711 = vmatpush2.msra.mxu0 0.0
        %1712 = vmatprep.subr.mxu0 0.0
        %1713 = vmatpush2.msra.mxu0 0.0
        %1714 = vmatprep.subr.mxu0 0.0
        %1715 = vmatpush2.msra.mxu0 0.0
        %1716 = vmatprep.subr.mxu0 0.0
        %1717 = vmatpush2.msra.mxu0 0.0
        %1718 = vmatprep.subr.mxu0 0.0
        %1719 = vmatpush2.msra.mxu0 0.0
        %1720 = vmatprep.subr.mxu0 0.0
        %1721 = vmatpush2.msra.mxu0 0.0
        %1722 = vmatprep.subr.mxu0 0.0
        %1723 = vmatpush2.msra.mxu0 0.0
        %1724 = vmatprep.subr.mxu0 0.0
        %1725 = vmatpush2.msra.mxu0 0.0
        %1726 = vmatprep.subr.mxu0 0.0
        %1727 = vmatpush2.msra.mxu0 0.0
        %1728 = vmatprep.subr.mxu0 0.0
        %1729 = vmatpush2.msra.mxu0 0.0
        %1730 = vmatprep.subr.mxu0 0.0
        %1731 = vmatpush2.msra.mxu0 0.0
        %1732 = vmatprep.mubr.f32.mxu0 0.0
        %1733 = vmatmul.mubr.f32.gmra.mxu0 %v1666
        %v1734 = vpop.f32.mrf.mxu0
        %v1735 = vadd.f32 0.0, %v1734
        %v1736 = vpop.f32.mrf.mxu0
        %1737 = vdwg.mxu0
        %1738 = vrot.lane.b32.xlu0 %v803, 48
        %v1739 = vpop.permute.xlu0 %1738
        %v1742 = vsel %vm814, %v1661, 0
        %1744 = vmatprep.subr.mxu0 0.0
        %1745 = vmatpush1.msra.mxu0 0.0
        %1746 = vmatprep.subr.mxu0 0.0
        %1747 = vmatpush1.msra.mxu0 0.0
        %1748 = vmatprep.subr.mxu0 0.0
        %1749 = vmatpush1.msra.mxu0 0.0
        %1750 = vmatprep.subr.mxu0 0.0
        %1751 = vmatpush1.msra.mxu0 0.0
        %1752 = vmatprep.subr.mxu0 0.0
        %1753 = vmatpush1.msra.mxu0 0.0
        %1754 = vmatprep.subr.mxu0 0.0
        %1755 = vmatpush1.msra.mxu0 0.0
        %1756 = vmatprep.subr.mxu0 0.0
        %1757 = vmatpush1.msra.mxu0 0.0
        %1758 = vmatprep.subr.mxu0 0.0
        %1759 = vmatpush1.msra.mxu0 0.0
        %1760 = vmatprep.subr.mxu0 0.0
        %1761 = vmatpush1.msra.mxu0 0.0
        %1762 = vmatprep.subr.mxu0 0.0
        %1763 = vmatpush1.msra.mxu0 0.0
        %1764 = vmatprep.subr.mxu0 0.0
        %1765 = vmatpush1.msra.mxu0 0.0
        %1766 = vmatprep.subr.mxu0 0.0
        %1767 = vmatpush1.msra.mxu0 0.0
        %1768 = vmatprep.subr.mxu0 0.0
        %1769 = vmatpush1.msra.mxu0 0.0
        %1770 = vmatprep.subr.mxu0 0.0
        %1771 = vmatpush1.msra.mxu0 0.0
        %1772 = vmatprep.subr.mxu0 0.0
        %1773 = vmatpush1.msra.mxu0 0.0
        %1774 = vmatprep.subr.mxu0 0.0
        %1775 = vmatpush1.msra.mxu0 %v1739
        %1776 = vmatprep.subr.mxu0 0.0
        %1777 = vmatpush2.msra.mxu0 0.0
        %1778 = vmatprep.subr.mxu0 0.0
        %1779 = vmatpush2.msra.mxu0 0.0
        %1780 = vmatprep.subr.mxu0 0.0
        %1781 = vmatpush2.msra.mxu0 0.0
        %1782 = vmatprep.subr.mxu0 0.0
        %1783 = vmatpush2.msra.mxu0 0.0
        %1784 = vmatprep.subr.mxu0 0.0
        %1785 = vmatpush2.msra.mxu0 0.0
        %1786 = vmatprep.subr.mxu0 0.0
        %1787 = vmatpush2.msra.mxu0 0.0
        %1788 = vmatprep.subr.mxu0 0.0
        %1789 = vmatpush2.msra.mxu0 0.0
        %1790 = vmatprep.subr.mxu0 0.0
        %1791 = vmatpush2.msra.mxu0 0.0
        %1792 = vmatprep.subr.mxu0 0.0
        %1793 = vmatpush2.msra.mxu0 0.0
        %1794 = vmatprep.subr.mxu0 0.0
        %1795 = vmatpush2.msra.mxu0 0.0
        %1796 = vmatprep.subr.mxu0 0.0
        %1797 = vmatpush2.msra.mxu0 0.0
        %1798 = vmatprep.subr.mxu0 0.0
        %1799 = vmatpush2.msra.mxu0 0.0
        %1800 = vmatprep.subr.mxu0 0.0
        %1801 = vmatpush2.msra.mxu0 0.0
        %1802 = vmatprep.subr.mxu0 0.0
        %1803 = vmatpush2.msra.mxu0 0.0
        %1804 = vmatprep.subr.mxu0 0.0
        %1805 = vmatpush2.msra.mxu0 0.0
        %1806 = vmatprep.subr.mxu0 0.0
        %1807 = vmatpush2.msra.mxu0 0.0
        %1808 = vmatprep.mubr.f32.mxu0 0.0
        %1809 = vmatmul.mubr.f32.gmra.mxu0 %v1742
        %v1810 = vpop.f32.mrf.mxu0
        %v1811 = vadd.f32 0.0, %v1810
        %v1812 = vpop.f32.mrf.mxu0
        %1813 = vdwg.mxu0
        %1814 = vrot.lane.b32.xlu0 %v800, 104
        %v1815 = vpop.permute.xlu0 %1814
        %1816 = vrot.lane.b32.xlu0 %v800, 72
        %v1817 = vpop.permute.xlu0 %1816
        %v1818 = vsel %vm814, %v1815, 0
        %v1820 = vsel %vm814, %v1817, 0
        %1822 = vmatprep.subr.mxu0 0.0
        %1823 = vmatpush1.xpose.msra.mxu0 0.0
        %1824 = vmatprep.subr.mxu0 0.0
        %1825 = vmatpush1.xpose.msra.mxu0 0.0
        %1826 = vmatprep.subr.mxu0 0.0
        %1827 = vmatpush1.xpose.msra.mxu0 0.0
        %1828 = vmatprep.subr.mxu0 0.0
        %1829 = vmatpush1.xpose.msra.mxu0 0.0
        %1830 = vmatprep.subr.mxu0 0.0
        %1831 = vmatpush1.xpose.msra.mxu0 0.0
        %1832 = vmatprep.subr.mxu0 0.0
        %1833 = vmatpush1.xpose.msra.mxu0 0.0
        %1834 = vmatprep.subr.mxu0 0.0
        %1835 = vmatpush1.xpose.msra.mxu0 0.0
        %1836 = vmatprep.subr.mxu0 0.0
        %1837 = vmatpush1.xpose.msra.mxu0 0.0
        %1838 = vmatprep.subr.mxu0 0.0
        %1839 = vmatpush1.xpose.msra.mxu0 0.0
        %1840 = vmatprep.subr.mxu0 0.0
        %1841 = vmatpush1.xpose.msra.mxu0 0.0
        %1842 = vmatprep.subr.mxu0 0.0
        %1843 = vmatpush1.xpose.msra.mxu0 0.0
        %1844 = vmatprep.subr.mxu0 0.0
        %1845 = vmatpush1.xpose.msra.mxu0 0.0
        %1846 = vmatprep.subr.mxu0 0.0
        %1847 = vmatpush1.xpose.msra.mxu0 0.0
        %1848 = vmatprep.subr.mxu0 0.0
        %1849 = vmatpush1.xpose.msra.mxu0 0.0
        %1850 = vmatprep.subr.mxu0 0.0
        %1851 = vmatpush1.xpose.msra.mxu0 0.0
        %1852 = vmatprep.subr.mxu0 0.0
        %1853 = vmatpush1.xpose.msra.mxu0 %v1820
        %1854 = vmatprep.subr.mxu0 0.0
        %1855 = vmatpush2.xpose.msra.mxu0 0.0
        %1856 = vmatprep.subr.mxu0 0.0
        %1857 = vmatpush2.xpose.msra.mxu0 0.0
        %1858 = vmatprep.subr.mxu0 0.0
        %1859 = vmatpush2.xpose.msra.mxu0 0.0
        %1860 = vmatprep.subr.mxu0 0.0
        %1861 = vmatpush2.xpose.msra.mxu0 0.0
        %1862 = vmatprep.subr.mxu0 0.0
        %1863 = vmatpush2.xpose.msra.mxu0 0.0
        %1864 = vmatprep.subr.mxu0 0.0
        %1865 = vmatpush2.xpose.msra.mxu0 0.0
        %1866 = vmatprep.subr.mxu0 0.0
        %1867 = vmatpush2.xpose.msra.mxu0 0.0
        %1868 = vmatprep.subr.mxu0 0.0
        %1869 = vmatpush2.xpose.msra.mxu0 0.0
        %1870 = vmatprep.subr.mxu0 0.0
        %1871 = vmatpush2.xpose.msra.mxu0 0.0
        %1872 = vmatprep.subr.mxu0 0.0
        %1873 = vmatpush2.xpose.msra.mxu0 0.0
        %1874 = vmatprep.subr.mxu0 0.0
        %1875 = vmatpush2.xpose.msra.mxu0 0.0
        %1876 = vmatprep.subr.mxu0 0.0
        %1877 = vmatpush2.xpose.msra.mxu0 0.0
        %1878 = vmatprep.subr.mxu0 0.0
        %1879 = vmatpush2.xpose.msra.mxu0 0.0
        %1880 = vmatprep.subr.mxu0 0.0
        %1881 = vmatpush2.xpose.msra.mxu0 0.0
        %1882 = vmatprep.subr.mxu0 0.0
        %1883 = vmatpush2.xpose.msra.mxu0 0.0
        %1884 = vmatprep.subr.mxu0 0.0
        %1885 = vmatpush2.xpose.msra.mxu0 0.0
        %1886 = vmatprep.mubr.f32.mxu0 0.0
        %1887 = vmatmul.mubr.f32.gmra.mxu0 %v1818
        %v1888 = vpop.f32.mrf.mxu0
        %v1889 = vadd.f32 0.0, %v1888
        %v1890 = vpop.f32.mrf.mxu0
        %1891 = vdwg.mxu0
        %1892 = vrot.lane.b32.xlu0 %v803, 104
        %v1893 = vpop.permute.xlu0 %1892
        %1894 = vrot.lane.b32.xlu0 %v803, 72
        %v1895 = vpop.permute.xlu0 %1894
        %v1896 = vsel %vm814, %v1893, 0
        %v1898 = vsel %vm814, %v1895, 0
        %1900 = vmatprep.subr.mxu0 0.0
        %1901 = vmatpush1.xpose.msra.mxu0 0.0
        %1902 = vmatprep.subr.mxu0 0.0
        %1903 = vmatpush1.xpose.msra.mxu0 0.0
        %1904 = vmatprep.subr.mxu0 0.0
        %1905 = vmatpush1.xpose.msra.mxu0 0.0
        %1906 = vmatprep.subr.mxu0 0.0
        %1907 = vmatpush1.xpose.msra.mxu0 0.0
        %1908 = vmatprep.subr.mxu0 0.0
        %1909 = vmatpush1.xpose.msra.mxu0 0.0
        %1910 = vmatprep.subr.mxu0 0.0
        %1911 = vmatpush1.xpose.msra.mxu0 0.0
        %1912 = vmatprep.subr.mxu0 0.0
        %1913 = vmatpush1.xpose.msra.mxu0 0.0
        %1914 = vmatprep.subr.mxu0 0.0
        %1915 = vmatpush1.xpose.msra.mxu0 0.0
        %1916 = vmatprep.subr.mxu0 0.0
        %1917 = vmatpush1.xpose.msra.mxu0 0.0
        %1918 = vmatprep.subr.mxu0 0.0
        %1919 = vmatpush1.xpose.msra.mxu0 0.0
        %1920 = vmatprep.subr.mxu0 0.0
        %1921 = vmatpush1.xpose.msra.mxu0 0.0
        %1922 = vmatprep.subr.mxu0 0.0
        %1923 = vmatpush1.xpose.msra.mxu0 0.0
        %1924 = vmatprep.subr.mxu0 0.0
        %1925 = vmatpush1.xpose.msra.mxu0 0.0
        %1926 = vmatprep.subr.mxu0 0.0
        %1927 = vmatpush1.xpose.msra.mxu0 0.0
        %1928 = vmatprep.subr.mxu0 0.0
        %1929 = vmatpush1.xpose.msra.mxu0 0.0
        %1930 = vmatprep.subr.mxu0 0.0
        %1931 = vmatpush1.xpose.msra.mxu0 %v1898
        %1932 = vmatprep.subr.mxu0 0.0
        %1933 = vmatpush2.xpose.msra.mxu0 0.0
        %1934 = vmatprep.subr.mxu0 0.0
        %1935 = vmatpush2.xpose.msra.mxu0 0.0
        %1936 = vmatprep.subr.mxu0 0.0
        %1937 = vmatpush2.xpose.msra.mxu0 0.0
        %1938 = vmatprep.subr.mxu0 0.0
        %1939 = vmatpush2.xpose.msra.mxu0 0.0
        %1940 = vmatprep.subr.mxu0 0.0
        %1941 = vmatpush2.xpose.msra.mxu0 0.0
        %1942 = vmatprep.subr.mxu0 0.0
        %1943 = vmatpush2.xpose.msra.mxu0 0.0
        %1944 = vmatprep.subr.mxu0 0.0
        %1945 = vmatpush2.xpose.msra.mxu0 0.0
        %1946 = vmatprep.subr.mxu0 0.0
        %1947 = vmatpush2.xpose.msra.mxu0 0.0
        %1948 = vmatprep.subr.mxu0 0.0
        %1949 = vmatpush2.xpose.msra.mxu0 0.0
        %1950 = vmatprep.subr.mxu0 0.0
        %1951 = vmatpush2.xpose.msra.mxu0 0.0
        %1952 = vmatprep.subr.mxu0 0.0
        %1953 = vmatpush2.xpose.msra.mxu0 0.0
        %1954 = vmatprep.subr.mxu0 0.0
        %1955 = vmatpush2.xpose.msra.mxu0 0.0
        %1956 = vmatprep.subr.mxu0 0.0
        %1957 = vmatpush2.xpose.msra.mxu0 0.0
        %1958 = vmatprep.subr.mxu0 0.0
        %1959 = vmatpush2.xpose.msra.mxu0 0.0
        %1960 = vmatprep.subr.mxu0 0.0
        %1961 = vmatpush2.xpose.msra.mxu0 0.0
        %1962 = vmatprep.subr.mxu0 0.0
        %1963 = vmatpush2.xpose.msra.mxu0 0.0
        %1964 = vmatprep.mubr.f32.mxu0 0.0
        %1965 = vmatmul.mubr.f32.gmra.mxu0 %v1896
        %v1966 = vpop.f32.mrf.mxu0
        %v1967 = vadd.f32 0.0, %v1966
        %v1968 = vpop.f32.mrf.mxu0
        %1969 = vdwg.mxu0
        %v1970 = vmul.f32 %v1889, 0.35355338
        %v1971 = vmul.f32 %v1967, 0.35355338
        %v1972 = vsel %vm969, %v1970, -1e+30
        %v1973 = vsel %vm969, %v1971, -1e+30
        %v1974 = vsel %vm814, %v1972, -inf
        %1975 = vmax.xlane.f32.xlu0 %v1974
        %v1976 = vpop.xlane.xlu0 %1975
        %v1977 = vsel %vm814, %v1973, -inf
        %1978 = vmax.xlane.f32.xlu0 %v1977
        %v1979 = vpop.xlane.xlu0 %1978
        %v1980 = vsub.f32 %v1972, %v1976
        %v1981 = vsub.f32 %v1973, %v1979
        %v1982 = vmul.f32 %v1980, 1.442695
        %v1983 = vpow.pop %v1982
        %v1984 = vmul.f32 %v1981, 1.442695
        %v1985 = vpow.pop %v1984
        %v1986 = vsel %vm814, %v1983, 0.0
        %1987 = vadd.xlane.f32.xlu0 %v1986
        %v1988 = vpop.xlane.xlu0 %1987
        %v1989 = vsel %vm814, %v1985, 0.0
        %1990 = vadd.xlane.f32.xlu0 %v1989
        %v1991 = vpop.xlane.xlu0 %1990
        %v1992 = vrcp.pop %v1988
        %v1993 = vrcp.pop %v1991
        %v1994 = vmul.f32 %v1983, %v1992
        %v1995 = vmul.f32 %v1985, %v1993
        %1996 = vrot.lane.b32.xlu0 %v800, 40
        %v1997 = vpop.permute.xlu0 %1996
        %v2000 = vsel %vm814, %v1994, 0
        %2002 = vmatprep.subr.mxu0 0.0
        %2003 = vmatpush1.msra.mxu0 0.0
        %2004 = vmatprep.subr.mxu0 0.0
        %2005 = vmatpush1.msra.mxu0 0.0
        %2006 = vmatprep.subr.mxu0 0.0
        %2007 = vmatpush1.msra.mxu0 0.0
        %2008 = vmatprep.subr.mxu0 0.0
        %2009 = vmatpush1.msra.mxu0 0.0
        %2010 = vmatprep.subr.mxu0 0.0
        %2011 = vmatpush1.msra.mxu0 0.0
        %2012 = vmatprep.subr.mxu0 0.0
        %2013 = vmatpush1.msra.mxu0 0.0
        %2014 = vmatprep.subr.mxu0 0.0
        %2015 = vmatpush1.msra.mxu0 0.0
        %2016 = vmatprep.subr.mxu0 0.0
        %2017 = vmatpush1.msra.mxu0 0.0
        %2018 = vmatprep.subr.mxu0 0.0
        %2019 = vmatpush1.msra.mxu0 0.0
        %2020 = vmatprep.subr.mxu0 0.0
        %2021 = vmatpush1.msra.mxu0 0.0
        %2022 = vmatprep.subr.mxu0 0.0
        %2023 = vmatpush1.msra.mxu0 0.0
        %2024 = vmatprep.subr.mxu0 0.0
        %2025 = vmatpush1.msra.mxu0 0.0
        %2026 = vmatprep.subr.mxu0 0.0
        %2027 = vmatpush1.msra.mxu0 0.0
        %2028 = vmatprep.subr.mxu0 0.0
        %2029 = vmatpush1.msra.mxu0 0.0
        %2030 = vmatprep.subr.mxu0 0.0
        %2031 = vmatpush1.msra.mxu0 0.0
        %2032 = vmatprep.subr.mxu0 0.0
        %2033 = vmatpush1.msra.mxu0 %v1997
        %2034 = vmatprep.subr.mxu0 0.0
        %2035 = vmatpush2.msra.mxu0 0.0
        %2036 = vmatprep.subr.mxu0 0.0
        %2037 = vmatpush2.msra.mxu0 0.0
        %2038 = vmatprep.subr.mxu0 0.0
        %2039 = vmatpush2.msra.mxu0 0.0
        %2040 = vmatprep.subr.mxu0 0.0
        %2041 = vmatpush2.msra.mxu0 0.0
        %2042 = vmatprep.subr.mxu0 0.0
        %2043 = vmatpush2.msra.mxu0 0.0
        %2044 = vmatprep.subr.mxu0 0.0
        %2045 = vmatpush2.msra.mxu0 0.0
        %2046 = vmatprep.subr.mxu0 0.0
        %2047 = vmatpush2.msra.mxu0 0.0
        %2048 = vmatprep.subr.mxu0 0.0
        %2049 = vmatpush2.msra.mxu0 0.0
        %2050 = vmatprep.subr.mxu0 0.0
        %2051 = vmatpush2.msra.mxu0 0.0
        %2052 = vmatprep.subr.mxu0 0.0
        %2053 = vmatpush2.msra.mxu0 0.0
        %2054 = vmatprep.subr.mxu0 0.0
        %2055 = vmatpush2.msra.mxu0 0.0
        %2056 = vmatprep.subr.mxu0 0.0
        %2057 = vmatpush2.msra.mxu0 0.0
        %2058 = vmatprep.subr.mxu0 0.0
        %2059 = vmatpush2.msra.mxu0 0.0
        %2060 = vmatprep.subr.mxu0 0.0
        %2061 = vmatpush2.msra.mxu0 0.0
        %2062 = vmatprep.subr.mxu0 0.0
        %2063 = vmatpush2.msra.mxu0 0.0
        %2064 = vmatprep.subr.mxu0 0.0
        %2065 = vmatpush2.msra.mxu0 0.0
        %2066 = vmatprep.mubr.f32.mxu0 0.0
        %2067 = vmatmul.mubr.f32.gmra.mxu0 %v2000
        %v2068 = vpop.f32.mrf.mxu0
        %v2069 = vadd.f32 0.0, %v2068
        %v2070 = vpop.f32.mrf.mxu0
        %2071 = vdwg.mxu0
        %2072 = vrot.lane.b32.xlu0 %v803, 40
        %v2073 = vpop.permute.xlu0 %2072
        %v2076 = vsel %vm814, %v1995, 0
        %2078 = vmatprep.subr.mxu0 0.0
        %2079 = vmatpush1.msra.mxu0 0.0
        %2080 = vmatprep.subr.mxu0 0.0
        %2081 = vmatpush1.msra.mxu0 0.0
        %2082 = vmatprep.subr.mxu0 0.0
        %2083 = vmatpush1.msra.mxu0 0.0
        %2084 = vmatprep.subr.mxu0 0.0
        %2085 = vmatpush1.msra.mxu0 0.0
        %2086 = vmatprep.subr.mxu0 0.0
        %2087 = vmatpush1.msra.mxu0 0.0
        %2088 = vmatprep.subr.mxu0 0.0
        %2089 = vmatpush1.msra.mxu0 0.0
        %2090 = vmatprep.subr.mxu0 0.0
        %2091 = vmatpush1.msra.mxu0 0.0
        %2092 = vmatprep.subr.mxu0 0.0
        %2093 = vmatpush1.msra.mxu0 0.0
        %2094 = vmatprep.subr.mxu0 0.0
        %2095 = vmatpush1.msra.mxu0 0.0
        %2096 = vmatprep.subr.mxu0 0.0
        %2097 = vmatpush1.msra.mxu0 0.0
        %2098 = vmatprep.subr.mxu0 0.0
        %2099 = vmatpush1.msra.mxu0 0.0
        %2100 = vmatprep.subr.mxu0 0.0
        %2101 = vmatpush1.msra.mxu0 0.0
        %2102 = vmatprep.subr.mxu0 0.0
        %2103 = vmatpush1.msra.mxu0 0.0
        %2104 = vmatprep.subr.mxu0 0.0
        %2105 = vmatpush1.msra.mxu0 0.0
        %2106 = vmatprep.subr.mxu0 0.0
        %2107 = vmatpush1.msra.mxu0 0.0
        %2108 = vmatprep.subr.mxu0 0.0
        %2109 = vmatpush1.msra.mxu0 %v2073
        %2110 = vmatprep.subr.mxu0 0.0
        %2111 = vmatpush2.msra.mxu0 0.0
        %2112 = vmatprep.subr.mxu0 0.0
        %2113 = vmatpush2.msra.mxu0 0.0
        %2114 = vmatprep.subr.mxu0 0.0
        %2115 = vmatpush2.msra.mxu0 0.0
        %2116 = vmatprep.subr.mxu0 0.0
        %2117 = vmatpush2.msra.mxu0 0.0
        %2118 = vmatprep.subr.mxu0 0.0
        %2119 = vmatpush2.msra.mxu0 0.0
        %2120 = vmatprep.subr.mxu0 0.0
        %2121 = vmatpush2.msra.mxu0 0.0
        %2122 = vmatprep.subr.mxu0 0.0
        %2123 = vmatpush2.msra.mxu0 0.0
        %2124 = vmatprep.subr.mxu0 0.0
        %2125 = vmatpush2.msra.mxu0 0.0
        %2126 = vmatprep.subr.mxu0 0.0
        %2127 = vmatpush2.msra.mxu0 0.0
        %2128 = vmatprep.subr.mxu0 0.0
        %2129 = vmatpush2.msra.mxu0 0.0
        %2130 = vmatprep.subr.mxu0 0.0
        %2131 = vmatpush2.msra.mxu0 0.0
        %2132 = vmatprep.subr.mxu0 0.0
        %2133 = vmatpush2.msra.mxu0 0.0
        %2134 = vmatprep.subr.mxu0 0.0
        %2135 = vmatpush2.msra.mxu0 0.0
        %2136 = vmatprep.subr.mxu0 0.0
        %2137 = vmatpush2.msra.mxu0 0.0
        %2138 = vmatprep.subr.mxu0 0.0
        %2139 = vmatpush2.msra.mxu0 0.0
        %2140 = vmatprep.subr.mxu0 0.0
        %2141 = vmatpush2.msra.mxu0 0.0
        %2142 = vmatprep.mubr.f32.mxu0 0.0
        %2143 = vmatmul.mubr.f32.gmra.mxu0 %v2076
        %v2144 = vpop.f32.mrf.mxu0
        %v2145 = vadd.f32 0.0, %v2144
        %v2146 = vpop.f32.mrf.mxu0
        %2147 = vdwg.mxu0
        %2150 = vrot.lane.b32.xlu0 %v1401, 8
        %v2151 = vpop.permute.xlu0 %2150
        %2152 = vrot.lane.b32.xlu0 %v1477, 8
        %v2153 = vpop.permute.xlu0 %2152
        %2158 = vrot.lane.b32.xlu0 %v1735, 16
        %v2159 = vpop.permute.xlu0 %2158
        %2160 = vrot.lane.b32.xlu0 %v1811, 16
        %v2161 = vpop.permute.xlu0 %2160
        %2166 = vrot.lane.b32.xlu0 %v2069, 24
        %v2167 = vpop.permute.xlu0 %2166
        %2168 = vrot.lane.b32.xlu0 %v2145, 24
        %v2169 = vpop.permute.xlu0 %2168
        %v2172 = vsel %vm814, %v1067, %v2151
        %v2173 = vsel %vm814, %v1143, %v2153
        %vm2174 = vcmask 130048
        %v2175 = vsel %vm2174, %v2172, %v2159
        %v2176 = vsel %vm2174, %v2173, %v2161
        %vm2177 = vcmask 195584
        %v2178 = vsel %vm2177, %v2175, %v2167
        %v2179 = vsel %vm2177, %v2176, %v2169
        %v2180 = vpack.c.bf16 %v2179, %v2178
        %v2181 = vld [vmem:[%s654] sm:$0xf]
        %v2182 = vld [vmem:[%s654 + $0x4] sm:$0xf]
        %v2183 = vld [vmem:[%s654 + $0x8] sm:$0xf]
        %v2184 = vld [vmem:[%s654 + $0xc] sm:$0xf]
        %v2185 = vld [vmem:[%s657] sm:$0x1]
        %v2187 = vlaneseq
        %v2188 = vshrl.u32 %v2187, 7
        %v2189 = vsub.s32 0, %v2188
        %v2190 = vrot.slane %v2185, %v2189
        %v2196 = vunpack.c.l.b16 %v2181
        %v2197 = vunpack.c.l.b16 %v2182
        %v2198 = vunpack.c.l.b16 %v2183
        %v2199 = vunpack.c.l.b16 %v2184
        %v2200 = vpack.c.b16 %v2197, %v2196
        %v2201 = vpack.c.b16 %v2199, %v2198
        %v2205 = vsel %vm694, %v2180, 0
        %2207 = vmatprep.subr.bf16.mxu0 0
        %2208 = vmatpush1.bf16.msra.mxu0 0
        %2209 = vmatprep.subr.bf16.mxu0 0
        %2210 = vmatpush1.bf16.msra.mxu0 0
        %2211 = vmatprep.subr.bf16.mxu0 0
        %2212 = vmatpush1.bf16.msra.mxu0 0
        %2213 = vmatprep.subr.bf16.mxu0 0
        %2214 = vmatpush1.bf16.msra.mxu0 0
        %2215 = vmatprep.subr.bf16.mxu0 0
        %2216 = vmatpush1.bf16.msra.mxu0 0
        %2217 = vmatprep.subr.bf16.mxu0 0
        %2218 = vmatpush1.bf16.msra.mxu0 0
        %2219 = vmatprep.subr.bf16.mxu0 0
        %2220 = vmatpush1.bf16.msra.mxu0 %v2201
        %2221 = vmatprep.subr.bf16.mxu0 0
        %2222 = vmatpush1.bf16.msra.mxu0 %v2200
        %2223 = vmatprep.subr.bf16.mxu0 0
        %2224 = vmatpush2.bf16.msra.mxu0 0
        %2225 = vmatprep.subr.bf16.mxu0 0
        %2226 = vmatpush2.bf16.msra.mxu0 0
        %2227 = vmatprep.subr.bf16.mxu0 0
        %2228 = vmatpush2.bf16.msra.mxu0 0
        %2229 = vmatprep.subr.bf16.mxu0 0
        %2230 = vmatpush2.bf16.msra.mxu0 0
        %2231 = vmatprep.subr.bf16.mxu0 0
        %2232 = vmatpush2.bf16.msra.mxu0 0
        %2233 = vmatprep.subr.bf16.mxu0 0
        %2234 = vmatpush2.bf16.msra.mxu0 0
        %2235 = vmatprep.subr.bf16.mxu0 0
        %2236 = vmatpush2.bf16.msra.mxu0 0
        %2237 = vmatprep.subr.bf16.mxu0 0
        %2238 = vmatpush2.bf16.msra.mxu0 0
        %2239 = vmatprep.mubr.bf16.mxu0 0
        %2240 = vmatmul.mubr.bf16.gmra.mxu0 %v2205
        %v2241 = vpop.f32.mrf.mxu0
        %v2242 = vadd.f32 %v2190, %v2241
        %v2243 = vpop.f32.mrf.mxu0
        %v2244 = vpop.f32.mrf.mxu0
        %v2245 = vadd.f32 %v2190, %v2244
        %v2246 = vpop.f32.mrf.mxu0
        %2247 = vdwg.mxu0
        %v2248 = vadd.f32 %v690, %v2242
        %v2249 = vadd.f32 %v691, %v2245
        %v2250 = vld [vmem:[%s660] sm:$0x1]
        %v2251 = vld [vmem:[%s663] sm:$0x1]
        %v2252 = vsel %vm694, %v2248, 0.0
        %2253 = vadd.xlane.f32.xlu0 %v2252
        %v2254 = vpop.xlane.xlu0 %2253
        %v2255 = vsel %vm694, %v2249, 0.0
        %2256 = vadd.xlane.f32.xlu0 %v2255
        %v2257 = vpop.xlane.xlu0 %2256
        %v2258 = vmul.f32 %v2254, %v701
        %v2259 = vmul.f32 %v2257, %v701
        %v2260 = vsub.f32 %v2248, %v2258
        %v2261 = vsub.f32 %v2249, %v2259
        %v2262 = vmul.f32 %v2260, %v2260
        %v2263 = vmul.f32 %v2261, %v2261
        %v2264 = vsel %vm694, %v2262, 0.0
        %2265 = vadd.xlane.f32.xlu0 %v2264
        %v2266 = vpop.xlane.xlu0 %2265
        %v2267 = vsel %vm694, %v2263, 0.0
        %2268 = vadd.xlane.f32.xlu0 %v2267
        %v2269 = vpop.xlane.xlu0 %2268
        %v2270 = vmul.f32 %v2266, %v701
        %v2271 = vmul.f32 %v2269, %v701
        %v2272 = vadd.f32 %v2270, 1e-05
        %v2273 = vadd.f32 %v2271, 1e-05
        %v2274 = vrsqrt.pop %v2272
        %v2275 = vrsqrt.pop %v2273
        %v2276 = vmul.f32 %v2260, %v2274
        %v2277 = vmul.f32 %v2261, %v2275
        %v2279 = vlaneseq
        %v2280 = vshrl.u32 %v2279, 7
        %v2281 = vsub.s32 0, %v2280
        %v2282 = vrot.slane %v2250, %v2281
        %v2284 = vmul.f32 %v2276, %v2282
        %v2285 = vmul.f32 %v2277, %v2282
        %v2287 = vlaneseq
        %v2288 = vshrl.u32 %v2287, 7
        %v2289 = vsub.s32 0, %v2288
        %v2290 = vrot.slane %v2251, %v2289
        %v2292 = vadd.f32 %v2284, %v2290
        %v2293 = vadd.f32 %v2285, %v2290
        %v2294 = vpack.c.bf16 %v2293, %v2292
        %v2295 = vld [vmem:[%s668] sm:$0xf]
        %v2296 = vld [vmem:[%s668 + $0x4] sm:$0xf]
        %v2297 = vld [vmem:[%s668 + $0x8] sm:$0xf]
        %v2298 = vld [vmem:[%s668 + $0xc] sm:$0xf]
        %v2299 = vld [vmem:[%s671] sm:$0x1]
        %v2301 = vlaneseq
        %v2302 = vshrl.u32 %v2301, 7
        %v2303 = vsub.s32 0, %v2302
        %v2304 = vrot.slane %v2299, %v2303
        %v2310 = vunpack.c.l.b16 %v2295
        %v2311 = vunpack.c.l.b16 %v2296
        %v2312 = vunpack.c.l.b16 %v2297
        %v2313 = vunpack.c.l.b16 %v2298
        %v2314 = vpack.c.b16 %v2311, %v2310
        %v2315 = vpack.c.b16 %v2313, %v2312
        %v2319 = vsel %vm694, %v2294, 0
        %2321 = vmatprep.subr.bf16.mxu0 0
        %2322 = vmatpush1.bf16.msra.mxu0 0
        %2323 = vmatprep.subr.bf16.mxu0 0
        %2324 = vmatpush1.bf16.msra.mxu0 0
        %2325 = vmatprep.subr.bf16.mxu0 0
        %2326 = vmatpush1.bf16.msra.mxu0 0
        %2327 = vmatprep.subr.bf16.mxu0 0
        %2328 = vmatpush1.bf16.msra.mxu0 0
        %2329 = vmatprep.subr.bf16.mxu0 0
        %2330 = vmatpush1.bf16.msra.mxu0 0
        %2331 = vmatprep.subr.bf16.mxu0 0
        %2332 = vmatpush1.bf16.msra.mxu0 0
        %2333 = vmatprep.subr.bf16.mxu0 0
        %2334 = vmatpush1.bf16.msra.mxu0 %v2315
        %2335 = vmatprep.subr.bf16.mxu0 0
        %2336 = vmatpush1.bf16.msra.mxu0 %v2314
        %2337 = vmatprep.subr.bf16.mxu0 0
        %2338 = vmatpush2.bf16.msra.mxu0 0
        %2339 = vmatprep.subr.bf16.mxu0 0
        %2340 = vmatpush2.bf16.msra.mxu0 0
        %2341 = vmatprep.subr.bf16.mxu0 0
        %2342 = vmatpush2.bf16.msra.mxu0 0
        %2343 = vmatprep.subr.bf16.mxu0 0
        %2344 = vmatpush2.bf16.msra.mxu0 0
        %2345 = vmatprep.subr.bf16.mxu0 0
        %2346 = vmatpush2.bf16.msra.mxu0 0
        %2347 = vmatprep.subr.bf16.mxu0 0
        %2348 = vmatpush2.bf16.msra.mxu0 0
        %2349 = vmatprep.subr.bf16.mxu0 0
        %2350 = vmatpush2.bf16.msra.mxu0 0
        %2351 = vmatprep.subr.bf16.mxu0 0
        %2352 = vmatpush2.bf16.msra.mxu0 0
        %2353 = vmatprep.mubr.bf16.mxu0 0
        %2354 = vmatmul.mubr.bf16.gmra.mxu0 %v2319
        %v2355 = vpop.f32.mrf.mxu0
        %v2356 = vadd.f32 %v2304, %v2355
        %v2357 = vpop.f32.mrf.mxu0
        %v2358 = vpop.f32.mrf.mxu0
        %v2359 = vadd.f32 %v2304, %v2358
        %v2360 = vpop.f32.mrf.mxu0
        %2361 = vdwg.mxu0
        %v2362 = vmul.f32 %v2356, 0.5
        %v2363 = vmul.f32 %v2359, 0.5
        %v2364 = vmul.f32 %v2356, 0.70710677
        %v2365 = vmul.f32 %v2359, 0.70710677
        %v2366 = verf.f32.pop %v2364
        %v2367 = verf.f32.pop %v2365
        %v2368 = vadd.f32 %v2366, 1.0
        %v2369 = vadd.f32 %v2367, 1.0
        %v2370 = vmul.f32 %v2362, %v2368
        %v2371 = vmul.f32 %v2363, %v2369
        %v2372 = vpack.c.bf16 %v2371, %v2370
        %v2373 = vld [vmem:[%s676] sm:$0xf]
        %v2374 = vld [vmem:[%s676 + $0x4] sm:$0xf]
        %v2375 = vld [vmem:[%s676 + $0x8] sm:$0xf]
        %v2376 = vld [vmem:[%s676 + $0xc] sm:$0xf]
        %v2377 = vld [vmem:[%s676 + $0x10] sm:$0xf]
        %v2378 = vld [vmem:[%s676 + $0x14] sm:$0xf]
        %v2379 = vld [vmem:[%s676 + $0x18] sm:$0xf]
        %v2380 = vld [vmem:[%s676 + $0x1c] sm:$0xf]
        %v2381 = vld [vmem:[%s676 + $0x20] sm:$0xf]
        %v2382 = vld [vmem:[%s676 + $0x24] sm:$0xf]
        %v2383 = vld [vmem:[%s676 + $0x28] sm:$0xf]
        %v2384 = vld [vmem:[%s676 + $0x2c] sm:$0xf]
        %v2385 = vld [vmem:[%s676 + $0x30] sm:$0xf]
        %v2386 = vld [vmem:[%s676 + $0x34] sm:$0xf]
        %v2387 = vld [vmem:[%s676 + $0x38] sm:$0xf]
        %v2388 = vld [vmem:[%s676 + $0x3c] sm:$0xf]
        %v2389 = vld [vmem:[%s679] sm:$0x1]
        %v2391 = vlaneseq
        %v2392 = vshrl.u32 %v2391, 7
        %v2393 = vsub.s32 0, %v2392
        %v2394 = vrot.slane %v2389, %v2393
        %v2412 = vunpack.c.l.b16 %v2373
        %v2413 = vunpack.c.l.b16 %v2374
        %v2414 = vunpack.c.l.b16 %v2375
        %v2415 = vunpack.c.l.b16 %v2376
        %v2416 = vunpack.c.l.b16 %v2377
        %v2417 = vunpack.c.l.b16 %v2378
        %v2418 = vunpack.c.l.b16 %v2379
        %v2419 = vunpack.c.l.b16 %v2380
        %v2420 = vunpack.c.l.b16 %v2381
        %v2421 = vunpack.c.l.b16 %v2382
        %v2422 = vunpack.c.l.b16 %v2383
        %v2423 = vunpack.c.l.b16 %v2384
        %v2424 = vunpack.c.l.b16 %v2385
        %v2425 = vunpack.c.l.b16 %v2386
        %v2426 = vunpack.c.l.b16 %v2387
        %v2427 = vunpack.c.l.b16 %v2388
        %v2428 = vpack.c.b16 %v2413, %v2412
        %v2429 = vpack.c.b16 %v2415, %v2414
        %v2430 = vpack.c.b16 %v2417, %v2416
        %v2431 = vpack.c.b16 %v2419, %v2418
        %v2432 = vpack.c.b16 %v2421, %v2420
        %v2433 = vpack.c.b16 %v2423, %v2422
        %v2434 = vpack.c.b16 %v2425, %v2424
        %v2435 = vpack.c.b16 %v2427, %v2426
        %2444 = vmatprep.subr.bf16.mxu0 0
        %2445 = vmatpush1.bf16.msra.mxu0 %v2435
        %2446 = vmatprep.subr.bf16.mxu0 0
        %2447 = vmatpush1.bf16.msra.mxu0 %v2434
        %2448 = vmatprep.subr.bf16.mxu0 0
        %2449 = vmatpush1.bf16.msra.mxu0 %v2433
        %2450 = vmatprep.subr.bf16.mxu0 0
        %2451 = vmatpush1.bf16.msra.mxu0 %v2432
        %2452 = vmatprep.subr.bf16.mxu0 0
        %2453 = vmatpush1.bf16.msra.mxu0 %v2431
        %2454 = vmatprep.subr.bf16.mxu0 0
        %2455 = vmatpush1.bf16.msra.mxu0 %v2430
        %2456 = vmatprep.subr.bf16.mxu0 0
        %2457 = vmatpush1.bf16.msra.mxu0 %v2429
        %2458 = vmatprep.subr.bf16.mxu0 0
        %2459 = vmatpush1.bf16.msra.mxu0 %v2428
        %2460 = vmatprep.subr.bf16.mxu0 0
        %2461 = vmatpush2.bf16.msra.mxu0 0
        %2462 = vmatprep.subr.bf16.mxu0 0
        %2463 = vmatpush2.bf16.msra.mxu0 0
        %2464 = vmatprep.subr.bf16.mxu0 0
        %2465 = vmatpush2.bf16.msra.mxu0 0
        %2466 = vmatprep.subr.bf16.mxu0 0
        %2467 = vmatpush2.bf16.msra.mxu0 0
        %2468 = vmatprep.subr.bf16.mxu0 0
        %2469 = vmatpush2.bf16.msra.mxu0 0
        %2470 = vmatprep.subr.bf16.mxu0 0
        %2471 = vmatpush2.bf16.msra.mxu0 0
        %2472 = vmatprep.subr.bf16.mxu0 0
        %2473 = vmatpush2.bf16.msra.mxu0 0
        %2474 = vmatprep.subr.bf16.mxu0 0
        %2475 = vmatpush2.bf16.msra.mxu0 0
        %2476 = vmatprep.mubr.bf16.mxu0 0
        %2477 = vmatmul.mubr.bf16.gmra.mxu0 %v2372
        %v2478 = vpop.f32.mrf.mxu0
        %v2479 = vadd.f32 %v2394, %v2478
        %v2480 = vpop.f32.mrf.mxu0
        %v2481 = vpop.f32.mrf.mxu0
        %v2482 = vadd.f32 %v2394, %v2481
        %v2483 = vpop.f32.mrf.mxu0
        %2484 = vdwg.mxu0
        %v2485 = vadd.f32 %v2248, %v2479
        %v2486 = vadd.f32 %v2249, %v2482
        %2487 = vst.msk [vmem:[#allocation2] sm:$0xff] %vm694, %v2485
        %2488 = vst.msk [vmem:[#allocation2 + $0x8] sm:$0xff] %vm694, %v2486
        %p2489 = scmp.eq.s32.totalorder %s28, 1
        // Predicated region
        $region89: #{ethos_forward.1} parent=83 // pred_check
          %p2490 = pneg %p2489
        $region90: #{ethos_forward.1} parent=83 // pred_check_branch
          %2492 = sbr.rel (%p2490) target = $region92
        $region91: #{ethos_forward.1} parent=83 // pred_region
          %v2493 = vld [vmem:[%s13] sm:$0x1]
          %v2494 = vld [vmem:[%s14] sm:$0x1]
          %vm2495 = vcmask 261127
          %v2496 = vsel %vm2495, %v2485, 0.0
          %2497 = vadd.xlane.f32.xlu0 %v2496
          %v2498 = vpop.xlane.xlu0 %2497
          %v2499 = vsel %vm2495, %v2486, 0.0
          %2500 = vadd.xlane.f32.xlu0 %v2499
          %v2501 = vpop.xlane.xlu0 %2500
          %v2502 = vmul.f32 %v2498, %v701
          %v2503 = vmul.f32 %v2501, %v701
          %v2504 = vsub.f32 %v2485, %v2502
          %v2505 = vsub.f32 %v2486, %v2503
          %v2506 = vmul.f32 %v2504, %v2504
          %v2507 = vmul.f32 %v2505, %v2505
          %v2508 = vsel %vm2495, %v2506, 0.0
          %2509 = vadd.xlane.f32.xlu0 %v2508
          %v2510 = vpop.xlane.xlu0 %2509
          %v2511 = vsel %vm2495, %v2507, 0.0
          %2512 = vadd.xlane.f32.xlu0 %v2511
          %v2513 = vpop.xlane.xlu0 %2512
          %v2514 = vmul.f32 %v2510, %v701
          %v2515 = vmul.f32 %v2513, %v701
          %v2516 = vadd.f32 %v2514, 1e-05
          %v2517 = vadd.f32 %v2515, 1e-05
          %v2518 = vrsqrt.pop %v2516
          %v2519 = vrsqrt.pop %v2517
          %v2520 = vmul.f32 %v2504, %v2518
          %v2521 = vmul.f32 %v2505, %v2519
          %v2523 = vlaneseq
          %v2524 = vshrl.u32 %v2523, 7
          %v2525 = vsub.s32 0, %v2524
          %v2526 = vrot.slane %v2493, %v2525
          %v2528 = vmul.f32 %v2520, %v2526
          %v2529 = vmul.f32 %v2521, %v2526
          %v2531 = vlaneseq
          %v2532 = vshrl.u32 %v2531, 7
          %v2533 = vsub.s32 0, %v2532
          %v2534 = vrot.slane %v2494, %v2533
          %v2536 = vadd.f32 %v2528, %v2534
          %v2537 = vadd.f32 %v2529, %v2534
          %v2538 = vpack.c.bf16 %v2536, %v2536
          %v2539 = vpack.c.bf16 %v2537, %v2537
          %v2540 = vld [vmem:[%s15] sm:$0xf]
          %v2541 = vld [vmem:[%s15 + $0x4] sm:$0xf]
          %v2542 = vld [vmem:[%s15 + $0x8] sm:$0xf]
          %v2543 = vld [vmem:[%s15 + $0xc] sm:$0xf]
          %v2546 = vunpack.c.l.b16 %v2538
          %v2547 = vunpack.c.l.b16 %v2539
          %v2548 = vrot.slane %v2546, 7
          %v2549 = vrot.slane %v2547, 6
          %vm2550 = vcmask 1041409
          %v2551 = vsel %vm2550, %v2549, %v2548
          %v2552 = vpack.c.b16 %v2551, %v2551
          %v2557 = vunpack.c.l.b16 %v2540
          %v2558 = vunpack.c.l.b16 %v2541
          %v2559 = vunpack.c.l.b16 %v2542
          %v2560 = vunpack.c.l.b16 %v2543
          %v2561 = vpack.c.b16 %v2558, %v2557
          %v2562 = vpack.c.b16 %v2560, %v2559
          %v2566 = vsel %vm694, %v2552, 0
          %2568 = vmatprep.subr.bf16.mxu0 0
          %2569 = vmatpush1.bf16.msra.mxu0 0
          %2570 = vmatprep.subr.bf16.mxu0 0
          %2571 = vmatpush1.bf16.msra.mxu0 0
          %2572 = vmatprep.subr.bf16.mxu0 0
          %2573 = vmatpush1.bf16.msra.mxu0 0
          %2574 = vmatprep.subr.bf16.mxu0 0
          %2575 = vmatpush1.bf16.msra.mxu0 0
          %2576 = vmatprep.subr.bf16.mxu0 0
          %2577 = vmatpush1.bf16.msra.mxu0 0
          %2578 = vmatprep.subr.bf16.mxu0 0
          %2579 = vmatpush1.bf16.msra.mxu0 0
          %2580 = vmatprep.subr.bf16.mxu0 0
          %2581 = vmatpush1.bf16.msra.mxu0 %v2562
          %2582 = vmatprep.subr.bf16.mxu0 0
          %2583 = vmatpush1.bf16.msra.mxu0 %v2561
          %2584 = vmatprep.subr.bf16.mxu0 0
          %2585 = vmatpush2.bf16.msra.mxu0 0
          %2586 = vmatprep.subr.bf16.mxu0 0
          %2587 = vmatpush2.bf16.msra.mxu0 0
          %2588 = vmatprep.subr.bf16.mxu0 0
          %2589 = vmatpush2.bf16.msra.mxu0 0
          %2590 = vmatprep.subr.bf16.mxu0 0
          %2591 = vmatpush2.bf16.msra.mxu0 0
          %2592 = vmatprep.subr.bf16.mxu0 0
          %2593 = vmatpush2.bf16.msra.mxu0 0
          %2594 = vmatprep.subr.bf16.mxu0 0
          %2595 = vmatpush2.bf16.msra.mxu0 0
          %2596 = vmatprep.subr.bf16.mxu0 0
          %2597 = vmatpush2.bf16.msra.mxu0 0
          %2598 = vmatprep.subr.bf16.mxu0 0
          %2599 = vmatpush2.bf16.msra.mxu0 0
          %2600 = vmatprep.mubr.bf16.mxu0 0
          %2601 = vmatmul.mubr.bf16.gmra.mxu0 %v2566
          %v2602 = vpop.f32.mrf.mxu0
          %v2603 = vadd.f32 0.0, %v2602
          %v2604 = vpop.f32.mrf.mxu0
          %v2605 = vpop.f32.mrf.mxu0
          %v2606 = vpop.f32.mrf.mxu0
          %2607 = vdwg.mxu0
          %v2610 = vunpack.c.l.s4 1966171168
          %v2611 = vunpack.c.0.s8 %v2610
          %v2612 = vlaneseq
          %v2613 = vshrl.u32 %v2612, 7
          %v2614 = vsub.s32 %v2611, %v2613
          %v2615 = vrot.slane %v2603, %v2614
          %v2616 = vcombine.high %v2615, %v2615
          %v2618 = vunpack.c.l.s4 1966171168
          %v2619 = vunpack.c.0.s8 %v2618
          %v2620 = vlaneseq
          %v2621 = vshrl.u32 %v2620, 7
          %v2622 = vsub.s32 %v2619, %v2621
          %v2623 = vrot.slane %v2615, %v2622
          %v2625 = vunpack.c.l.s4 1966171168
          %v2626 = vunpack.c.0.s8 %v2625
          %v2627 = vlaneseq
          %v2628 = vshrl.u32 %v2627, 7
          %v2629 = vsub.s32 %v2626, %v2628
          %v2630 = vrot.slane %v2616, %v2629
          %2633 = vst [vmem:[#allocation3] sm:$0x1] %v2623
          %2634 = vst [vmem:[#allocation3 + $0x1] sm:$0x1] %v2630
        $region92: #{ethos_forward.1} parent=83 // pred_fallthru
          _
        // Predicated region
        $region93: #{ethos_forward.1} parent=83 // pred_check
          %p2635 = pneg %p437
        $region94: #{ethos_forward.1} parent=83 // pred_check_branch
          %2637 = sbr.rel (%p2635) target = $region96
        $region95: #{ethos_forward.1} parent=83 // pred_region
          %s2639 = ssub.s32 32, 32
          %2640 = vsyncadd [#allocation4], %s2639
          %s2641 = sshll.u32 [#allocation3], 4
          %s2642 = int_to_ptr.vmem [resolvable:$true] %s2641
          %2647 = dma.vmem_to_hbm [thread:$0]  %s2642, 32, %s16, [#allocation4], 16, 16, 1
        $region96: #{ethos_forward.1} parent=83 // pred_fallthru
          _
        // Predicated region
        $region97: #{ethos_forward.1} parent=83 // pred_check
          %p2648 = pneg %p437
        $region98: #{ethos_forward.1} parent=83 // pred_check_branch
          %2650 = sbr.rel (%p2648) target = $region100
        $region99: #{ethos_forward.1} parent=83 // pred_region
          %2651 = dma.done [#allocation4], 32
        $region100: #{ethos_forward.1} parent=83 // pred_fallthru
          _
      $region84: #{ethos_forward.1} parent=5 // pred_fallthru
        _
      %p2652 = scmp.le.s32.totalorder 2, %s23
      // Predicated region
      $region101: #{ethos_forward.1} parent=5 // pred_check
        %p2653 = pneg %p2652
      $region102: #{ethos_forward.1} parent=5 // pred_check_branch
        %2655 = sbr.rel (%p2653) target = $region104
      $region103: #{ethos_forward.1} parent=5 // pred_region
        %s2656 = ssub.s32 %s23, 2
      $region104: #{ethos_forward.1} parent=5 // pred_fallthru
        _
    $region6: #{ethos_forward.1} parent=1 // loop_footer
      %s27 = sadd.s32 1, %s23
    $region7: #{ethos_forward.1} parent=1 // loop_footer_branch
      %22 = sbr.rel target = $region3
    $region8: #{ethos_forward.1} parent=1 // loop_exit
      _
    %2657 = vsyncpa [#allocation4], 1
    %s2658 = scalar_lea.sflag [#allocation4], 1
    %2659 = vsyncpa %s2658, 1

</llo_original>
